<compile_context>
chip_gen: v5e
topology: v5e:2x2
jax: 0.10.0
libtpu: 0.0.40
codegen_flags: <defaults>
</compile_context>

<pallas_src>
import functools

import jax
import jax.numpy as jnp
import numpy as np
from jax import lax
from jax.experimental import pallas as pl
from jax.experimental.pallas import tpu as pltpu

# bf16 operands for the hoisted input projection + final FC only (f32
# accumulate, recurrent matmul stays f32). Off by default for f32 parity.
BF16_OFFPATH_MATMUL = False

# Padded gate-block order (i, f, o, g) <- PyTorch weight order (i, f, g, o).
_GATE_SRC = (0, 1, 3, 2)


def _round_up(x, m):
    return (x + m - 1) // m * m


# ----------------------------------------------------------------------------
# Fused kernel: stacked LSTM layers + final Linear, grid over time chunks.
# ----------------------------------------------------------------------------
def _fused_lstm_fc_kernel(len_ref, x_ref, wih_ref, whh_ref, b_ref,
                          fcw_ref, fcb_ref, out_ref,
                          h_scr, c_scr, act_scr, gates_scr,
                          *, num_layers, chunk_t, b_pad, h_pad, unroll,
                          proj_dtype):
    chunk = pl.program_id(0)

    # Reset the per-layer (h, c) carry at the first time chunk.
    @pl.when(chunk == 0)
    def _():
        h_scr[...] = jnp.zeros_like(h_scr)
        c_scr[...] = jnp.zeros_like(c_scr)

    # packed-sequence mask source, hoisted out of every loop (layer- and
    # time-invariant): lane-broadcast lengths once; per step only one vcmp.
    lengths_b = jnp.broadcast_to(len_ref[...], (b_pad, h_pad))       # int32
    t_base = chunk * chunk_t

    for layer in range(num_layers):
        src = x_ref if layer == 0 else act_scr
        # Hoisted input projection + bias for the whole chunk: one big MXU
        # matmul off the serial recurrence path (bf16 operands if enabled).
        gates_scr[...] = (
            jnp.dot(src[...].astype(proj_dtype), wih_ref[layer],
                    preferred_element_type=jnp.float32) + b_ref[layer])
        w_hh = whh_ref[layer]          # f32, loaded once per layer (no per-step cast)

        def step(lt, carry, w_hh=w_hh):
            h, c = carry
            row = pl.multiple_of(lt * b_pad, b_pad)
            gates = (gates_scr[pl.ds(row, b_pad), :]
                     + jnp.dot(h, w_hh, preferred_element_type=jnp.float32))
            # gate blocks packed (i, f, o, g): one sigmoid region + one tanh.
            sig = jax.nn.sigmoid(gates[:, :3 * h_pad])
            i_g = sig[:, 0 * h_pad:1 * h_pad]
            f_g = sig[:, 1 * h_pad:2 * h_pad]
            o_g = sig[:, 2 * h_pad:3 * h_pad]
            g_g = jnp.tanh(gates[:, 3 * h_pad:4 * h_pad])
            c_new = f_g * c + i_g * g_g
            h_new = o_g * jnp.tanh(c_new)
            # packed-sequence semantics: freeze (h, c) and zero the layer
            # output past each sequence's length (vsel, not mul/add masking).
            keep = lengths_b > (t_base + lt)
            h = jnp.where(keep, h_new, h)
            c = jnp.where(keep, c_new, c)
            act_scr[pl.ds(row, b_pad), :] = jnp.where(keep, h_new, 0.0)
            return h, c

        h_fin, c_fin = lax.fori_loop(0, chunk_t, step,
                                     (h_scr[layer], c_scr[layer]),
                                     unroll=unroll)
        h_scr[layer] = h_fin
        c_scr[layer] = c_fin

    # Final Linear over this chunk's rows: lane-dense MXU matmul; the chunk's
    # writeback overlaps the next chunk's recurrence via BlockSpec pipelining.
    out_ref[...] = (
        jnp.dot(act_scr[...].astype(proj_dtype), fcw_ref[...],
                preferred_element_type=jnp.float32) + fcb_ref[...])


def fused_lstm_fc(len_col, x2d, wih, whh, bias, fcw, fcb, *,
                  num_layers, t_pad, chunk_t, b_pad, h_pad, o_pad):
    """len_col: (B_pad,1) i32, x2d: (T_pad*B_pad, H_pad) f32 (row = t*B_pad+b),
    wih/whh: (L, H_pad, 4*H_pad), bias: (L, 1, 4*H_pad),
    fcw: (H_pad, O_pad), fcb: (1, O_pad) -> (T_pad*B_pad, O_pad) f32."""
    assert t_pad % chunk_t == 0
    num_chunks = t_pad // chunk_t
    rows_per_chunk = chunk_t * b_pad
    unroll = max(1, min(chunk_t, 8))
    kernel = functools.partial(
        _fused_lstm_fc_kernel, num_layers=num_layers, chunk_t=chunk_t,
        b_pad=b_pad, h_pad=h_pad, unroll=unroll, proj_dtype=wih.dtype)

    grid_spec = pltpu.PrefetchScalarGridSpec(
        num_scalar_prefetch=0,
        grid=(num_chunks,),
        in_specs=[
            pl.BlockSpec((b_pad, 1), lambda c: (0, 0)),                    # lengths
            pl.BlockSpec((rows_per_chunk, h_pad), lambda c: (c, 0)),       # x chunk
            pl.BlockSpec((num_layers, h_pad, 4 * h_pad),
                         lambda c: (0, 0, 0)),                             # W_ih
            pl.BlockSpec((num_layers, h_pad, 4 * h_pad),
                         lambda c: (0, 0, 0)),                             # W_hh
            pl.BlockSpec((num_layers, 1, 4 * h_pad), lambda c: (0, 0, 0)), # bias
            pl.BlockSpec((h_pad, o_pad), lambda c: (0, 0)),                # fc W
            pl.BlockSpec((1, o_pad), lambda c: (0, 0)),                    # fc b
        ],
        out_specs=pl.BlockSpec((rows_per_chunk, o_pad), lambda c: (c, 0)),
        scratch_shapes=[
            pltpu.VMEM((num_layers, b_pad, h_pad), jnp.float32),   # h carry
            pltpu.VMEM((num_layers, b_pad, h_pad), jnp.float32),   # c carry
            pltpu.VMEM((rows_per_chunk, h_pad), jnp.float32),      # chunk acts
            pltpu.VMEM((rows_per_chunk, 4 * h_pad), jnp.float32),  # hoisted gates
        ],
    )
    return pl.pallas_call(
        kernel,
        out_shape=jax.ShapeDtypeStruct((t_pad * b_pad, o_pad), jnp.float32),
        grid_spec=grid_spec,
        compiler_params=pltpu.CompilerParams(
            dimension_semantics=("arbitrary",),          # time carries state
            vmem_limit_bytes=32 * 1024 * 1024),
    )(len_col, x2d, wih, whh, bias, fcw, fcb)


# ----------------------------------------------------------------------------
# Parameter init (mirrors the module's init style) in the padded,
# gate-block-aligned layout the kernel expects.
# ----------------------------------------------------------------------------
def init_params(key, num_act, embedding_dim, hidden_dim, num_layers,
                attr_size, output_dim, *, b_pad, h_pad, o_pad):
    assert embedding_dim + attr_size <= h_pad and hidden_dim <= h_pad
    H = hidden_dim
    gate_pad = 4 * h_pad
    params = {"dims": dict(hidden_dim=hidden_dim, num_layers=num_layers,
                           output_dim=output_dim, b_pad=b_pad, h_pad=h_pad,
                           o_pad=o_pad)}

    key, k_emb = jax.random.split(key)
    # nn.init.uniform_(embedding.weight, -0.1, 0.1) (overrides padding row too)
    params["embedding"] = jax.random.uniform(
        k_emb, (num_act, embedding_dim), jnp.float32, -0.1, 0.1)

    wih = jnp.zeros((num_layers, h_pad, gate_pad), jnp.float32)
    whh = jnp.zeros((num_layers, h_pad, gate_pad), jnp.float32)
    bias = jnp.zeros((num_layers, 1, gate_pad), jnp.float32)
    for l in range(num_layers):
        in_dim = embedding_dim + attr_size if l == 0 else hidden_dim
        key, k1, k2, k3, k4 = jax.random.split(key, 5)
        # xavier_uniform for weight_ih / weight_hh
        bound_ih = float(np.sqrt(6.0 / (4 * H + in_dim)))
        bound_hh = float(np.sqrt(6.0 / (4 * H + H)))
        w_ih_t = jax.random.uniform(k1, (4 * H, in_dim), jnp.float32,
                                    -bound_ih, bound_ih).T          # (in, 4H)
        w_hh_t = jax.random.uniform(k2, (4 * H, H), jnp.float32,
                                    -bound_hh, bound_hh).T          # (H, 4H)
        # default LSTM bias init U(-1/sqrt(H), 1/sqrt(H)); combine b_ih + b_hh
        bb = 1.0 / float(np.sqrt(H))
        b_sum = (jax.random.uniform(k3, (4 * H,), jnp.float32, -bb, bb)
                 + jax.random.uniform(k4, (4 * H,), jnp.float32, -bb, bb))
        # Scatter each gate block into its padded 128-lane slot, re-ordered to
        # (i, f, o, g) so the in-kernel sigmoid covers one contiguous region.
        for g_blk, g_src in enumerate(_GATE_SRC):
            wih = wih.at[l, :in_dim, g_blk * h_pad:g_blk * h_pad + H].set(
                w_ih_t[:, g_src * H:(g_src + 1) * H])
            whh = whh.at[l, :H, g_blk * h_pad:g_blk * h_pad + H].set(
                w_hh_t[:, g_src * H:(g_src + 1) * H])
            bias = bias.at[l, 0, g_blk * h_pad:g_blk * h_pad + H].set(
                b_sum[g_src * H:(g_src + 1) * H])
    params["wih"], params["whh"], params["b"] = wih, whh, bias

    key, k_fw, k_fb = jax.random.split(key, 3)
    bf = 1.0 / float(np.sqrt(H))
    w_fc = jax.random.uniform(k_fw, (output_dim, hidden_dim), jnp.float32,
                              -bf, bf)
    b_fc = jax.random.uniform(k_fb, (output_dim,), jnp.float32, -bf, bf)
    params["fcw"] = jnp.zeros((h_pad, o_pad), jnp.float32).at[
        :H, :output_dim].set(w_fc.T)
    params["fcb"] = jnp.zeros((1, o_pad), jnp.float32).at[
        0, :output_dim].set(b_fc)

    if BF16_OFFPATH_MATMUL:
        # Pre-cast the off-serial-path projection weights once host-side
        # (halves their DMA bytes / VMEM); recurrent W_hh stays f32.
        params["wih"] = params["wih"].astype(jnp.bfloat16)
        params["fcw"] = params["fcw"].astype(jnp.bfloat16)
    return params


# ----------------------------------------------------------------------------
# Full forward pass (embedding gather + concat + padding are plain-JAX glue).
# ----------------------------------------------------------------------------
def model_forward(params, act, attr, lengths, *, time_chunk=32):
    d = params["dims"]
    b_pad, h_pad, o_pad = d["b_pad"], d["h_pad"], d["o_pad"]
    B, T = act.shape

    emb = jnp.take(params["embedding"], act, axis=0)               # (B, T, E)
    x = jnp.concatenate([emb, attr.astype(jnp.float32)], axis=-1)  # (B, T, D)
    D = x.shape[-1]

    # time-major; batch padded to a sublane multiple, features padded to 128,
    # time padded to a multiple of the chunk size (padded steps have length 0
    # semantics and are sliced off at the end).
    chunk_t = max(1, min(time_chunk, T))
    t_pad = _round_up(T, chunk_t)
    x_tm = jnp.transpose(x, (1, 0, 2)).astype(jnp.float32)         # (T, B, D)
    x_pad = jnp.zeros((t_pad, b_pad, h_pad), jnp.float32).at[
        :T, :B, :D].set(x_tm)
    x2d = x_pad.reshape(t_pad * b_pad, h_pad)

    len_col = jnp.zeros((b_pad, 1), jnp.int32).at[:B, 0].set(
        lengths.astype(jnp.int32))

    out2d = fused_lstm_fc(len_col, x2d, params["wih"], params["whh"],
                          params["b"], params["fcw"], params["fcb"],
                          num_layers=d["num_layers"], t_pad=t_pad,
                          chunk_t=chunk_t, b_pad=b_pad, h_pad=h_pad,
                          o_pad=o_pad)

    # Note: like PyTorch (fc applied to the zero-padded pad_packed output),
    # timesteps past a sequence's length contain the fc bias, not zeros.
    out = out2d.reshape(t_pad, b_pad, o_pad)[:T, :B, :d["output_dim"]]
    return jnp.transpose(out, (1, 0, 2))                           # (B, T, O)


if __name__ == "__main__":
    # Small, module-consistent shapes.
    num_act, embedding_dim, hidden_dim = 10, 16, 32
    num_layers, attr_size, output_dim = 2, 8, 5
    B, T = 2, 8

    b_pad = max(8, _round_up(B, 8))
    h_pad = _round_up(max(hidden_dim, embedding_dim + attr_size), 128)
    o_pad = _round_up(output_dim, 128)

    key = jax.random.PRNGKey(0)
    key, k_act, k_attr = jax.random.split(key, 3)
    params = init_params(key, num_act, embedding_dim, hidden_dim, num_layers,
                         attr_size, output_dim, b_pad=b_pad, h_pad=h_pad,
                         o_pad=o_pad)

    act = jax.random.randint(k_act, (B, T), 0, num_act, dtype=jnp.int32)
    attr = jax.random.normal(k_attr, (B, T, attr_size), dtype=jnp.float32)
    # enforce_sorted=True -> lengths sorted descending; max length == T so the
    # pad_packed_sequence output time dimension equals T.
    lengths = jnp.array([8, 6], dtype=jnp.int32)

    # time_chunk=4 -> two time chunks for T=8, exercising the chunked-grid
    # (h, c) carry path.
    out = model_forward(params, act, attr, lengths, time_chunk=4)
    out = jax.block_until_ready(out)
    assert out.shape == (B, T, output_dim)
    assert bool(jnp.all(jnp.isfinite(out)))
    print("KERNEL_OK")
</pallas_src>

<mosaic_0001>
module attributes {stable_mosaic.version = 11 : i64} {
  func.func @_fused_lstm_fc_kernel(%arg0: i32, %arg1: memref<8x1xi32, #tpu.memory_space<vmem>>, %arg2: memref<32x128xf32, #tpu.memory_space<vmem>>, %arg3: memref<2x128x512xf32, #tpu.memory_space<vmem>>, %arg4: memref<2x128x512xf32, #tpu.memory_space<vmem>>, %arg5: memref<2x1x512xf32, #tpu.memory_space<vmem>>, %arg6: memref<128x128xf32, #tpu.memory_space<vmem>>, %arg7: memref<1x128xf32, #tpu.memory_space<vmem>>, %arg8: memref<32x128xf32, #tpu.memory_space<vmem>>, %arg9: memref<2x8x128xf32, #tpu.memory_space<vmem>>, %arg10: memref<2x8x128xf32, #tpu.memory_space<vmem>>, %arg11: memref<32x128xf32, #tpu.memory_space<vmem>>, %arg12: memref<32x512xf32, #tpu.memory_space<vmem>>) attributes {dimension_semantics = [#tpu.dimension_semantics<arbitrary>], iteration_bounds = array<i64: 2>, scalar_prefetch = 0 : i64, scratch_operands = 4 : i64, tpu.core_type = #tpu.core_type<tc>, window_params = [{pipeline_mode = #tpu.pipeline_mode<synchronous>, transform_indices = @transform_0, window_bounds = array<i64: 8, 1>}, {transform_indices = @transform_1, window_bounds = array<i64: 32, 128>}, {pipeline_mode = #tpu.pipeline_mode<synchronous>, transform_indices = @transform_2, window_bounds = array<i64: 2, 128, 512>}, {pipeline_mode = #tpu.pipeline_mode<synchronous>, transform_indices = @transform_3, window_bounds = array<i64: 2, 128, 512>}, {pipeline_mode = #tpu.pipeline_mode<synchronous>, transform_indices = @transform_4, window_bounds = array<i64: 2, 1, 512>}, {pipeline_mode = #tpu.pipeline_mode<synchronous>, transform_indices = @transform_5, window_bounds = array<i64: 128, 128>}, {pipeline_mode = #tpu.pipeline_mode<synchronous>, transform_indices = @transform_6, window_bounds = array<i64: 1, 128>}, {transform_indices = @transform_7, window_bounds = array<i64: 32, 128>}]} {
    %c0_i32 = arith.constant 0 : i32
    %0 = arith.cmpi eq, %arg0, %c0_i32 : i32
    %1 = arith.extui %0 : i1 to i32
    %c0_i32_0 = arith.constant 0 : i32
    %2 = arith.cmpi ne, %1, %c0_i32_0 : i32
    scf.if %2 {
      %cst_115 = arith.constant 0.000000e+00 : f32
      %304 = vector.broadcast %cst_115 : f32 to vector<2x8x128xf32>
      %c0_116 = arith.constant 0 : index
      %c0_117 = arith.constant 0 : index
      %c0_118 = arith.constant 0 : index
      %305 = vector.load %arg9[%c0_116, %c0_117, %c0_118] : memref<2x8x128xf32, #tpu.memory_space<vmem>>, vector<2x8x128xf32>
      tpu.vector_store %arg9[%c0_116, %c0_117, %c0_118], %304 {strides = array<i32>} : memref<2x8x128xf32, #tpu.memory_space<vmem>>, vector<2x8x128xf32>,
      %cst_119 = arith.constant 0.000000e+00 : f32
      %306 = vector.broadcast %cst_119 : f32 to vector<2x8x128xf32>
      %c0_120 = arith.constant 0 : index
      %c0_121 = arith.constant 0 : index
      %c0_122 = arith.constant 0 : index
      %307 = vector.load %arg10[%c0_120, %c0_121, %c0_122] : memref<2x8x128xf32, #tpu.memory_space<vmem>>, vector<2x8x128xf32>
      tpu.vector_store %arg10[%c0_120, %c0_121, %c0_122], %306 {strides = array<i32>} : memref<2x8x128xf32, #tpu.memory_space<vmem>>, vector<2x8x128xf32>,
    } else {
    }
    %c0 = arith.constant 0 : index
    %c0_1 = arith.constant 0 : index
    %3 = vector.load %arg1[%c0, %c0_1] : memref<8x1xi32, #tpu.memory_space<vmem>>, vector<8x1xi32>
    %4 = vector.shape_cast %3 : vector<8x1xi32> to vector<8x1xi32>
    %5 = vector.broadcast %4 : vector<8x1xi32> to vector<8x128xi32>
    %c4_i32 = arith.constant 4 : i32
    %6 = arith.muli %arg0, %c4_i32 : i32
    %c0_2 = arith.constant 0 : index
    %c0_3 = arith.constant 0 : index
    %7 = vector.load %arg2[%c0_2, %c0_3] : memref<32x128xf32, #tpu.memory_space<vmem>>, vector<32x128xf32>
    %c0_4 = arith.constant 0 : index
    %c0_5 = arith.constant 0 : index
    %c0_6 = arith.constant 0 : index
    %8 = vector.load %arg3[%c0_4, %c0_5, %c0_6] : memref<2x128x512xf32, #tpu.memory_space<vmem>>, vector<1x128x512xf32>
    %9 = vector.shape_cast %8 : vector<1x128x512xf32> to vector<128x512xf32>
    %cst = arith.constant dense<0.000000e+00> : vector<32x512xf32>
    %10 = tpu.matmul %7, %9, %cst {dimension_numbers = #tpu.dot_dimension_numbers<[1], [0], [0], [1], [0, 0, 1, 1], [], []>} : vector<32x128xf32>, vector<128x512xf32>, vector<32x512xf32> -> vector<32x512xf32>
    %c0_7 = arith.constant 0 : index
    %c0_8 = arith.constant 0 : index
    %c0_9 = arith.constant 0 : index
    %11 = vector.load %arg5[%c0_7, %c0_8, %c0_9] : memref<2x1x512xf32, #tpu.memory_space<vmem>>, vector<1x1x512xf32>
    %12 = vector.shape_cast %11 : vector<1x1x512xf32> to vector<1x512xf32>
    %13 = vector.broadcast %12 : vector<1x512xf32> to vector<32x512xf32>
    %14 = arith.addf %10, %13 : vector<32x512xf32>
    %c0_10 = arith.constant 0 : index
    %c0_11 = arith.constant 0 : index
    %15 = vector.load %arg12[%c0_10, %c0_11] : memref<32x512xf32, #tpu.memory_space<vmem>>, vector<32x512xf32>
    tpu.vector_store %arg12[%c0_10, %c0_11], %14 {strides = array<i32>} : memref<32x512xf32, #tpu.memory_space<vmem>>, vector<32x512xf32>,
    %c0_12 = arith.constant 0 : index
    %c0_13 = arith.constant 0 : index
    %c0_14 = arith.constant 0 : index
    %16 = vector.load %arg4[%c0_12, %c0_13, %c0_14] : memref<2x128x512xf32, #tpu.memory_space<vmem>>, vector<1x128x512xf32>
    %17 = vector.shape_cast %16 : vector<1x128x512xf32> to vector<128x512xf32>
    %c0_15 = arith.constant 0 : index
    %c0_16 = arith.constant 0 : index
    %c0_17 = arith.constant 0 : index
    %18 = vector.load %arg9[%c0_15, %c0_16, %c0_17] : memref<2x8x128xf32, #tpu.memory_space<vmem>>, vector<1x8x128xf32>
    %19 = vector.shape_cast %18 : vector<1x8x128xf32> to vector<8x128xf32>
    %c0_18 = arith.constant 0 : index
    %c0_19 = arith.constant 0 : index
    %c0_20 = arith.constant 0 : index
    %20 = vector.load %arg10[%c0_18, %c0_19, %c0_20] : memref<2x8x128xf32, #tpu.memory_space<vmem>>, vector<1x8x128xf32>
    %21 = vector.shape_cast %20 : vector<1x8x128xf32> to vector<8x128xf32>
    %c0_i32_21 = arith.constant 0 : i32
    %c8_i32 = arith.constant 8 : i32
    %22 = arith.muli %c0_i32_21, %c8_i32 : i32
    %23 = tpu.assume_multiple %22, 8 : i32
    %24 = arith.index_cast %23 : i32 to index
    %c0_22 = arith.constant 0 : index
    %25 = vector.load %arg12[%24, %c0_22] : memref<32x512xf32, #tpu.memory_space<vmem>>, vector<8x512xf32>
    %cst_23 = arith.constant dense<0.000000e+00> : vector<8x512xf32>
    %26 = tpu.matmul %19, %17, %cst_23 {dimension_numbers = #tpu.dot_dimension_numbers<[1], [0], [0], [1], [0, 0, 1, 1], [], []>} : vector<8x128xf32>, vector<128x512xf32>, vector<8x512xf32> -> vector<8x512xf32>
    %27 = arith.addf %25, %26 : vector<8x512xf32>
    %28 = vector.extract_strided_slice %27 {offsets = [0, 0], sizes = [8, 384], strides = [1, 1]} : vector<8x512xf32> to vector<8x384xf32>
    %29 = arith.negf %28 : vector<8x384xf32>
    %30 = math.exp %29 : vector<8x384xf32>
    %cst_24 = arith.constant 1.000000e+00 : f32
    %31 = vector.broadcast %cst_24 : f32 to vector<8x384xf32>
    %32 = arith.addf %31, %30 : vector<8x384xf32>
    %33 = arith.divf %31, %32 : vector<8x384xf32>
    %34 = vector.extract_strided_slice %33 {offsets = [0, 0], sizes = [8, 128], strides = [1, 1]} : vector<8x384xf32> to vector<8x128xf32>
    %35 = vector.extract_strided_slice %33 {offsets = [0, 128], sizes = [8, 128], strides = [1, 1]} : vector<8x384xf32> to vector<8x128xf32>
    %36 = vector.extract_strided_slice %33 {offsets = [0, 256], sizes = [8, 128], strides = [1, 1]} : vector<8x384xf32> to vector<8x128xf32>
    %37 = vector.extract_strided_slice %27 {offsets = [0, 384], sizes = [8, 128], strides = [1, 1]} : vector<8x512xf32> to vector<8x128xf32>
    %38 = math.tanh %37 : vector<8x128xf32>
    %39 = arith.mulf %35, %21 : vector<8x128xf32>
    %40 = arith.mulf %34, %38 : vector<8x128xf32>
    %41 = arith.addf %39, %40 : vector<8x128xf32>
    %42 = math.tanh %41 : vector<8x128xf32>
    %43 = arith.mulf %36, %42 : vector<8x128xf32>
    %44 = arith.addi %6, %c0_i32_21 : i32
    %45 = vector.broadcast %44 : i32 to vector<8x128xi32>
    %46 = arith.cmpi sgt, %5, %45 : vector<8x128xi32>
    %47 = arith.select %46, %43, %19 : vector<8x128xi1>, vector<8x128xf32>
    %48 = arith.select %46, %41, %21 : vector<8x128xi1>, vector<8x128xf32>
    %cst_25 = arith.constant 0.000000e+00 : f32
    %49 = vector.broadcast %cst_25 : f32 to vector<8x128xf32>
    %50 = arith.select %46, %43, %49 : vector<8x128xi1>, vector<8x128xf32>
    %51 = arith.index_cast %23 : i32 to index
    %c0_26 = arith.constant 0 : index
    %52 = vector.load %arg11[%51, %c0_26] : memref<32x128xf32, #tpu.memory_space<vmem>>, vector<8x128xf32>
    tpu.vector_store %arg11[%51, %c0_26], %50 {strides = array<i32>} : memref<32x128xf32, #tpu.memory_space<vmem>>, vector<8x128xf32>,
    %c1_i32 = arith.constant 1 : i32
    %c8_i32_27 = arith.constant 8 : i32
    %53 = arith.muli %c1_i32, %c8_i32_27 : i32
    %54 = tpu.assume_multiple %53, 8 : i32
    %55 = arith.index_cast %54 : i32 to index
    %c0_28 = arith.constant 0 : index
    %56 = vector.load %arg12[%55, %c0_28] : memref<32x512xf32, #tpu.memory_space<vmem>>, vector<8x512xf32>
    %cst_29 = arith.constant dense<0.000000e+00> : vector<8x512xf32>
    %57 = tpu.matmul %47, %17, %cst_29 {dimension_numbers = #tpu.dot_dimension_numbers<[1], [0], [0], [1], [0, 0, 1, 1], [], []>} : vector<8x128xf32>, vector<128x512xf32>, vector<8x512xf32> -> vector<8x512xf32>
    %58 = arith.addf %56, %57 : vector<8x512xf32>
    %59 = vector.extract_strided_slice %58 {offsets = [0, 0], sizes = [8, 384], strides = [1, 1]} : vector<8x512xf32> to vector<8x384xf32>
    %60 = arith.negf %59 : vector<8x384xf32>
    %61 = math.exp %60 : vector<8x384xf32>
    %cst_30 = arith.constant 1.000000e+00 : f32
    %62 = vector.broadcast %cst_30 : f32 to vector<8x384xf32>
    %63 = arith.addf %62, %61 : vector<8x384xf32>
    %64 = arith.divf %62, %63 : vector<8x384xf32>
    %65 = vector.extract_strided_slice %64 {offsets = [0, 0], sizes = [8, 128], strides = [1, 1]} : vector<8x384xf32> to vector<8x128xf32>
    %66 = vector.extract_strided_slice %64 {offsets = [0, 128], sizes = [8, 128], strides = [1, 1]} : vector<8x384xf32> to vector<8x128xf32>
    %67 = vector.extract_strided_slice %64 {offsets = [0, 256], sizes = [8, 128], strides = [1, 1]} : vector<8x384xf32> to vector<8x128xf32>
    %68 = vector.extract_strided_slice %58 {offsets = [0, 384], sizes = [8, 128], strides = [1, 1]} : vector<8x512xf32> to vector<8x128xf32>
    %69 = math.tanh %68 : vector<8x128xf32>
    %70 = arith.mulf %66, %48 : vector<8x128xf32>
    %71 = arith.mulf %65, %69 : vector<8x128xf32>
    %72 = arith.addf %70, %71 : vector<8x128xf32>
    %73 = math.tanh %72 : vector<8x128xf32>
    %74 = arith.mulf %67, %73 : vector<8x128xf32>
    %75 = arith.addi %6, %c1_i32 : i32
    %76 = vector.broadcast %75 : i32 to vector<8x128xi32>
    %77 = arith.cmpi sgt, %5, %76 : vector<8x128xi32>
    %78 = arith.select %77, %74, %47 : vector<8x128xi1>, vector<8x128xf32>
    %79 = arith.select %77, %72, %48 : vector<8x128xi1>, vector<8x128xf32>
    %cst_31 = arith.constant 0.000000e+00 : f32
    %80 = vector.broadcast %cst_31 : f32 to vector<8x128xf32>
    %81 = arith.select %77, %74, %80 : vector<8x128xi1>, vector<8x128xf32>
    %82 = arith.index_cast %54 : i32 to index
    %c0_32 = arith.constant 0 : index
    %83 = vector.load %arg11[%82, %c0_32] : memref<32x128xf32, #tpu.memory_space<vmem>>, vector<8x128xf32>
    tpu.vector_store %arg11[%82, %c0_32], %81 {strides = array<i32>} : memref<32x128xf32, #tpu.memory_space<vmem>>, vector<8x128xf32>,
    %c2_i32 = arith.constant 2 : i32
    %c8_i32_33 = arith.constant 8 : i32
    %84 = arith.muli %c2_i32, %c8_i32_33 : i32
    %85 = tpu.assume_multiple %84, 8 : i32
    %86 = arith.index_cast %85 : i32 to index
    %c0_34 = arith.constant 0 : index
    %87 = vector.load %arg12[%86, %c0_34] : memref<32x512xf32, #tpu.memory_space<vmem>>, vector<8x512xf32>
    %cst_35 = arith.constant dense<0.000000e+00> : vector<8x512xf32>
    %88 = tpu.matmul %78, %17, %cst_35 {dimension_numbers = #tpu.dot_dimension_numbers<[1], [0], [0], [1], [0, 0, 1, 1], [], []>} : vector<8x128xf32>, vector<128x512xf32>, vector<8x512xf32> -> vector<8x512xf32>
    %89 = arith.addf %87, %88 : vector<8x512xf32>
    %90 = vector.extract_strided_slice %89 {offsets = [0, 0], sizes = [8, 384], strides = [1, 1]} : vector<8x512xf32> to vector<8x384xf32>
    %91 = arith.negf %90 : vector<8x384xf32>
    %92 = math.exp %91 : vector<8x384xf32>
    %cst_36 = arith.constant 1.000000e+00 : f32
    %93 = vector.broadcast %cst_36 : f32 to vector<8x384xf32>
    %94 = arith.addf %93, %92 : vector<8x384xf32>
    %95 = arith.divf %93, %94 : vector<8x384xf32>
    %96 = vector.extract_strided_slice %95 {offsets = [0, 0], sizes = [8, 128], strides = [1, 1]} : vector<8x384xf32> to vector<8x128xf32>
    %97 = vector.extract_strided_slice %95 {offsets = [0, 128], sizes = [8, 128], strides = [1, 1]} : vector<8x384xf32> to vector<8x128xf32>
    %98 = vector.extract_strided_slice %95 {offsets = [0, 256], sizes = [8, 128], strides = [1, 1]} : vector<8x384xf32> to vector<8x128xf32>
    %99 = vector.extract_strided_slice %89 {offsets = [0, 384], sizes = [8, 128], strides = [1, 1]} : vector<8x512xf32> to vector<8x128xf32>
    %100 = math.tanh %99 : vector<8x128xf32>
    %101 = arith.mulf %97, %79 : vector<8x128xf32>
    %102 = arith.mulf %96, %100 : vector<8x128xf32>
    %103 = arith.addf %101, %102 : vector<8x128xf32>
    %104 = math.tanh %103 : vector<8x128xf32>
    %105 = arith.mulf %98, %104 : vector<8x128xf32>
    %106 = arith.addi %6, %c2_i32 : i32
    %107 = vector.broadcast %106 : i32 to vector<8x128xi32>
    %108 = arith.cmpi sgt, %5, %107 : vector<8x128xi32>
    %109 = arith.select %108, %105, %78 : vector<8x128xi1>, vector<8x128xf32>
    %110 = arith.select %108, %103, %79 : vector<8x128xi1>, vector<8x128xf32>
    %cst_37 = arith.constant 0.000000e+00 : f32
    %111 = vector.broadcast %cst_37 : f32 to vector<8x128xf32>
    %112 = arith.select %108, %105, %111 : vector<8x128xi1>, vector<8x128xf32>
    %113 = arith.index_cast %85 : i32 to index
    %c0_38 = arith.constant 0 : index
    %114 = vector.load %arg11[%113, %c0_38] : memref<32x128xf32, #tpu.memory_space<vmem>>, vector<8x128xf32>
    tpu.vector_store %arg11[%113, %c0_38], %112 {strides = array<i32>} : memref<32x128xf32, #tpu.memory_space<vmem>>, vector<8x128xf32>,
    %c3_i32 = arith.constant 3 : i32
    %c8_i32_39 = arith.constant 8 : i32
    %115 = arith.muli %c3_i32, %c8_i32_39 : i32
    %116 = tpu.assume_multiple %115, 8 : i32
    %117 = arith.index_cast %116 : i32 to index
    %c0_40 = arith.constant 0 : index
    %118 = vector.load %arg12[%117, %c0_40] : memref<32x512xf32, #tpu.memory_space<vmem>>, vector<8x512xf32>
    %cst_41 = arith.constant dense<0.000000e+00> : vector<8x512xf32>
    %119 = tpu.matmul %109, %17, %cst_41 {dimension_numbers = #tpu.dot_dimension_numbers<[1], [0], [0], [1], [0, 0, 1, 1], [], []>} : vector<8x128xf32>, vector<128x512xf32>, vector<8x512xf32> -> vector<8x512xf32>
    %120 = arith.addf %118, %119 : vector<8x512xf32>
    %121 = vector.extract_strided_slice %120 {offsets = [0, 0], sizes = [8, 384], strides = [1, 1]} : vector<8x512xf32> to vector<8x384xf32>
    %122 = arith.negf %121 : vector<8x384xf32>
    %123 = math.exp %122 : vector<8x384xf32>
    %cst_42 = arith.constant 1.000000e+00 : f32
    %124 = vector.broadcast %cst_42 : f32 to vector<8x384xf32>
    %125 = arith.addf %124, %123 : vector<8x384xf32>
    %126 = arith.divf %124, %125 : vector<8x384xf32>
    %127 = vector.extract_strided_slice %126 {offsets = [0, 0], sizes = [8, 128], strides = [1, 1]} : vector<8x384xf32> to vector<8x128xf32>
    %128 = vector.extract_strided_slice %126 {offsets = [0, 128], sizes = [8, 128], strides = [1, 1]} : vector<8x384xf32> to vector<8x128xf32>
    %129 = vector.extract_strided_slice %126 {offsets = [0, 256], sizes = [8, 128], strides = [1, 1]} : vector<8x384xf32> to vector<8x128xf32>
    %130 = vector.extract_strided_slice %120 {offsets = [0, 384], sizes = [8, 128], strides = [1, 1]} : vector<8x512xf32> to vector<8x128xf32>
    %131 = math.tanh %130 : vector<8x128xf32>
    %132 = arith.mulf %128, %110 : vector<8x128xf32>
    %133 = arith.mulf %127, %131 : vector<8x128xf32>
    %134 = arith.addf %132, %133 : vector<8x128xf32>
    %135 = math.tanh %134 : vector<8x128xf32>
    %136 = arith.mulf %129, %135 : vector<8x128xf32>
    %137 = arith.addi %6, %c3_i32 : i32
    %138 = vector.broadcast %137 : i32 to vector<8x128xi32>
    %139 = arith.cmpi sgt, %5, %138 : vector<8x128xi32>
    %140 = arith.select %139, %136, %109 : vector<8x128xi1>, vector<8x128xf32>
    %141 = arith.select %139, %134, %110 : vector<8x128xi1>, vector<8x128xf32>
    %cst_43 = arith.constant 0.000000e+00 : f32
    %142 = vector.broadcast %cst_43 : f32 to vector<8x128xf32>
    %143 = arith.select %139, %136, %142 : vector<8x128xi1>, vector<8x128xf32>
    %144 = arith.index_cast %116 : i32 to index
    %c0_44 = arith.constant 0 : index
    %145 = vector.load %arg11[%144, %c0_44] : memref<32x128xf32, #tpu.memory_space<vmem>>, vector<8x128xf32>
    tpu.vector_store %arg11[%144, %c0_44], %143 {strides = array<i32>} : memref<32x128xf32, #tpu.memory_space<vmem>>, vector<8x128xf32>,
    %c4_i32_45 = arith.constant 4 : i32
    %c0_46 = arith.constant 0 : index
    %c0_47 = arith.constant 0 : index
    %c0_48 = arith.constant 0 : index
    %146 = vector.load %arg9[%c0_46, %c0_47, %c0_48] : memref<2x8x128xf32, #tpu.memory_space<vmem>>, vector<1x8x128xf32>
    %147 = vector.shape_cast %146 : vector<1x8x128xf32> to vector<8x128xf32>
    %148 = vector.shape_cast %140 : vector<8x128xf32> to vector<1x8x128xf32>
    tpu.vector_store %arg9[%c0_46, %c0_47, %c0_48], %148 {strides = array<i32>} : memref<2x8x128xf32, #tpu.memory_space<vmem>>, vector<1x8x128xf32>,
    %c0_49 = arith.constant 0 : index
    %c0_50 = arith.constant 0 : index
    %c0_51 = arith.constant 0 : index
    %149 = vector.load %arg10[%c0_49, %c0_50, %c0_51] : memref<2x8x128xf32, #tpu.memory_space<vmem>>, vector<1x8x128xf32>
    %150 = vector.shape_cast %149 : vector<1x8x128xf32> to vector<8x128xf32>
    %151 = vector.shape_cast %141 : vector<8x128xf32> to vector<1x8x128xf32>
    tpu.vector_store %arg10[%c0_49, %c0_50, %c0_51], %151 {strides = array<i32>} : memref<2x8x128xf32, #tpu.memory_space<vmem>>, vector<1x8x128xf32>,
    %c0_52 = arith.constant 0 : index
    %c0_53 = arith.constant 0 : index
    %152 = vector.load %arg11[%c0_52, %c0_53] : memref<32x128xf32, #tpu.memory_space<vmem>>, vector<32x128xf32>
    %c1 = arith.constant 1 : index
    %c0_54 = arith.constant 0 : index
    %c0_55 = arith.constant 0 : index
    %153 = vector.load %arg3[%c1, %c0_54, %c0_55] : memref<2x128x512xf32, #tpu.memory_space<vmem>>, vector<1x128x512xf32>
    %154 = vector.shape_cast %153 : vector<1x128x512xf32> to vector<128x512xf32>
    %cst_56 = arith.constant dense<0.000000e+00> : vector<32x512xf32>
    %155 = tpu.matmul %152, %154, %cst_56 {dimension_numbers = #tpu.dot_dimension_numbers<[1], [0], [0], [1], [0, 0, 1, 1], [], []>} : vector<32x128xf32>, vector<128x512xf32>, vector<32x512xf32> -> vector<32x512xf32>
    %c1_57 = arith.constant 1 : index
    %c0_58 = arith.constant 0 : index
    %c0_59 = arith.constant 0 : index
    %156 = vector.load %arg5[%c1_57, %c0_58, %c0_59] : memref<2x1x512xf32, #tpu.memory_space<vmem>>, vector<1x1x512xf32>
    %157 = vector.shape_cast %156 : vector<1x1x512xf32> to vector<1x512xf32>
    %158 = vector.broadcast %157 : vector<1x512xf32> to vector<32x512xf32>
    %159 = arith.addf %155, %158 : vector<32x512xf32>
    %c0_60 = arith.constant 0 : index
    %c0_61 = arith.constant 0 : index
    %160 = vector.load %arg12[%c0_60, %c0_61] : memref<32x512xf32, #tpu.memory_space<vmem>>, vector<32x512xf32>
    tpu.vector_store %arg12[%c0_60, %c0_61], %159 {strides = array<i32>} : memref<32x512xf32, #tpu.memory_space<vmem>>, vector<32x512xf32>,
    %c1_62 = arith.constant 1 : index
    %c0_63 = arith.constant 0 : index
    %c0_64 = arith.constant 0 : index
    %161 = vector.load %arg4[%c1_62, %c0_63, %c0_64] : memref<2x128x512xf32, #tpu.memory_space<vmem>>, vector<1x128x512xf32>
    %162 = vector.shape_cast %161 : vector<1x128x512xf32> to vector<128x512xf32>
    %c1_65 = arith.constant 1 : index
    %c0_66 = arith.constant 0 : index
    %c0_67 = arith.constant 0 : index
    %163 = vector.load %arg9[%c1_65, %c0_66, %c0_67] : memref<2x8x128xf32, #tpu.memory_space<vmem>>, vector<1x8x128xf32>
    %164 = vector.shape_cast %163 : vector<1x8x128xf32> to vector<8x128xf32>
    %c1_68 = arith.constant 1 : index
    %c0_69 = arith.constant 0 : index
    %c0_70 = arith.constant 0 : index
    %165 = vector.load %arg10[%c1_68, %c0_69, %c0_70] : memref<2x8x128xf32, #tpu.memory_space<vmem>>, vector<1x8x128xf32>
    %166 = vector.shape_cast %165 : vector<1x8x128xf32> to vector<8x128xf32>
    %c0_i32_71 = arith.constant 0 : i32
    %c8_i32_72 = arith.constant 8 : i32
    %167 = arith.muli %c0_i32_71, %c8_i32_72 : i32
    %168 = tpu.assume_multiple %167, 8 : i32
    %169 = arith.index_cast %168 : i32 to index
    %c0_73 = arith.constant 0 : index
    %170 = vector.load %arg12[%169, %c0_73] : memref<32x512xf32, #tpu.memory_space<vmem>>, vector<8x512xf32>
    %cst_74 = arith.constant dense<0.000000e+00> : vector<8x512xf32>
    %171 = tpu.matmul %164, %162, %cst_74 {dimension_numbers = #tpu.dot_dimension_numbers<[1], [0], [0], [1], [0, 0, 1, 1], [], []>} : vector<8x128xf32>, vector<128x512xf32>, vector<8x512xf32> -> vector<8x512xf32>
    %172 = arith.addf %170, %171 : vector<8x512xf32>
    %173 = vector.extract_strided_slice %172 {offsets = [0, 0], sizes = [8, 384], strides = [1, 1]} : vector<8x512xf32> to vector<8x384xf32>
    %174 = arith.negf %173 : vector<8x384xf32>
    %175 = math.exp %174 : vector<8x384xf32>
    %cst_75 = arith.constant 1.000000e+00 : f32
    %176 = vector.broadcast %cst_75 : f32 to vector<8x384xf32>
    %177 = arith.addf %176, %175 : vector<8x384xf32>
    %178 = arith.divf %176, %177 : vector<8x384xf32>
    %179 = vector.extract_strided_slice %178 {offsets = [0, 0], sizes = [8, 128], strides = [1, 1]} : vector<8x384xf32> to vector<8x128xf32>
    %180 = vector.extract_strided_slice %178 {offsets = [0, 128], sizes = [8, 128], strides = [1, 1]} : vector<8x384xf32> to vector<8x128xf32>
    %181 = vector.extract_strided_slice %178 {offsets = [0, 256], sizes = [8, 128], strides = [1, 1]} : vector<8x384xf32> to vector<8x128xf32>
    %182 = vector.extract_strided_slice %172 {offsets = [0, 384], sizes = [8, 128], strides = [1, 1]} : vector<8x512xf32> to vector<8x128xf32>
    %183 = math.tanh %182 : vector<8x128xf32>
    %184 = arith.mulf %180, %166 : vector<8x128xf32>
    %185 = arith.mulf %179, %183 : vector<8x128xf32>
    %186 = arith.addf %184, %185 : vector<8x128xf32>
    %187 = math.tanh %186 : vector<8x128xf32>
    %188 = arith.mulf %181, %187 : vector<8x128xf32>
    %189 = arith.addi %6, %c0_i32_71 : i32
    %190 = vector.broadcast %189 : i32 to vector<8x128xi32>
    %191 = arith.cmpi sgt, %5, %190 : vector<8x128xi32>
    %192 = arith.select %191, %188, %164 : vector<8x128xi1>, vector<8x128xf32>
    %193 = arith.select %191, %186, %166 : vector<8x128xi1>, vector<8x128xf32>
    %cst_76 = arith.constant 0.000000e+00 : f32
    %194 = vector.broadcast %cst_76 : f32 to vector<8x128xf32>
    %195 = arith.select %191, %188, %194 : vector<8x128xi1>, vector<8x128xf32>
    %196 = arith.index_cast %168 : i32 to index
    %c0_77 = arith.constant 0 : index
    %197 = vector.load %arg11[%196, %c0_77] : memref<32x128xf32, #tpu.memory_space<vmem>>, vector<8x128xf32>
    tpu.vector_store %arg11[%196, %c0_77], %195 {strides = array<i32>} : memref<32x128xf32, #tpu.memory_space<vmem>>, vector<8x128xf32>,
    %c1_i32_78 = arith.constant 1 : i32
    %c8_i32_79 = arith.constant 8 : i32
    %198 = arith.muli %c1_i32_78, %c8_i32_79 : i32
    %199 = tpu.assume_multiple %198, 8 : i32
    %200 = arith.index_cast %199 : i32 to index
    %c0_80 = arith.constant 0 : index
    %201 = vector.load %arg12[%200, %c0_80] : memref<32x512xf32, #tpu.memory_space<vmem>>, vector<8x512xf32>
    %cst_81 = arith.constant dense<0.000000e+00> : vector<8x512xf32>
    %202 = tpu.matmul %192, %162, %cst_81 {dimension_numbers = #tpu.dot_dimension_numbers<[1], [0], [0], [1], [0, 0, 1, 1], [], []>} : vector<8x128xf32>, vector<128x512xf32>, vector<8x512xf32> -> vector<8x512xf32>
    %203 = arith.addf %201, %202 : vector<8x512xf32>
    %204 = vector.extract_strided_slice %203 {offsets = [0, 0], sizes = [8, 384], strides = [1, 1]} : vector<8x512xf32> to vector<8x384xf32>
    %205 = arith.negf %204 : vector<8x384xf32>
    %206 = math.exp %205 : vector<8x384xf32>
    %cst_82 = arith.constant 1.000000e+00 : f32
    %207 = vector.broadcast %cst_82 : f32 to vector<8x384xf32>
    %208 = arith.addf %207, %206 : vector<8x384xf32>
    %209 = arith.divf %207, %208 : vector<8x384xf32>
    %210 = vector.extract_strided_slice %209 {offsets = [0, 0], sizes = [8, 128], strides = [1, 1]} : vector<8x384xf32> to vector<8x128xf32>
    %211 = vector.extract_strided_slice %209 {offsets = [0, 128], sizes = [8, 128], strides = [1, 1]} : vector<8x384xf32> to vector<8x128xf32>
    %212 = vector.extract_strided_slice %209 {offsets = [0, 256], sizes = [8, 128], strides = [1, 1]} : vector<8x384xf32> to vector<8x128xf32>
    %213 = vector.extract_strided_slice %203 {offsets = [0, 384], sizes = [8, 128], strides = [1, 1]} : vector<8x512xf32> to vector<8x128xf32>
    %214 = math.tanh %213 : vector<8x128xf32>
    %215 = arith.mulf %211, %193 : vector<8x128xf32>
    %216 = arith.mulf %210, %214 : vector<8x128xf32>
    %217 = arith.addf %215, %216 : vector<8x128xf32>
    %218 = math.tanh %217 : vector<8x128xf32>
    %219 = arith.mulf %212, %218 : vector<8x128xf32>
    %220 = arith.addi %6, %c1_i32_78 : i32
    %221 = vector.broadcast %220 : i32 to vector<8x128xi32>
    %222 = arith.cmpi sgt, %5, %221 : vector<8x128xi32>
    %223 = arith.select %222, %219, %192 : vector<8x128xi1>, vector<8x128xf32>
    %224 = arith.select %222, %217, %193 : vector<8x128xi1>, vector<8x128xf32>
    %cst_83 = arith.constant 0.000000e+00 : f32
    %225 = vector.broadcast %cst_83 : f32 to vector<8x128xf32>
    %226 = arith.select %222, %219, %225 : vector<8x128xi1>, vector<8x128xf32>
    %227 = arith.index_cast %199 : i32 to index
    %c0_84 = arith.constant 0 : index
    %228 = vector.load %arg11[%227, %c0_84] : memref<32x128xf32, #tpu.memory_space<vmem>>, vector<8x128xf32>
    tpu.vector_store %arg11[%227, %c0_84], %226 {strides = array<i32>} : memref<32x128xf32, #tpu.memory_space<vmem>>, vector<8x128xf32>,
    %c2_i32_85 = arith.constant 2 : i32
    %c8_i32_86 = arith.constant 8 : i32
    %229 = arith.muli %c2_i32_85, %c8_i32_86 : i32
    %230 = tpu.assume_multiple %229, 8 : i32
    %231 = arith.index_cast %230 : i32 to index
    %c0_87 = arith.constant 0 : index
    %232 = vector.load %arg12[%231, %c0_87] : memref<32x512xf32, #tpu.memory_space<vmem>>, vector<8x512xf32>
    %cst_88 = arith.constant dense<0.000000e+00> : vector<8x512xf32>
    %233 = tpu.matmul %223, %162, %cst_88 {dimension_numbers = #tpu.dot_dimension_numbers<[1], [0], [0], [1], [0, 0, 1, 1], [], []>} : vector<8x128xf32>, vector<128x512xf32>, vector<8x512xf32> -> vector<8x512xf32>
    %234 = arith.addf %232, %233 : vector<8x512xf32>
    %235 = vector.extract_strided_slice %234 {offsets = [0, 0], sizes = [8, 384], strides = [1, 1]} : vector<8x512xf32> to vector<8x384xf32>
    %236 = arith.negf %235 : vector<8x384xf32>
    %237 = math.exp %236 : vector<8x384xf32>
    %cst_89 = arith.constant 1.000000e+00 : f32
    %238 = vector.broadcast %cst_89 : f32 to vector<8x384xf32>
    %239 = arith.addf %238, %237 : vector<8x384xf32>
    %240 = arith.divf %238, %239 : vector<8x384xf32>
    %241 = vector.extract_strided_slice %240 {offsets = [0, 0], sizes = [8, 128], strides = [1, 1]} : vector<8x384xf32> to vector<8x128xf32>
    %242 = vector.extract_strided_slice %240 {offsets = [0, 128], sizes = [8, 128], strides = [1, 1]} : vector<8x384xf32> to vector<8x128xf32>
    %243 = vector.extract_strided_slice %240 {offsets = [0, 256], sizes = [8, 128], strides = [1, 1]} : vector<8x384xf32> to vector<8x128xf32>
    %244 = vector.extract_strided_slice %234 {offsets = [0, 384], sizes = [8, 128], strides = [1, 1]} : vector<8x512xf32> to vector<8x128xf32>
    %245 = math.tanh %244 : vector<8x128xf32>
    %246 = arith.mulf %242, %224 : vector<8x128xf32>
    %247 = arith.mulf %241, %245 : vector<8x128xf32>
    %248 = arith.addf %246, %247 : vector<8x128xf32>
    %249 = math.tanh %248 : vector<8x128xf32>
    %250 = arith.mulf %243, %249 : vector<8x128xf32>
    %251 = arith.addi %6, %c2_i32_85 : i32
    %252 = vector.broadcast %251 : i32 to vector<8x128xi32>
    %253 = arith.cmpi sgt, %5, %252 : vector<8x128xi32>
    %254 = arith.select %253, %250, %223 : vector<8x128xi1>, vector<8x128xf32>
    %255 = arith.select %253, %248, %224 : vector<8x128xi1>, vector<8x128xf32>
    %cst_90 = arith.constant 0.000000e+00 : f32
    %256 = vector.broadcast %cst_90 : f32 to vector<8x128xf32>
    %257 = arith.select %253, %250, %256 : vector<8x128xi1>, vector<8x128xf32>
    %258 = arith.index_cast %230 : i32 to index
    %c0_91 = arith.constant 0 : index
    %259 = vector.load %arg11[%258, %c0_91] : memref<32x128xf32, #tpu.memory_space<vmem>>, vector<8x128xf32>
    tpu.vector_store %arg11[%258, %c0_91], %257 {strides = array<i32>} : memref<32x128xf32, #tpu.memory_space<vmem>>, vector<8x128xf32>,
    %c3_i32_92 = arith.constant 3 : i32
    %c8_i32_93 = arith.constant 8 : i32
    %260 = arith.muli %c3_i32_92, %c8_i32_93 : i32
    %261 = tpu.assume_multiple %260, 8 : i32
    %262 = arith.index_cast %261 : i32 to index
    %c0_94 = arith.constant 0 : index
    %263 = vector.load %arg12[%262, %c0_94] : memref<32x512xf32, #tpu.memory_space<vmem>>, vector<8x512xf32>
    %cst_95 = arith.constant dense<0.000000e+00> : vector<8x512xf32>
    %264 = tpu.matmul %254, %162, %cst_95 {dimension_numbers = #tpu.dot_dimension_numbers<[1], [0], [0], [1], [0, 0, 1, 1], [], []>} : vector<8x128xf32>, vector<128x512xf32>, vector<8x512xf32> -> vector<8x512xf32>
    %265 = arith.addf %263, %264 : vector<8x512xf32>
    %266 = vector.extract_strided_slice %265 {offsets = [0, 0], sizes = [8, 384], strides = [1, 1]} : vector<8x512xf32> to vector<8x384xf32>
    %267 = arith.negf %266 : vector<8x384xf32>
    %268 = math.exp %267 : vector<8x384xf32>
    %cst_96 = arith.constant 1.000000e+00 : f32
    %269 = vector.broadcast %cst_96 : f32 to vector<8x384xf32>
    %270 = arith.addf %269, %268 : vector<8x384xf32>
    %271 = arith.divf %269, %270 : vector<8x384xf32>
    %272 = vector.extract_strided_slice %271 {offsets = [0, 0], sizes = [8, 128], strides = [1, 1]} : vector<8x384xf32> to vector<8x128xf32>
    %273 = vector.extract_strided_slice %271 {offsets = [0, 128], sizes = [8, 128], strides = [1, 1]} : vector<8x384xf32> to vector<8x128xf32>
    %274 = vector.extract_strided_slice %271 {offsets = [0, 256], sizes = [8, 128], strides = [1, 1]} : vector<8x384xf32> to vector<8x128xf32>
    %275 = vector.extract_strided_slice %265 {offsets = [0, 384], sizes = [8, 128], strides = [1, 1]} : vector<8x512xf32> to vector<8x128xf32>
    %276 = math.tanh %275 : vector<8x128xf32>
    %277 = arith.mulf %273, %255 : vector<8x128xf32>
    %278 = arith.mulf %272, %276 : vector<8x128xf32>
    %279 = arith.addf %277, %278 : vector<8x128xf32>
    %280 = math.tanh %279 : vector<8x128xf32>
    %281 = arith.mulf %274, %280 : vector<8x128xf32>
    %282 = arith.addi %6, %c3_i32_92 : i32
    %283 = vector.broadcast %282 : i32 to vector<8x128xi32>
    %284 = arith.cmpi sgt, %5, %283 : vector<8x128xi32>
    %285 = arith.select %284, %281, %254 : vector<8x128xi1>, vector<8x128xf32>
    %286 = arith.select %284, %279, %255 : vector<8x128xi1>, vector<8x128xf32>
    %cst_97 = arith.constant 0.000000e+00 : f32
    %287 = vector.broadcast %cst_97 : f32 to vector<8x128xf32>
    %288 = arith.select %284, %281, %287 : vector<8x128xi1>, vector<8x128xf32>
    %289 = arith.index_cast %261 : i32 to index
    %c0_98 = arith.constant 0 : index
    %290 = vector.load %arg11[%289, %c0_98] : memref<32x128xf32, #tpu.memory_space<vmem>>, vector<8x128xf32>
    tpu.vector_store %arg11[%289, %c0_98], %288 {strides = array<i32>} : memref<32x128xf32, #tpu.memory_space<vmem>>, vector<8x128xf32>,
    %c4_i32_99 = arith.constant 4 : i32
    %c1_100 = arith.constant 1 : index
    %c0_101 = arith.constant 0 : index
    %c0_102 = arith.constant 0 : index
    %291 = vector.load %arg9[%c1_100, %c0_101, %c0_102] : memref<2x8x128xf32, #tpu.memory_space<vmem>>, vector<1x8x128xf32>
    %292 = vector.shape_cast %291 : vector<1x8x128xf32> to vector<8x128xf32>
    %293 = vector.shape_cast %285 : vector<8x128xf32> to vector<1x8x128xf32>
    tpu.vector_store %arg9[%c1_100, %c0_101, %c0_102], %293 {strides = array<i32>} : memref<2x8x128xf32, #tpu.memory_space<vmem>>, vector<1x8x128xf32>,
    %c1_103 = arith.constant 1 : index
    %c0_104 = arith.constant 0 : index
    %c0_105 = arith.constant 0 : index
    %294 = vector.load %arg10[%c1_103, %c0_104, %c0_105] : memref<2x8x128xf32, #tpu.memory_space<vmem>>, vector<1x8x128xf32>
    %295 = vector.shape_cast %294 : vector<1x8x128xf32> to vector<8x128xf32>
    %296 = vector.shape_cast %286 : vector<8x128xf32> to vector<1x8x128xf32>
    tpu.vector_store %arg10[%c1_103, %c0_104, %c0_105], %296 {strides = array<i32>} : memref<2x8x128xf32, #tpu.memory_space<vmem>>, vector<1x8x128xf32>,
    %c0_106 = arith.constant 0 : index
    %c0_107 = arith.constant 0 : index
    %297 = vector.load %arg11[%c0_106, %c0_107] : memref<32x128xf32, #tpu.memory_space<vmem>>, vector<32x128xf32>
    %c0_108 = arith.constant 0 : index
    %c0_109 = arith.constant 0 : index
    %298 = vector.load %arg6[%c0_108, %c0_109] : memref<128x128xf32, #tpu.memory_space<vmem>>, vector<128x128xf32>
    %cst_110 = arith.constant dense<0.000000e+00> : vector<32x128xf32>
    %299 = tpu.matmul %297, %298, %cst_110 {dimension_numbers = #tpu.dot_dimension_numbers<[1], [0], [0], [1], [0, 0, 1, 1], [], []>} : vector<32x128xf32>, vector<128x128xf32>, vector<32x128xf32> -> vector<32x128xf32>
    %c0_111 = arith.constant 0 : index
    %c0_112 = arith.constant 0 : index
    %300 = vector.load %arg7[%c0_111, %c0_112] : memref<1x128xf32, #tpu.memory_space<vmem>>, vector<1x128xf32>
    %301 = vector.broadcast %300 : vector<1x128xf32> to vector<32x128xf32>
    %302 = arith.addf %299, %301 : vector<32x128xf32>
    %c0_113 = arith.constant 0 : index
    %c0_114 = arith.constant 0 : index
    %303 = vector.load %arg8[%c0_113, %c0_114] : memref<32x128xf32, #tpu.memory_space<vmem>>, vector<32x128xf32>
    tpu.vector_store %arg8[%c0_113, %c0_114], %302 {strides = array<i32>} : memref<32x128xf32, #tpu.memory_space<vmem>>, vector<32x128xf32>,
    return
  }
  func.func @transform_0(%arg0: i32) -> (i32, i32) {
    %c0_i32 = arith.constant 0 : i32
    %c0_i32_0 = arith.constant 0 : i32
    %c0_i32_1 = arith.constant 0 : i32
    return %c0_i32, %c0_i32_0 : i32, i32
  }
  func.func @transform_1(%arg0: i32) -> (i32, i32) {
    %c0_i32 = arith.constant 0 : i32
    %c0_i32_0 = arith.constant 0 : i32
    return %arg0, %c0_i32 : i32, i32
  }
  func.func @transform_2(%arg0: i32) -> (i32, i32, i32) {
    %c0_i32 = arith.constant 0 : i32
    %c0_i32_0 = arith.constant 0 : i32
    %c0_i32_1 = arith.constant 0 : i32
    %c0_i32_2 = arith.constant 0 : i32
    return %c0_i32, %c0_i32_0, %c0_i32_1 : i32, i32, i32
  }
  func.func @transform_3(%arg0: i32) -> (i32, i32, i32) {
    %c0_i32 = arith.constant 0 : i32
    %c0_i32_0 = arith.constant 0 : i32
    %c0_i32_1 = arith.constant 0 : i32
    %c0_i32_2 = arith.constant 0 : i32
    return %c0_i32, %c0_i32_0, %c0_i32_1 : i32, i32, i32
  }
  func.func @transform_4(%arg0: i32) -> (i32, i32, i32) {
    %c0_i32 = arith.constant 0 : i32
    %c0_i32_0 = arith.constant 0 : i32
    %c0_i32_1 = arith.constant 0 : i32
    %c0_i32_2 = arith.constant 0 : i32
    return %c0_i32, %c0_i32_0, %c0_i32_1 : i32, i32, i32
  }
  func.func @transform_5(%arg0: i32) -> (i32, i32) {
    %c0_i32 = arith.constant 0 : i32
    %c0_i32_0 = arith.constant 0 : i32
    %c0_i32_1 = arith.constant 0 : i32
    return %c0_i32, %c0_i32_0 : i32, i32
  }
  func.func @transform_6(%arg0: i32) -> (i32, i32) {
    %c0_i32 = arith.constant 0 : i32
    %c0_i32_0 = arith.constant 0 : i32
    %c0_i32_1 = arith.constant 0 : i32
    return %c0_i32, %c0_i32_0 : i32, i32
  }
  func.func @transform_7(%arg0: i32) -> (i32, i32) {
    %c0_i32 = arith.constant 0 : i32
    %c0_i32_0 = arith.constant 0 : i32
    return %arg0, %c0_i32 : i32, i32
  }
}

</mosaic_0001>

<llo_original>
// kernel: tpu_custom_call.1
$region0: #{tpu_custom_call.1}
  #allocation0 [shape = 'u32[]', space=smem, size = 0x4, offset = 0x4, fixed_abs, tag = 'smem constant byte address 0x4 - core index']
  #allocation1 [shape = 'u32[72,128]{1,0:T(1,128)}', space=vmem, size = 0x9000, scoped, tag = 'internal scratch']
  #allocation2 [shape = 'f32[2,8,128]{2,1,0:T(8,128)}', space=vmem, size = 0x2000, scoped, tag = 'scratch operand']
  #allocation3 [shape = 'f32[2,8,128]{2,1,0:T(8,128)}', space=vmem, size = 0x2000, scoped, tag = 'scratch operand']
  #allocation4 [shape = 'f32[32,128]{1,0:T(8,128)}', space=vmem, size = 0x4000, scoped, tag = 'scratch operand']
  #allocation5 [shape = 'f32[32,512]{1,0:T(8,128)}', space=vmem, size = 0x10000, scoped, tag = 'scratch operand']
  %s0 = inlined_call_operand.vmem [shape: s32[8,1], index: 0, kind: input, shape index: {}]
  %s1 = inlined_call_operand.hbm [shape: f32[64,128], index: 1, kind: input, shape index: {}]
  %s2 = inlined_call_operand.hbm [shape: f32[2,128,512], index: 2, kind: input, shape index: {}]
  %s3 = inlined_call_operand.hbm [shape: f32[2,128,512], index: 3, kind: input, shape index: {}]
  %s4 = inlined_call_operand.vmem [shape: f32[2,1,512], index: 4, kind: input, shape index: {}]
  %s5 = inlined_call_operand.hbm [shape: f32[128,128], index: 5, kind: input, shape index: {}]
  %s6 = inlined_call_operand.vmem [shape: f32[1,128], index: 6, kind: input, shape index: {}]
  %s7 = inlined_call_operand.hbm [shape: f32[64,128], index: 7, kind: output, shape index: {}]
  %s8 = sld [smem:[#allocation0]]
  $region81: #{tpu_custom_call.1} parent=0
    _
  %s10 = ssub.s32 1, %s8
  %s11 = scalar_select 0, %s10, %s8
  $region1: #{tpu_custom_call.1} parent=0
    #allocation6 [shape = 'u8[32768]{0}', space=vmem, size = 0x8000, scoped, tag = 'input window, operand 1']
    #allocation7 [shape = 's32[2]{0}', space=sflag, size = 0x8, scoped, tag = 'scoped memory for tpu_custom_call.1']
    #allocation8 [shape = 's32[2]{0}', space=sflag, size = 0x8, scoped, tag = 'scoped memory for tpu_custom_call.1']
    #allocation9 [shape = 'u8[524288]{0}', space=vmem, size = 0x80000, scoped, tag = 'input window, operand 2, single buffered']
    #allocation10 [shape = 's32[1]{0}', space=sflag, size = 0x4, scoped, tag = 'scoped memory for tpu_custom_call.1']
    #allocation11 [shape = 'u8[524288]{0}', space=vmem, size = 0x80000, scoped, tag = 'input window, operand 3, single buffered']
    #allocation12 [shape = 'u8[65536]{0}', space=vmem, size = 0x10000, scoped, tag = 'input window, operand 5, single buffered']
    #allocation13 [shape = 's32[1]{0}', space=sflag, size = 0x4, scoped, tag = 'scoped memory for tpu_custom_call.1']
    #allocation14 [shape = 'u8[32768]{0}', space=vmem, size = 0x8000, scoped, tag = 'output window, operand 0']
    %12 = vsyncpa [#allocation7], 0
    %s13 = scalar_lea.sflag [#allocation7], 1
    %14 = vsyncpa %s13, 0
    %15 = vsyncpa [#allocation10], 0
    %16 = vsyncpa [#allocation13], 0
    %17 = vsyncpa [#allocation8], 0
    %s18 = scalar_lea.sflag [#allocation8], 1
    %19 = vsyncpa %s18, 0
    loop: start=0, step=1, limit=4
    $region2: #{tpu_custom_call.1} parent=1 // loop_pre_header
      _
    $region3: #{tpu_custom_call.1} parent=1 // loop_header
      %s21 = sphi 0, %s25
      %p22 = scmp.ge.s32.totalorder %s21, 4
      %s29 = sphi 0, %s29
      %s31 = sphi 0, %s29
      %s32 = sphi 0, %s31
      %s46 = sphi 0, %s32
      %s52 = sphi 0, %s54
      %s55 = sphi 0, %s52
      %s56 = sphi 0, %s55
      %s72 = sphi 0, %s56
      %s76 = sphi 0, %s76
      %s78 = sphi 0, %s76
      %s79 = sphi 0, %s78
      %s93 = sphi 0, %s79
      %s97 = sphi 0, %s97
      %s99 = sphi 0, %s97
      %s100 = sphi 0, %s99
      %s114 = sphi 0, %s100
      %s118 = sphi 0, %s118
      %s120 = sphi 0, %s118
      %s121 = sphi 0, %s120
      %s135 = sphi 0, %s121
      %s139 = sphi 0, %s139
      %s141 = sphi 0, %s139
      %s142 = sphi 0, %s141
      %s156 = sphi 0, %s142
      %s160 = sphi 0, %s160
      %s162 = sphi 0, %s160
      %s163 = sphi 0, %s162
      %s177 = sphi 0, %s163
      %s183 = sphi 0, %s185
      %s186 = sphi 0, %s183
      %s187 = sphi 0, %s186
      %s203 = sphi 0, %s187
    $region4: #{tpu_custom_call.1} parent=1 // loop_header_branch
      %24 = sbr.rel (%p22) target = $region8
    $region5: #{tpu_custom_call.1} parent=1 // loop_body
      %s26 = ssub.s32 %s21, 1
      %s27 = ssub.s32 %s21, 2
      %s28 = sadd.s32 %s21, 1
      %s30 = sadd.s32 %s29, 1
      %p33 = scmp.eq.s32.totalorder %s21, 1
      %p34 = scmp.ne.s32.totalorder %s29, %s31
      %p35 = scmp.eq.s32.totalorder %s21, 0
      %p36 = por %p34, %p35
      %p37 = scmp.ne.s32.totalorder %s29, %s31
      %p38 = scmp.eq.s32.totalorder %s26, 1
      %p39 = por %p37, %p38
      %p40 = scmp.ne.s32.totalorder %s31, %s32
      %p41 = scmp.eq.s32.totalorder %s26, 0
      %p42 = por %p40, %p41
      %p43 = scmp.ne.s32.totalorder %s31, %s32
      %p44 = scmp.eq.s32.totalorder %s27, 1
      %p45 = por %p43, %p44
      %p47 = scmp.ne.s32.totalorder %s32, %s46
      %p48 = scmp.eq.s32.totalorder %s27, 0
      %p49 = por %p47, %p48
      %s50 = ssub.s32 %s21, %s28
      %p51 = scmp.eq.s32.totalorder %s50, 0
      %s53 = sadd.s32 %s52, 1
      %s54 = scalar_select %p51, %s52, %s53
      %p57 = pneg %p51
      %p58 = scmp.eq.s32.totalorder %s21, 1
      %p59 = por %p57, %p58
      %p60 = scmp.ne.s32.totalorder %s52, %s55
      %p61 = scmp.eq.s32.totalorder %s21, 0
      %p62 = por %p60, %p61
      %p63 = scmp.ne.s32.totalorder %s52, %s55
      %p64 = scmp.eq.s32.totalorder %s26, 1
      %p65 = por %p63, %p64
      %p66 = scmp.ne.s32.totalorder %s55, %s56
      %p67 = scmp.eq.s32.totalorder %s26, 0
      %p68 = por %p66, %p67
      %p69 = scmp.ne.s32.totalorder %s55, %s56
      %p70 = scmp.eq.s32.totalorder %s27, 1
      %p71 = por %p69, %p70
      %p73 = scmp.ne.s32.totalorder %s56, %s72
      %p74 = scmp.eq.s32.totalorder %s27, 0
      %p75 = por %p73, %p74
      %s77 = sadd.s32 %s76, 1
      %p80 = scmp.eq.s32.totalorder %s21, 1
      %p81 = scmp.ne.s32.totalorder %s76, %s78
      %p82 = scmp.eq.s32.totalorder %s21, 0
      %p83 = por %p81, %p82
      %p84 = scmp.ne.s32.totalorder %s76, %s78
      %p85 = scmp.eq.s32.totalorder %s26, 1
      %p86 = por %p84, %p85
      %p87 = scmp.ne.s32.totalorder %s78, %s79
      %p88 = scmp.eq.s32.totalorder %s26, 0
      %p89 = por %p87, %p88
      %p90 = scmp.ne.s32.totalorder %s78, %s79
      %p91 = scmp.eq.s32.totalorder %s27, 1
      %p92 = por %p90, %p91
      %p94 = scmp.ne.s32.totalorder %s79, %s93
      %p95 = scmp.eq.s32.totalorder %s27, 0
      %p96 = por %p94, %p95
      %s98 = sadd.s32 %s97, 1
      %p101 = scmp.eq.s32.totalorder %s21, 1
      %p102 = scmp.ne.s32.totalorder %s97, %s99
      %p103 = scmp.eq.s32.totalorder %s21, 0
      %p104 = por %p102, %p103
      %p105 = scmp.ne.s32.totalorder %s97, %s99
      %p106 = scmp.eq.s32.totalorder %s26, 1
      %p107 = por %p105, %p106
      %p108 = scmp.ne.s32.totalorder %s99, %s100
      %p109 = scmp.eq.s32.totalorder %s26, 0
      %p110 = por %p108, %p109
      %p111 = scmp.ne.s32.totalorder %s99, %s100
      %p112 = scmp.eq.s32.totalorder %s27, 1
      %p113 = por %p111, %p112
      %p115 = scmp.ne.s32.totalorder %s100, %s114
      %p116 = scmp.eq.s32.totalorder %s27, 0
      %p117 = por %p115, %p116
      %s119 = sadd.s32 %s118, 1
      %p122 = scmp.eq.s32.totalorder %s21, 1
      %p123 = scmp.ne.s32.totalorder %s118, %s120
      %p124 = scmp.eq.s32.totalorder %s21, 0
      %p125 = por %p123, %p124
      %p126 = scmp.ne.s32.totalorder %s118, %s120
      %p127 = scmp.eq.s32.totalorder %s26, 1
      %p128 = por %p126, %p127
      %p129 = scmp.ne.s32.totalorder %s120, %s121
      %p130 = scmp.eq.s32.totalorder %s26, 0
      %p131 = por %p129, %p130
      %p132 = scmp.ne.s32.totalorder %s120, %s121
      %p133 = scmp.eq.s32.totalorder %s27, 1
      %p134 = por %p132, %p133
      %p136 = scmp.ne.s32.totalorder %s121, %s135
      %p137 = scmp.eq.s32.totalorder %s27, 0
      %p138 = por %p136, %p137
      %s140 = sadd.s32 %s139, 1
      %p143 = scmp.eq.s32.totalorder %s21, 1
      %p144 = scmp.ne.s32.totalorder %s139, %s141
      %p145 = scmp.eq.s32.totalorder %s21, 0
      %p146 = por %p144, %p145
      %p147 = scmp.ne.s32.totalorder %s139, %s141
      %p148 = scmp.eq.s32.totalorder %s26, 1
      %p149 = por %p147, %p148
      %p150 = scmp.ne.s32.totalorder %s141, %s142
      %p151 = scmp.eq.s32.totalorder %s26, 0
      %p152 = por %p150, %p151
      %p153 = scmp.ne.s32.totalorder %s141, %s142
      %p154 = scmp.eq.s32.totalorder %s27, 1
      %p155 = por %p153, %p154
      %p157 = scmp.ne.s32.totalorder %s142, %s156
      %p158 = scmp.eq.s32.totalorder %s27, 0
      %p159 = por %p157, %p158
      %s161 = sadd.s32 %s160, 1
      %p164 = scmp.eq.s32.totalorder %s21, 1
      %p165 = scmp.ne.s32.totalorder %s160, %s162
      %p166 = scmp.eq.s32.totalorder %s21, 0
      %p167 = por %p165, %p166
      %p168 = scmp.ne.s32.totalorder %s160, %s162
      %p169 = scmp.eq.s32.totalorder %s26, 1
      %p170 = por %p168, %p169
      %p171 = scmp.ne.s32.totalorder %s162, %s163
      %p172 = scmp.eq.s32.totalorder %s26, 0
      %p173 = por %p171, %p172
      %p174 = scmp.ne.s32.totalorder %s162, %s163
      %p175 = scmp.eq.s32.totalorder %s27, 1
      %p176 = por %p174, %p175
      %p178 = scmp.ne.s32.totalorder %s163, %s177
      %p179 = scmp.eq.s32.totalorder %s27, 0
      %p180 = por %p178, %p179
      %s181 = ssub.s32 %s21, %s28
      %p182 = scmp.eq.s32.totalorder %s181, 0
      %s184 = sadd.s32 %s183, 1
      %s185 = scalar_select %p182, %s183, %s184
      %p188 = pneg %p182
      %p189 = scmp.eq.s32.totalorder %s21, 1
      %p190 = por %p188, %p189
      %p191 = scmp.ne.s32.totalorder %s183, %s186
      %p192 = scmp.eq.s32.totalorder %s21, 0
      %p193 = por %p191, %p192
      %p194 = scmp.ne.s32.totalorder %s183, %s186
      %p195 = scmp.eq.s32.totalorder %s26, 1
      %p196 = por %p194, %p195
      %p197 = scmp.ne.s32.totalorder %s186, %s187
      %p198 = scmp.eq.s32.totalorder %s26, 0
      %p199 = por %p197, %p198
      %p200 = scmp.ne.s32.totalorder %s186, %s187
      %p201 = scmp.eq.s32.totalorder %s27, 1
      %p202 = por %p200, %p201
      %p204 = scmp.ne.s32.totalorder %s187, %s203
      %p205 = scmp.eq.s32.totalorder %s27, 0
      %p206 = por %p204, %p205
      %p207 = scmp.le.s32.totalorder 1, %s21
      %p208 = scmp.lt.s32.totalorder %s21, 3
      %p209 = pnand %p207, %p208
      %p210 = pneg %p209
      // Predicated region
      $region9: #{tpu_custom_call.1} parent=5 // pred_check
        _
      $region10: #{tpu_custom_call.1} parent=5 // pred_check_branch
        %212 = sbr.rel (%p209) target = $region12
      $region11: #{tpu_custom_call.1} parent=5 // pred_region
        %s213 = ssub.s32 %s21, 1
        // Predicated region
        $region13: #{tpu_custom_call.1} parent=11 // pred_check
          %p214 = pneg %p42
        $region14: #{tpu_custom_call.1} parent=11 // pred_check_branch
          %216 = sbr.rel (%p214) target = $region16
        $region15: #{tpu_custom_call.1} parent=11 // pred_region
          _
        $region16: #{tpu_custom_call.1} parent=11 // pred_fallthru
          _
        // Predicated region
        $region17: #{tpu_custom_call.1} parent=11 // pred_check
          %p217 = pneg %p89
        $region18: #{tpu_custom_call.1} parent=11 // pred_check_branch
          %219 = sbr.rel (%p217) target = $region20
        $region19: #{tpu_custom_call.1} parent=11 // pred_region
          %221 = vsyncadd [#allocation10], 0
          %s222 = sshll.u32 %s2, 4
          %s223 = int_to_ptr.hbm [resolvable:$true] %s222
          %s224 = sshll.u32 [#allocation9], 4
          %s225 = int_to_ptr.vmem [resolvable:$true] %s224
          %230 = dma.hbm_to_vmem [thread:$0]  %s223, 16384, %s225, [#allocation10], 512, 512, 32
        $region20: #{tpu_custom_call.1} parent=11 // pred_fallthru
          _
        // Predicated region
        $region21: #{tpu_custom_call.1} parent=11 // pred_check
          %p231 = pneg %p110
        $region22: #{tpu_custom_call.1} parent=11 // pred_check_branch
          %233 = sbr.rel (%p231) target = $region24
        $region23: #{tpu_custom_call.1} parent=11 // pred_region
          %235 = vsyncadd [#allocation10], 0
          %s236 = sshll.u32 %s3, 4
          %s237 = int_to_ptr.hbm [resolvable:$true] %s236
          %s238 = sshll.u32 [#allocation11], 4
          %s239 = int_to_ptr.vmem [resolvable:$true] %s238
          %244 = dma.hbm_to_vmem [thread:$0]  %s237, 16384, %s239, [#allocation10], 512, 512, 32
        $region24: #{tpu_custom_call.1} parent=11 // pred_fallthru
          _
        // Predicated region
        $region25: #{tpu_custom_call.1} parent=11 // pred_check
          %p245 = pneg %p131
        $region26: #{tpu_custom_call.1} parent=11 // pred_check_branch
          %247 = sbr.rel (%p245) target = $region28
        $region27: #{tpu_custom_call.1} parent=11 // pred_region
          _
        $region28: #{tpu_custom_call.1} parent=11 // pred_fallthru
          _
        // Predicated region
        $region29: #{tpu_custom_call.1} parent=11 // pred_check
          %p248 = pneg %p152
        $region30: #{tpu_custom_call.1} parent=11 // pred_check_branch
          %250 = sbr.rel (%p248) target = $region32
        $region31: #{tpu_custom_call.1} parent=11 // pred_region
          %252 = vsyncadd [#allocation13], 0
          %s253 = sshll.u32 %s5, 4
          %s254 = int_to_ptr.hbm [resolvable:$true] %s253
          %s255 = sshll.u32 [#allocation12], 4
          %s256 = int_to_ptr.vmem [resolvable:$true] %s255
          %261 = dma.hbm_to_vmem [thread:$0]  %s254, 2048, %s256, [#allocation13], 128, 128, 8
        $region32: #{tpu_custom_call.1} parent=11 // pred_fallthru
          _
        // Predicated region
        $region33: #{tpu_custom_call.1} parent=11 // pred_check
          %p262 = pneg %p173
        $region34: #{tpu_custom_call.1} parent=11 // pred_check_branch
          %264 = sbr.rel (%p262) target = $region36
        $region35: #{tpu_custom_call.1} parent=11 // pred_region
          _
        $region36: #{tpu_custom_call.1} parent=11 // pred_fallthru
          _
      $region12: #{tpu_custom_call.1} parent=5 // pred_fallthru
        _
      %p265 = scmp.lt.s32.totalorder %s21, 2
      // Predicated region
      $region37: #{tpu_custom_call.1} parent=5 // pred_check
        %p266 = pneg %p265
      $region38: #{tpu_custom_call.1} parent=5 // pred_check_branch
        %268 = sbr.rel (%p266) target = $region40
      $region39: #{tpu_custom_call.1} parent=5 // pred_region
        // Predicated region
        $region41: #{tpu_custom_call.1} parent=39 // pred_check
          %p269 = pneg %p62
        $region42: #{tpu_custom_call.1} parent=39 // pred_check_branch
          %271 = sbr.rel (%p269) target = $region44
        $region43: #{tpu_custom_call.1} parent=39 // pred_region
          %s272 = sand.u32 %s52, 1
          %s273 = scalar_lea.sflag [#allocation7], %s272
          %s274 = sand.u32 %s52, 1
          %s275 = smul.addr %s274, 32
          %s276 = scalar_lea.vmem [#allocation6], %s275
          %s277 = smul.u32 4, %s21
          %279 = vsyncadd %s273, 0
          %s280 = smul.addr %s277, 8
          %s281 = scalar_lea.hbm %s1, %s280
          %s282 = sshll.u32 %s281, 4
          %s283 = int_to_ptr.hbm [resolvable:$true] %s282
          %s284 = sshll.u32 %s276, 4
          %s285 = int_to_ptr.vmem [resolvable:$true] %s284
          %290 = dma.hbm_to_vmem [thread:$0]  %s283, 512, %s285, %s273, 128, 128, 8
        $region44: #{tpu_custom_call.1} parent=39 // pred_fallthru
          _
      $region40: #{tpu_custom_call.1} parent=5 // pred_fallthru
        _
      %p291 = scmp.le.s32.totalorder 1, %s21
      %p292 = scmp.lt.s32.totalorder %s21, 3
      %p293 = pnand %p291, %p292
      %p294 = pneg %p293
      // Predicated region
      $region45: #{tpu_custom_call.1} parent=5 // pred_check
        _
      $region46: #{tpu_custom_call.1} parent=5 // pred_check_branch
        %296 = sbr.rel (%p293) target = $region48
      $region47: #{tpu_custom_call.1} parent=5 // pred_region
        %s297 = ssub.s32 %s21, 1
        %s298 = sand.u32 %s55, 1
        %s299 = scalar_lea.sflag [#allocation7], %s298
        %s300 = sand.u32 %s55, 1
        %s301 = smul.addr %s300, 32
        %s302 = scalar_lea.vmem [#allocation6], %s301
        // Predicated region
        $region49: #{tpu_custom_call.1} parent=47 // pred_check
          %p303 = pneg %p68
        $region50: #{tpu_custom_call.1} parent=47 // pred_check_branch
          %305 = sbr.rel (%p303) target = $region52
        $region51: #{tpu_custom_call.1} parent=47 // pred_region
          %307 = dma.done %s299, 512
        $region52: #{tpu_custom_call.1} parent=47 // pred_fallthru
          _
        // Predicated region
        $region53: #{tpu_custom_call.1} parent=47 // pred_check
          %p308 = pneg %p89
        $region54: #{tpu_custom_call.1} parent=47 // pred_check_branch
          %310 = sbr.rel (%p308) target = $region56
        $region55: #{tpu_custom_call.1} parent=47 // pred_region
          %312 = dma.done [#allocation10], 16384
        $region56: #{tpu_custom_call.1} parent=47 // pred_fallthru
          _
        // Predicated region
        $region57: #{tpu_custom_call.1} parent=47 // pred_check
          %p313 = pneg %p110
        $region58: #{tpu_custom_call.1} parent=47 // pred_check_branch
          %315 = sbr.rel (%p313) target = $region60
        $region59: #{tpu_custom_call.1} parent=47 // pred_region
          %317 = dma.done [#allocation10], 16384
        $region60: #{tpu_custom_call.1} parent=47 // pred_fallthru
          _
        // Predicated region
        $region61: #{tpu_custom_call.1} parent=47 // pred_check
          %p318 = pneg %p152
        $region62: #{tpu_custom_call.1} parent=47 // pred_check_branch
          %320 = sbr.rel (%p318) target = $region64
        $region63: #{tpu_custom_call.1} parent=47 // pred_region
          %322 = dma.done [#allocation13], 2048
        $region64: #{tpu_custom_call.1} parent=47 // pred_fallthru
          _
        %p323 = pneg %p42
        %p324 = pneg %p39
        %s325 = sand.u32 %s55, 1
        %s326 = scalar_lea.sflag [#allocation7], %s325
        %s327 = sand.u32 %s55, 1
        %s328 = smul.addr %s327, 32
        %s329 = scalar_lea.vmem [#allocation6], %s328
        %p330 = pneg %p68
        %p331 = pneg %p65
        %p332 = pneg %p89
        %p333 = pneg %p86
        %p334 = pneg %p110
        %p335 = pneg %p107
        %p336 = pneg %p131
        %p337 = pneg %p128
        %p338 = pneg %p152
        %p339 = pneg %p149
        %p340 = pneg %p173
        %p341 = pneg %p170
        %p342 = pneg %p199
        %p343 = pneg %p196
        %s344 = sand.u32 %s186, 1
        %s345 = scalar_lea.sflag [#allocation8], %s344
        %s346 = sand.u32 %s186, 1
        %s347 = smul.addr %s346, 32
        %s348 = scalar_lea.vmem [#allocation14], %s347
        %s349 = smul.u32 4, %s26
        %s350 = smul.u32 4, %s26
        %p351 = scmp.eq.s32.totalorder %s26, 0
        // Predicated region
        $region65: #{tpu_custom_call.1} parent=47 // pred_check
          %p352 = pneg %p351
        $region66: #{tpu_custom_call.1} parent=47 // pred_check_branch
          %354 = sbr.rel (%p352) target = $region68
        $region67: #{tpu_custom_call.1} parent=47 // pred_region
          %355 = vst [vmem:[#allocation2] sm:$0xff] 0.0
          %356 = vst [vmem:[#allocation2 + $0x8] sm:$0xff] 0.0
          %357 = vst [vmem:[#allocation3] sm:$0xff] 0.0
          %358 = vst [vmem:[#allocation3 + $0x8] sm:$0xff] 0.0
        $region68: #{tpu_custom_call.1} parent=47 // pred_fallthru
          _
        %v359 = vld [vmem:[%s0] sm:$0xff]
        %360 = vset.pattern.permute.xlu0 0
        %361 = vperm.xlu0 %360, %v359
        %v362 = vpop.permute.xlu0 %361
        %s363 = smul.u32 %s26, 4
        %v364 = vld [vmem:[%s302] sm:$0xff]
        %v365 = vld [vmem:[%s302 + $0x8] sm:$0xff]
        %v366 = vld [vmem:[%s302 + $0x10] sm:$0xff]
        %v367 = vld [vmem:[%s302 + $0x18] sm:$0xff]
        %v368 = vld [vmem:[#allocation9] sm:$0xff]
        %v369 = vld [vmem:[#allocation9 + $0x8] sm:$0xff]
        %v370 = vld [vmem:[#allocation9 + $0x10] sm:$0xff]
        %v371 = vld [vmem:[#allocation9 + $0x18] sm:$0xff]
        %v372 = vld [vmem:[#allocation9 + $0x20] sm:$0xff]
        %v373 = vld [vmem:[#allocation9 + $0x28] sm:$0xff]
        %v374 = vld [vmem:[#allocation9 + $0x30] sm:$0xff]
        %v375 = vld [vmem:[#allocation9 + $0x38] sm:$0xff]
        %v376 = vld [vmem:[#allocation9 + $0x40] sm:$0xff]
        %v377 = vld [vmem:[#allocation9 + $0x48] sm:$0xff]
        %v378 = vld [vmem:[#allocation9 + $0x50] sm:$0xff]
        %v379 = vld [vmem:[#allocation9 + $0x58] sm:$0xff]
        %v380 = vld [vmem:[#allocation9 + $0x60] sm:$0xff]
        %v381 = vld [vmem:[#allocation9 + $0x68] sm:$0xff]
        %v382 = vld [vmem:[#allocation9 + $0x70] sm:$0xff]
        %v383 = vld [vmem:[#allocation9 + $0x78] sm:$0xff]
        %v384 = vld [vmem:[#allocation9 + $0x80] sm:$0xff]
        %v385 = vld [vmem:[#allocation9 + $0x88] sm:$0xff]
        %v386 = vld [vmem:[#allocation9 + $0x90] sm:$0xff]
        %v387 = vld [vmem:[#allocation9 + $0x98] sm:$0xff]
        %v388 = vld [vmem:[#allocation9 + $0xa0] sm:$0xff]
        %v389 = vld [vmem:[#allocation9 + $0xa8] sm:$0xff]
        %v390 = vld [vmem:[#allocation9 + $0xb0] sm:$0xff]
        %v391 = vld [vmem:[#allocation9 + $0xb8] sm:$0xff]
        %v392 = vld [vmem:[#allocation9 + $0xc0] sm:$0xff]
        %v393 = vld [vmem:[#allocation9 + $0xc8] sm:$0xff]
        %v394 = vld [vmem:[#allocation9 + $0xd0] sm:$0xff]
        %v395 = vld [vmem:[#allocation9 + $0xd8] sm:$0xff]
        %v396 = vld [vmem:[#allocation9 + $0xe0] sm:$0xff]
        %v397 = vld [vmem:[#allocation9 + $0xe8] sm:$0xff]
        %v398 = vld [vmem:[#allocation9 + $0xf0] sm:$0xff]
        %v399 = vld [vmem:[#allocation9 + $0xf8] sm:$0xff]
        %v400 = vld [vmem:[#allocation9 + $0x100] sm:$0xff]
        %v401 = vld [vmem:[#allocation9 + $0x108] sm:$0xff]
        %v402 = vld [vmem:[#allocation9 + $0x110] sm:$0xff]
        %v403 = vld [vmem:[#allocation9 + $0x118] sm:$0xff]
        %v404 = vld [vmem:[#allocation9 + $0x120] sm:$0xff]
        %v405 = vld [vmem:[#allocation9 + $0x128] sm:$0xff]
        %v406 = vld [vmem:[#allocation9 + $0x130] sm:$0xff]
        %v407 = vld [vmem:[#allocation9 + $0x138] sm:$0xff]
        %v408 = vld [vmem:[#allocation9 + $0x140] sm:$0xff]
        %v409 = vld [vmem:[#allocation9 + $0x148] sm:$0xff]
        %v410 = vld [vmem:[#allocation9 + $0x150] sm:$0xff]
        %v411 = vld [vmem:[#allocation9 + $0x158] sm:$0xff]
        %v412 = vld [vmem:[#allocation9 + $0x160] sm:$0xff]
        %v413 = vld [vmem:[#allocation9 + $0x168] sm:$0xff]
        %v414 = vld [vmem:[#allocation9 + $0x170] sm:$0xff]
        %v415 = vld [vmem:[#allocation9 + $0x178] sm:$0xff]
        %v416 = vld [vmem:[#allocation9 + $0x180] sm:$0xff]
        %v417 = vld [vmem:[#allocation9 + $0x188] sm:$0xff]
        %v418 = vld [vmem:[#allocation9 + $0x190] sm:$0xff]
        %v419 = vld [vmem:[#allocation9 + $0x198] sm:$0xff]
        %v420 = vld [vmem:[#allocation9 + $0x1a0] sm:$0xff]
        %v421 = vld [vmem:[#allocation9 + $0x1a8] sm:$0xff]
        %v422 = vld [vmem:[#allocation9 + $0x1b0] sm:$0xff]
        %v423 = vld [vmem:[#allocation9 + $0x1b8] sm:$0xff]
        %v424 = vld [vmem:[#allocation9 + $0x1c0] sm:$0xff]
        %v425 = vld [vmem:[#allocation9 + $0x1c8] sm:$0xff]
        %v426 = vld [vmem:[#allocation9 + $0x1d0] sm:$0xff]
        %v427 = vld [vmem:[#allocation9 + $0x1d8] sm:$0xff]
        %v428 = vld [vmem:[#allocation9 + $0x1e0] sm:$0xff]
        %v429 = vld [vmem:[#allocation9 + $0x1e8] sm:$0xff]
        %v430 = vld [vmem:[#allocation9 + $0x1f0] sm:$0xff]
        %v431 = vld [vmem:[#allocation9 + $0x1f8] sm:$0xff]
        %v432 = vld [vmem:[%s4] sm:$0xf]
        %v434 = vperm.slane %v432, 0
        %v435 = vperm.slane %v432, 1
        %v436 = vperm.slane %v432, 2
        %v437 = vperm.slane %v432, 3
        %442 = vmatpush.msra.mxu0 %v428
        %443 = vmatpush.msra.mxu0 %v424
        %444 = vmatpush.msra.mxu0 %v420
        %445 = vmatpush.msra.mxu0 %v416
        %446 = vmatpush.msra.mxu0 %v412
        %447 = vmatpush.msra.mxu0 %v408
        %448 = vmatpush.msra.mxu0 %v404
        %449 = vmatpush.msra.mxu0 %v400
        %450 = vmatpush.msra.mxu0 %v396
        %451 = vmatpush.msra.mxu0 %v392
        %452 = vmatpush.msra.mxu0 %v388
        %453 = vmatpush.msra.mxu0 %v384
        %454 = vmatpush.msra.mxu0 %v380
        %455 = vmatpush.msra.mxu0 %v376
        %456 = vmatpush.msra.mxu0 %v372
        %457 = vmatpush.msra.mxu0 %v368
        %458 = vmatmul.f32.gmra.mxu0 %v364
        %v459 = vpop.f32.mrf.mxu0
        %v460 = vadd.f32 %v434, %v459
        %461 = vmatmul.f32.gmra.mxu0 %v365
        %v462 = vpop.f32.mrf.mxu0
        %v463 = vadd.f32 %v434, %v462
        %464 = vmatmul.f32.gmra.mxu0 %v366
        %v465 = vpop.f32.mrf.mxu0
        %v466 = vadd.f32 %v434, %v465
        %467 = vmatmul.f32.gmra.mxu0 %v367
        %v468 = vpop.f32.mrf.mxu0
        %v469 = vadd.f32 %v434, %v468
        %470 = vdwg.mxu0
        %471 = vmatpush.msra.mxu0 %v429
        %472 = vmatpush.msra.mxu0 %v425
        %473 = vmatpush.msra.mxu0 %v421
        %474 = vmatpush.msra.mxu0 %v417
        %475 = vmatpush.msra.mxu0 %v413
        %476 = vmatpush.msra.mxu0 %v409
        %477 = vmatpush.msra.mxu0 %v405
        %478 = vmatpush.msra.mxu0 %v401
        %479 = vmatpush.msra.mxu0 %v397
        %480 = vmatpush.msra.mxu0 %v393
        %481 = vmatpush.msra.mxu0 %v389
        %482 = vmatpush.msra.mxu0 %v385
        %483 = vmatpush.msra.mxu0 %v381
        %484 = vmatpush.msra.mxu0 %v377
        %485 = vmatpush.msra.mxu0 %v373
        %486 = vmatpush.msra.mxu0 %v369
        %487 = vmatmul.f32.gmra.mxu0 %v364
        %v488 = vpop.f32.mrf.mxu0
        %v489 = vadd.f32 %v435, %v488
        %490 = vmatmul.f32.gmra.mxu0 %v365
        %v491 = vpop.f32.mrf.mxu0
        %v492 = vadd.f32 %v435, %v491
        %493 = vmatmul.f32.gmra.mxu0 %v366
        %v494 = vpop.f32.mrf.mxu0
        %v495 = vadd.f32 %v435, %v494
        %496 = vmatmul.f32.gmra.mxu0 %v367
        %v497 = vpop.f32.mrf.mxu0
        %v498 = vadd.f32 %v435, %v497
        %499 = vdwg.mxu0
        %500 = vmatpush.msra.mxu0 %v430
        %501 = vmatpush.msra.mxu0 %v426
        %502 = vmatpush.msra.mxu0 %v422
        %503 = vmatpush.msra.mxu0 %v418
        %504 = vmatpush.msra.mxu0 %v414
        %505 = vmatpush.msra.mxu0 %v410
        %506 = vmatpush.msra.mxu0 %v406
        %507 = vmatpush.msra.mxu0 %v402
        %508 = vmatpush.msra.mxu0 %v398
        %509 = vmatpush.msra.mxu0 %v394
        %510 = vmatpush.msra.mxu0 %v390
        %511 = vmatpush.msra.mxu0 %v386
        %512 = vmatpush.msra.mxu0 %v382
        %513 = vmatpush.msra.mxu0 %v378
        %514 = vmatpush.msra.mxu0 %v374
        %515 = vmatpush.msra.mxu0 %v370
        %516 = vmatmul.f32.gmra.mxu0 %v364
        %v517 = vpop.f32.mrf.mxu0
        %v518 = vadd.f32 %v436, %v517
        %519 = vmatmul.f32.gmra.mxu0 %v365
        %v520 = vpop.f32.mrf.mxu0
        %v521 = vadd.f32 %v436, %v520
        %522 = vmatmul.f32.gmra.mxu0 %v366
        %v523 = vpop.f32.mrf.mxu0
        %v524 = vadd.f32 %v436, %v523
        %525 = vmatmul.f32.gmra.mxu0 %v367
        %v526 = vpop.f32.mrf.mxu0
        %v527 = vadd.f32 %v436, %v526
        %528 = vdwg.mxu0
        %529 = vmatpush.msra.mxu0 %v431
        %530 = vmatpush.msra.mxu0 %v427
        %531 = vmatpush.msra.mxu0 %v423
        %532 = vmatpush.msra.mxu0 %v419
        %533 = vmatpush.msra.mxu0 %v415
        %534 = vmatpush.msra.mxu0 %v411
        %535 = vmatpush.msra.mxu0 %v407
        %536 = vmatpush.msra.mxu0 %v403
        %537 = vmatpush.msra.mxu0 %v399
        %538 = vmatpush.msra.mxu0 %v395
        %539 = vmatpush.msra.mxu0 %v391
        %540 = vmatpush.msra.mxu0 %v387
        %541 = vmatpush.msra.mxu0 %v383
        %542 = vmatpush.msra.mxu0 %v379
        %543 = vmatpush.msra.mxu0 %v375
        %544 = vmatpush.msra.mxu0 %v371
        %545 = vmatmul.f32.gmra.mxu0 %v364
        %v546 = vpop.f32.mrf.mxu0
        %v547 = vadd.f32 %v437, %v546
        %548 = vmatmul.f32.gmra.mxu0 %v365
        %v549 = vpop.f32.mrf.mxu0
        %v550 = vadd.f32 %v437, %v549
        %551 = vmatmul.f32.gmra.mxu0 %v366
        %v552 = vpop.f32.mrf.mxu0
        %v553 = vadd.f32 %v437, %v552
        %554 = vmatmul.f32.gmra.mxu0 %v367
        %v555 = vpop.f32.mrf.mxu0
        %v556 = vadd.f32 %v437, %v555
        %557 = vdwg.mxu0
        %558 = vst [vmem:[#allocation5] sm:$0xff] %v460
        %559 = vst [vmem:[#allocation5 + $0x8] sm:$0xff] %v489
        %560 = vst [vmem:[#allocation5 + $0x10] sm:$0xff] %v518
        %561 = vst [vmem:[#allocation5 + $0x18] sm:$0xff] %v547
        %562 = vst [vmem:[#allocation5 + $0x20] sm:$0xff] %v463
        %563 = vst [vmem:[#allocation5 + $0x28] sm:$0xff] %v492
        %564 = vst [vmem:[#allocation5 + $0x30] sm:$0xff] %v521
        %565 = vst [vmem:[#allocation5 + $0x38] sm:$0xff] %v550
        %566 = vst [vmem:[#allocation5 + $0x40] sm:$0xff] %v466
        %567 = vst [vmem:[#allocation5 + $0x48] sm:$0xff] %v495
        %568 = vst [vmem:[#allocation5 + $0x50] sm:$0xff] %v524
        %569 = vst [vmem:[#allocation5 + $0x58] sm:$0xff] %v553
        %570 = vst [vmem:[#allocation5 + $0x60] sm:$0xff] %v469
        %571 = vst [vmem:[#allocation5 + $0x68] sm:$0xff] %v498
        %572 = vst [vmem:[#allocation5 + $0x70] sm:$0xff] %v527
        %573 = vst [vmem:[#allocation5 + $0x78] sm:$0xff] %v556
        %v574 = vld [vmem:[#allocation11] sm:$0xff]
        %v575 = vld [vmem:[#allocation11 + $0x8] sm:$0xff]
        %v576 = vld [vmem:[#allocation11 + $0x10] sm:$0xff]
        %v577 = vld [vmem:[#allocation11 + $0x18] sm:$0xff]
        %v578 = vld [vmem:[#allocation11 + $0x20] sm:$0xff]
        %v579 = vld [vmem:[#allocation11 + $0x28] sm:$0xff]
        %v580 = vld [vmem:[#allocation11 + $0x30] sm:$0xff]
        %v581 = vld [vmem:[#allocation11 + $0x38] sm:$0xff]
        %v582 = vld [vmem:[#allocation11 + $0x40] sm:$0xff]
        %v583 = vld [vmem:[#allocation11 + $0x48] sm:$0xff]
        %v584 = vld [vmem:[#allocation11 + $0x50] sm:$0xff]
        %v585 = vld [vmem:[#allocation11 + $0x58] sm:$0xff]
        %v586 = vld [vmem:[#allocation11 + $0x60] sm:$0xff]
        %v587 = vld [vmem:[#allocation11 + $0x68] sm:$0xff]
        %v588 = vld [vmem:[#allocation11 + $0x70] sm:$0xff]
        %v589 = vld [vmem:[#allocation11 + $0x78] sm:$0xff]
        %v590 = vld [vmem:[#allocation11 + $0x80] sm:$0xff]
        %v591 = vld [vmem:[#allocation11 + $0x88] sm:$0xff]
        %v592 = vld [vmem:[#allocation11 + $0x90] sm:$0xff]
        %v593 = vld [vmem:[#allocation11 + $0x98] sm:$0xff]
        %v594 = vld [vmem:[#allocation11 + $0xa0] sm:$0xff]
        %v595 = vld [vmem:[#allocation11 + $0xa8] sm:$0xff]
        %v596 = vld [vmem:[#allocation11 + $0xb0] sm:$0xff]
        %v597 = vld [vmem:[#allocation11 + $0xb8] sm:$0xff]
        %v598 = vld [vmem:[#allocation11 + $0xc0] sm:$0xff]
        %v599 = vld [vmem:[#allocation11 + $0xc8] sm:$0xff]
        %v600 = vld [vmem:[#allocation11 + $0xd0] sm:$0xff]
        %v601 = vld [vmem:[#allocation11 + $0xd8] sm:$0xff]
        %v602 = vld [vmem:[#allocation11 + $0xe0] sm:$0xff]
        %v603 = vld [vmem:[#allocation11 + $0xe8] sm:$0xff]
        %v604 = vld [vmem:[#allocation11 + $0xf0] sm:$0xff]
        %v605 = vld [vmem:[#allocation11 + $0xf8] sm:$0xff]
        %v606 = vld [vmem:[#allocation11 + $0x100] sm:$0xff]
        %v607 = vld [vmem:[#allocation11 + $0x108] sm:$0xff]
        %v608 = vld [vmem:[#allocation11 + $0x110] sm:$0xff]
        %v609 = vld [vmem:[#allocation11 + $0x118] sm:$0xff]
        %v610 = vld [vmem:[#allocation11 + $0x120] sm:$0xff]
        %v611 = vld [vmem:[#allocation11 + $0x128] sm:$0xff]
        %v612 = vld [vmem:[#allocation11 + $0x130] sm:$0xff]
        %v613 = vld [vmem:[#allocation11 + $0x138] sm:$0xff]
        %v614 = vld [vmem:[#allocation11 + $0x140] sm:$0xff]
        %v615 = vld [vmem:[#allocation11 + $0x148] sm:$0xff]
        %v616 = vld [vmem:[#allocation11 + $0x150] sm:$0xff]
        %v617 = vld [vmem:[#allocation11 + $0x158] sm:$0xff]
        %v618 = vld [vmem:[#allocation11 + $0x160] sm:$0xff]
        %v619 = vld [vmem:[#allocation11 + $0x168] sm:$0xff]
        %v620 = vld [vmem:[#allocation11 + $0x170] sm:$0xff]
        %v621 = vld [vmem:[#allocation11 + $0x178] sm:$0xff]
        %v622 = vld [vmem:[#allocation11 + $0x180] sm:$0xff]
        %v623 = vld [vmem:[#allocation11 + $0x188] sm:$0xff]
        %v624 = vld [vmem:[#allocation11 + $0x190] sm:$0xff]
        %v625 = vld [vmem:[#allocation11 + $0x198] sm:$0xff]
        %v626 = vld [vmem:[#allocation11 + $0x1a0] sm:$0xff]
        %v627 = vld [vmem:[#allocation11 + $0x1a8] sm:$0xff]
        %v628 = vld [vmem:[#allocation11 + $0x1b0] sm:$0xff]
        %v629 = vld [vmem:[#allocation11 + $0x1b8] sm:$0xff]
        %v630 = vld [vmem:[#allocation11 + $0x1c0] sm:$0xff]
        %v631 = vld [vmem:[#allocation11 + $0x1c8] sm:$0xff]
        %v632 = vld [vmem:[#allocation11 + $0x1d0] sm:$0xff]
        %v633 = vld [vmem:[#allocation11 + $0x1d8] sm:$0xff]
        %v634 = vld [vmem:[#allocation11 + $0x1e0] sm:$0xff]
        %v635 = vld [vmem:[#allocation11 + $0x1e8] sm:$0xff]
        %v636 = vld [vmem:[#allocation11 + $0x1f0] sm:$0xff]
        %v637 = vld [vmem:[#allocation11 + $0x1f8] sm:$0xff]
        %v638 = vld [vmem:[#allocation2] sm:$0xff]
        %v639 = vld [vmem:[#allocation3] sm:$0xff]
        %s640 = smul.u32 0, 4
        %s641 = smul.addr %s640, 8
        %s642 = scalar_lea.vmem [#allocation5], %s641
        %v643 = vld [vmem:[%s642] sm:$0xff]
        %v644 = vld [vmem:[%s642 + $0x8] sm:$0xff]
        %v645 = vld [vmem:[%s642 + $0x10] sm:$0xff]
        %v646 = vld [vmem:[%s642 + $0x18] sm:$0xff]
        %647 = vmatpush.msra.mxu0 %v634
        %648 = vmatpush.msra.mxu0 %v630
        %649 = vmatpush.msra.mxu0 %v626
        %650 = vmatpush.msra.mxu0 %v622
        %651 = vmatpush.msra.mxu0 %v618
        %652 = vmatpush.msra.mxu0 %v614
        %653 = vmatpush.msra.mxu0 %v610
        %654 = vmatpush.msra.mxu0 %v606
        %655 = vmatpush.msra.mxu0 %v602
        %656 = vmatpush.msra.mxu0 %v598
        %657 = vmatpush.msra.mxu0 %v594
        %658 = vmatpush.msra.mxu0 %v590
        %659 = vmatpush.msra.mxu0 %v586
        %660 = vmatpush.msra.mxu0 %v582
        %661 = vmatpush.msra.mxu0 %v578
        %662 = vmatpush.msra.mxu0 %v574
        %663 = vmatmul.f32.gmra.mxu0 %v638
        %v664 = vpop.f32.mrf.mxu0
        %v665 = vadd.f32 0.0, %v664
        %666 = vdwg.mxu0
        %667 = vmatpush.msra.mxu0 %v635
        %668 = vmatpush.msra.mxu0 %v631
        %669 = vmatpush.msra.mxu0 %v627
        %670 = vmatpush.msra.mxu0 %v623
        %671 = vmatpush.msra.mxu0 %v619
        %672 = vmatpush.msra.mxu0 %v615
        %673 = vmatpush.msra.mxu0 %v611
        %674 = vmatpush.msra.mxu0 %v607
        %675 = vmatpush.msra.mxu0 %v603
        %676 = vmatpush.msra.mxu0 %v599
        %677 = vmatpush.msra.mxu0 %v595
        %678 = vmatpush.msra.mxu0 %v591
        %679 = vmatpush.msra.mxu0 %v587
        %680 = vmatpush.msra.mxu0 %v583
        %681 = vmatpush.msra.mxu0 %v579
        %682 = vmatpush.msra.mxu0 %v575
        %683 = vmatmul.f32.gmra.mxu0 %v638
        %v684 = vpop.f32.mrf.mxu0
        %v685 = vadd.f32 0.0, %v684
        %686 = vdwg.mxu0
        %687 = vmatpush.msra.mxu0 %v636
        %688 = vmatpush.msra.mxu0 %v632
        %689 = vmatpush.msra.mxu0 %v628
        %690 = vmatpush.msra.mxu0 %v624
        %691 = vmatpush.msra.mxu0 %v620
        %692 = vmatpush.msra.mxu0 %v616
        %693 = vmatpush.msra.mxu0 %v612
        %694 = vmatpush.msra.mxu0 %v608
        %695 = vmatpush.msra.mxu0 %v604
        %696 = vmatpush.msra.mxu0 %v600
        %697 = vmatpush.msra.mxu0 %v596
        %698 = vmatpush.msra.mxu0 %v592
        %699 = vmatpush.msra.mxu0 %v588
        %700 = vmatpush.msra.mxu0 %v584
        %701 = vmatpush.msra.mxu0 %v580
        %702 = vmatpush.msra.mxu0 %v576
        %703 = vmatmul.f32.gmra.mxu0 %v638
        %v704 = vpop.f32.mrf.mxu0
        %v705 = vadd.f32 0.0, %v704
        %706 = vdwg.mxu0
        %707 = vmatpush.msra.mxu0 %v637
        %708 = vmatpush.msra.mxu0 %v633
        %709 = vmatpush.msra.mxu0 %v629
        %710 = vmatpush.msra.mxu0 %v625
        %711 = vmatpush.msra.mxu0 %v621
        %712 = vmatpush.msra.mxu0 %v617
        %713 = vmatpush.msra.mxu0 %v613
        %714 = vmatpush.msra.mxu0 %v609
        %715 = vmatpush.msra.mxu0 %v605
        %716 = vmatpush.msra.mxu0 %v601
        %717 = vmatpush.msra.mxu0 %v597
        %718 = vmatpush.msra.mxu0 %v593
        %719 = vmatpush.msra.mxu0 %v589
        %720 = vmatpush.msra.mxu0 %v585
        %721 = vmatpush.msra.mxu0 %v581
        %722 = vmatpush.msra.mxu0 %v577
        %723 = vmatmul.f32.gmra.mxu0 %v638
        %v724 = vpop.f32.mrf.mxu0
        %v725 = vadd.f32 0.0, %v724
        %726 = vdwg.mxu0
        %v727 = vadd.f32 %v643, %v665
        %v728 = vadd.f32 %v644, %v685
        %v729 = vadd.f32 %v645, %v705
        %v730 = vadd.f32 %v646, %v725
        %v731 = vxor.u32 %v727, 2147483648
        %v732 = vxor.u32 %v728, 2147483648
        %v733 = vxor.u32 %v729, 2147483648
        %v734 = vmul.f32 %v731, 1.442695
        %v735 = vpow.pop %v734
        %v736 = vmul.f32 %v732, 1.442695
        %v737 = vpow.pop %v736
        %v738 = vmul.f32 %v733, 1.442695
        %v739 = vpow.pop %v738
        %v740 = vadd.f32 %v735, 1.0
        %v741 = vadd.f32 %v737, 1.0
        %v742 = vadd.f32 %v739, 1.0
        %v743 = vrcp.pop %v740
        %v744 = vmul.f32 %v740, %v743
        %v745 = vsub.f32 1.0, %v744
        %v746 = vmul.f32 %v743, %v745
        %v747 = vadd.f32 %v743, %v746
        %vm748 = vweird.f32 %v740
        %vm749 = vweird.f32 %v743
        %vm750 = vmor %vm748, %vm749
        %v751 = vsel %vm750, %v743, %v747
        %v752 = vand.u32 2147483647, %v740
        %vm753 = vcmp.eq.f32.partialorder %v752, 8.507059e+37
        %v754 = vand.u32 %v740, 2147483648
        %v755 = vor.u32 1.1754944e-38, %v754
        %v756 = vsel %vm753, %v755, %v751
        %v757 = vmul.f32 1.0, %v756
        %v758 = vrcp.pop %v741
        %v759 = vmul.f32 %v741, %v758
        %v760 = vsub.f32 1.0, %v759
        %v761 = vmul.f32 %v758, %v760
        %v762 = vadd.f32 %v758, %v761
        %vm763 = vweird.f32 %v741
        %vm764 = vweird.f32 %v758
        %vm765 = vmor %vm763, %vm764
        %v766 = vsel %vm765, %v758, %v762
        %v767 = vand.u32 2147483647, %v741
        %vm768 = vcmp.eq.f32.partialorder %v767, 8.507059e+37
        %v769 = vand.u32 %v741, 2147483648
        %v770 = vor.u32 1.1754944e-38, %v769
        %v771 = vsel %vm768, %v770, %v766
        %v772 = vmul.f32 1.0, %v771
        %v773 = vrcp.pop %v742
        %v774 = vmul.f32 %v742, %v773
        %v775 = vsub.f32 1.0, %v774
        %v776 = vmul.f32 %v773, %v775
        %v777 = vadd.f32 %v773, %v776
        %vm778 = vweird.f32 %v742
        %vm779 = vweird.f32 %v773
        %vm780 = vmor %vm778, %vm779
        %v781 = vsel %vm780, %v773, %v777
        %v782 = vand.u32 2147483647, %v742
        %vm783 = vcmp.eq.f32.partialorder %v782, 8.507059e+37
        %v784 = vand.u32 %v742, 2147483648
        %v785 = vor.u32 1.1754944e-38, %v784
        %v786 = vsel %vm783, %v785, %v781
        %v787 = vmul.f32 1.0, %v786
        %v788 = vtanh.pop %v730
        %v789 = vmul.f32 %v772, %v639
        %v790 = vmul.f32 %v757, %v788
        %v791 = vadd.f32 %v789, %v790
        %v792 = vtanh.pop %v791
        %v793 = vmul.f32 %v787, %v792
        %v794 = vstv %s363
        %vm795 = vcmp.gt.s32.totalorder %v362, %v794
        %v796 = vsel %vm795, %v793, %v638
        %v797 = vsel %vm795, %v791, %v639
        %v798 = vsel %vm795, %v793, 0.0
        %799 = vst [vmem:[#allocation4] sm:$0xff] %v798
        %s800 = smul.u32 1, 4
        %s801 = smul.addr %s800, 8
        %s802 = scalar_lea.vmem [#allocation5], %s801
        %v803 = vld [vmem:[%s802] sm:$0xff]
        %v804 = vld [vmem:[%s802 + $0x8] sm:$0xff]
        %v805 = vld [vmem:[%s802 + $0x10] sm:$0xff]
        %v806 = vld [vmem:[%s802 + $0x18] sm:$0xff]
        %807 = vmatpush.msra.mxu0 %v634
        %808 = vmatpush.msra.mxu0 %v630
        %809 = vmatpush.msra.mxu0 %v626
        %810 = vmatpush.msra.mxu0 %v622
        %811 = vmatpush.msra.mxu0 %v618
        %812 = vmatpush.msra.mxu0 %v614
        %813 = vmatpush.msra.mxu0 %v610
        %814 = vmatpush.msra.mxu0 %v606
        %815 = vmatpush.msra.mxu0 %v602
        %816 = vmatpush.msra.mxu0 %v598
        %817 = vmatpush.msra.mxu0 %v594
        %818 = vmatpush.msra.mxu0 %v590
        %819 = vmatpush.msra.mxu0 %v586
        %820 = vmatpush.msra.mxu0 %v582
        %821 = vmatpush.msra.mxu0 %v578
        %822 = vmatpush.msra.mxu0 %v574
        %823 = vmatmul.f32.gmra.mxu0 %v796
        %v824 = vpop.f32.mrf.mxu0
        %v825 = vadd.f32 0.0, %v824
        %826 = vdwg.mxu0
        %827 = vmatpush.msra.mxu0 %v635
        %828 = vmatpush.msra.mxu0 %v631
        %829 = vmatpush.msra.mxu0 %v627
        %830 = vmatpush.msra.mxu0 %v623
        %831 = vmatpush.msra.mxu0 %v619
        %832 = vmatpush.msra.mxu0 %v615
        %833 = vmatpush.msra.mxu0 %v611
        %834 = vmatpush.msra.mxu0 %v607
        %835 = vmatpush.msra.mxu0 %v603
        %836 = vmatpush.msra.mxu0 %v599
        %837 = vmatpush.msra.mxu0 %v595
        %838 = vmatpush.msra.mxu0 %v591
        %839 = vmatpush.msra.mxu0 %v587
        %840 = vmatpush.msra.mxu0 %v583
        %841 = vmatpush.msra.mxu0 %v579
        %842 = vmatpush.msra.mxu0 %v575
        %843 = vmatmul.f32.gmra.mxu0 %v796
        %v844 = vpop.f32.mrf.mxu0
        %v845 = vadd.f32 0.0, %v844
        %846 = vdwg.mxu0
        %847 = vmatpush.msra.mxu0 %v636
        %848 = vmatpush.msra.mxu0 %v632
        %849 = vmatpush.msra.mxu0 %v628
        %850 = vmatpush.msra.mxu0 %v624
        %851 = vmatpush.msra.mxu0 %v620
        %852 = vmatpush.msra.mxu0 %v616
        %853 = vmatpush.msra.mxu0 %v612
        %854 = vmatpush.msra.mxu0 %v608
        %855 = vmatpush.msra.mxu0 %v604
        %856 = vmatpush.msra.mxu0 %v600
        %857 = vmatpush.msra.mxu0 %v596
        %858 = vmatpush.msra.mxu0 %v592
        %859 = vmatpush.msra.mxu0 %v588
        %860 = vmatpush.msra.mxu0 %v584
        %861 = vmatpush.msra.mxu0 %v580
        %862 = vmatpush.msra.mxu0 %v576
        %863 = vmatmul.f32.gmra.mxu0 %v796
        %v864 = vpop.f32.mrf.mxu0
        %v865 = vadd.f32 0.0, %v864
        %866 = vdwg.mxu0
        %867 = vmatpush.msra.mxu0 %v637
        %868 = vmatpush.msra.mxu0 %v633
        %869 = vmatpush.msra.mxu0 %v629
        %870 = vmatpush.msra.mxu0 %v625
        %871 = vmatpush.msra.mxu0 %v621
        %872 = vmatpush.msra.mxu0 %v617
        %873 = vmatpush.msra.mxu0 %v613
        %874 = vmatpush.msra.mxu0 %v609
        %875 = vmatpush.msra.mxu0 %v605
        %876 = vmatpush.msra.mxu0 %v601
        %877 = vmatpush.msra.mxu0 %v597
        %878 = vmatpush.msra.mxu0 %v593
        %879 = vmatpush.msra.mxu0 %v589
        %880 = vmatpush.msra.mxu0 %v585
        %881 = vmatpush.msra.mxu0 %v581
        %882 = vmatpush.msra.mxu0 %v577
        %883 = vmatmul.f32.gmra.mxu0 %v796
        %v884 = vpop.f32.mrf.mxu0
        %v885 = vadd.f32 0.0, %v884
        %886 = vdwg.mxu0
        %v887 = vadd.f32 %v803, %v825
        %v888 = vadd.f32 %v804, %v845
        %v889 = vadd.f32 %v805, %v865
        %v890 = vadd.f32 %v806, %v885
        %v891 = vxor.u32 %v887, 2147483648
        %v892 = vxor.u32 %v888, 2147483648
        %v893 = vxor.u32 %v889, 2147483648
        %v894 = vmul.f32 %v891, 1.442695
        %v895 = vpow.pop %v894
        %v896 = vmul.f32 %v892, 1.442695
        %v897 = vpow.pop %v896
        %v898 = vmul.f32 %v893, 1.442695
        %v899 = vpow.pop %v898
        %v900 = vadd.f32 %v895, 1.0
        %v901 = vadd.f32 %v897, 1.0
        %v902 = vadd.f32 %v899, 1.0
        %v903 = vrcp.pop %v900
        %v904 = vmul.f32 %v900, %v903
        %v905 = vsub.f32 1.0, %v904
        %v906 = vmul.f32 %v903, %v905
        %v907 = vadd.f32 %v903, %v906
        %vm908 = vweird.f32 %v900
        %vm909 = vweird.f32 %v903
        %vm910 = vmor %vm908, %vm909
        %v911 = vsel %vm910, %v903, %v907
        %v912 = vand.u32 2147483647, %v900
        %vm913 = vcmp.eq.f32.partialorder %v912, 8.507059e+37
        %v914 = vand.u32 %v900, 2147483648
        %v915 = vor.u32 1.1754944e-38, %v914
        %v916 = vsel %vm913, %v915, %v911
        %v917 = vmul.f32 1.0, %v916
        %v918 = vrcp.pop %v901
        %v919 = vmul.f32 %v901, %v918
        %v920 = vsub.f32 1.0, %v919
        %v921 = vmul.f32 %v918, %v920
        %v922 = vadd.f32 %v918, %v921
        %vm923 = vweird.f32 %v901
        %vm924 = vweird.f32 %v918
        %vm925 = vmor %vm923, %vm924
        %v926 = vsel %vm925, %v918, %v922
        %v927 = vand.u32 2147483647, %v901
        %vm928 = vcmp.eq.f32.partialorder %v927, 8.507059e+37
        %v929 = vand.u32 %v901, 2147483648
        %v930 = vor.u32 1.1754944e-38, %v929
        %v931 = vsel %vm928, %v930, %v926
        %v932 = vmul.f32 1.0, %v931
        %v933 = vrcp.pop %v902
        %v934 = vmul.f32 %v902, %v933
        %v935 = vsub.f32 1.0, %v934
        %v936 = vmul.f32 %v933, %v935
        %v937 = vadd.f32 %v933, %v936
        %vm938 = vweird.f32 %v902
        %vm939 = vweird.f32 %v933
        %vm940 = vmor %vm938, %vm939
        %v941 = vsel %vm940, %v933, %v937
        %v942 = vand.u32 2147483647, %v902
        %vm943 = vcmp.eq.f32.partialorder %v942, 8.507059e+37
        %v944 = vand.u32 %v902, 2147483648
        %v945 = vor.u32 1.1754944e-38, %v944
        %v946 = vsel %vm943, %v945, %v941
        %v947 = vmul.f32 1.0, %v946
        %v948 = vtanh.pop %v890
        %v949 = vmul.f32 %v932, %v797
        %v950 = vmul.f32 %v917, %v948
        %v951 = vadd.f32 %v949, %v950
        %v952 = vtanh.pop %v951
        %v953 = vmul.f32 %v947, %v952
        %s954 = sadd.s32 %s363, 1
        %v955 = vstv %s954
        %vm956 = vcmp.gt.s32.totalorder %v362, %v955
        %v957 = vsel %vm956, %v953, %v796
        %v958 = vsel %vm956, %v951, %v797
        %v959 = vsel %vm956, %v953, 0.0
        %s960 = scalar_lea.vmem [#allocation4], 8
        %961 = vst [vmem:[%s960] sm:$0xff] %v959
        %s962 = smul.u32 2, 4
        %s963 = smul.addr %s962, 8
        %s964 = scalar_lea.vmem [#allocation5], %s963
        %v965 = vld [vmem:[%s964] sm:$0xff]
        %v966 = vld [vmem:[%s964 + $0x8] sm:$0xff]
        %v967 = vld [vmem:[%s964 + $0x10] sm:$0xff]
        %v968 = vld [vmem:[%s964 + $0x18] sm:$0xff]
        %969 = vmatpush.msra.mxu0 %v634
        %970 = vmatpush.msra.mxu0 %v630
        %971 = vmatpush.msra.mxu0 %v626
        %972 = vmatpush.msra.mxu0 %v622
        %973 = vmatpush.msra.mxu0 %v618
        %974 = vmatpush.msra.mxu0 %v614
        %975 = vmatpush.msra.mxu0 %v610
        %976 = vmatpush.msra.mxu0 %v606
        %977 = vmatpush.msra.mxu0 %v602
        %978 = vmatpush.msra.mxu0 %v598
        %979 = vmatpush.msra.mxu0 %v594
        %980 = vmatpush.msra.mxu0 %v590
        %981 = vmatpush.msra.mxu0 %v586
        %982 = vmatpush.msra.mxu0 %v582
        %983 = vmatpush.msra.mxu0 %v578
        %984 = vmatpush.msra.mxu0 %v574
        %985 = vmatmul.f32.gmra.mxu0 %v957
        %v986 = vpop.f32.mrf.mxu0
        %v987 = vadd.f32 0.0, %v986
        %988 = vdwg.mxu0
        %989 = vmatpush.msra.mxu0 %v635
        %990 = vmatpush.msra.mxu0 %v631
        %991 = vmatpush.msra.mxu0 %v627
        %992 = vmatpush.msra.mxu0 %v623
        %993 = vmatpush.msra.mxu0 %v619
        %994 = vmatpush.msra.mxu0 %v615
        %995 = vmatpush.msra.mxu0 %v611
        %996 = vmatpush.msra.mxu0 %v607
        %997 = vmatpush.msra.mxu0 %v603
        %998 = vmatpush.msra.mxu0 %v599
        %999 = vmatpush.msra.mxu0 %v595
        %1000 = vmatpush.msra.mxu0 %v591
        %1001 = vmatpush.msra.mxu0 %v587
        %1002 = vmatpush.msra.mxu0 %v583
        %1003 = vmatpush.msra.mxu0 %v579
        %1004 = vmatpush.msra.mxu0 %v575
        %1005 = vmatmul.f32.gmra.mxu0 %v957
        %v1006 = vpop.f32.mrf.mxu0
        %v1007 = vadd.f32 0.0, %v1006
        %1008 = vdwg.mxu0
        %1009 = vmatpush.msra.mxu0 %v636
        %1010 = vmatpush.msra.mxu0 %v632
        %1011 = vmatpush.msra.mxu0 %v628
        %1012 = vmatpush.msra.mxu0 %v624
        %1013 = vmatpush.msra.mxu0 %v620
        %1014 = vmatpush.msra.mxu0 %v616
        %1015 = vmatpush.msra.mxu0 %v612
        %1016 = vmatpush.msra.mxu0 %v608
        %1017 = vmatpush.msra.mxu0 %v604
        %1018 = vmatpush.msra.mxu0 %v600
        %1019 = vmatpush.msra.mxu0 %v596
        %1020 = vmatpush.msra.mxu0 %v592
        %1021 = vmatpush.msra.mxu0 %v588
        %1022 = vmatpush.msra.mxu0 %v584
        %1023 = vmatpush.msra.mxu0 %v580
        %1024 = vmatpush.msra.mxu0 %v576
        %1025 = vmatmul.f32.gmra.mxu0 %v957
        %v1026 = vpop.f32.mrf.mxu0
        %v1027 = vadd.f32 0.0, %v1026
        %1028 = vdwg.mxu0
        %1029 = vmatpush.msra.mxu0 %v637
        %1030 = vmatpush.msra.mxu0 %v633
        %1031 = vmatpush.msra.mxu0 %v629
        %1032 = vmatpush.msra.mxu0 %v625
        %1033 = vmatpush.msra.mxu0 %v621
        %1034 = vmatpush.msra.mxu0 %v617
        %1035 = vmatpush.msra.mxu0 %v613
        %1036 = vmatpush.msra.mxu0 %v609
        %1037 = vmatpush.msra.mxu0 %v605
        %1038 = vmatpush.msra.mxu0 %v601
        %1039 = vmatpush.msra.mxu0 %v597
        %1040 = vmatpush.msra.mxu0 %v593
        %1041 = vmatpush.msra.mxu0 %v589
        %1042 = vmatpush.msra.mxu0 %v585
        %1043 = vmatpush.msra.mxu0 %v581
        %1044 = vmatpush.msra.mxu0 %v577
        %1045 = vmatmul.f32.gmra.mxu0 %v957
        %v1046 = vpop.f32.mrf.mxu0
        %v1047 = vadd.f32 0.0, %v1046
        %1048 = vdwg.mxu0
        %v1049 = vadd.f32 %v965, %v987
        %v1050 = vadd.f32 %v966, %v1007
        %v1051 = vadd.f32 %v967, %v1027
        %v1052 = vadd.f32 %v968, %v1047
        %v1053 = vxor.u32 %v1049, 2147483648
        %v1054 = vxor.u32 %v1050, 2147483648
        %v1055 = vxor.u32 %v1051, 2147483648
        %v1056 = vmul.f32 %v1053, 1.442695
        %v1057 = vpow.pop %v1056
        %v1058 = vmul.f32 %v1054, 1.442695
        %v1059 = vpow.pop %v1058
        %v1060 = vmul.f32 %v1055, 1.442695
        %v1061 = vpow.pop %v1060
        %v1062 = vadd.f32 %v1057, 1.0
        %v1063 = vadd.f32 %v1059, 1.0
        %v1064 = vadd.f32 %v1061, 1.0
        %v1065 = vrcp.pop %v1062
        %v1066 = vmul.f32 %v1062, %v1065
        %v1067 = vsub.f32 1.0, %v1066
        %v1068 = vmul.f32 %v1065, %v1067
        %v1069 = vadd.f32 %v1065, %v1068
        %vm1070 = vweird.f32 %v1062
        %vm1071 = vweird.f32 %v1065
        %vm1072 = vmor %vm1070, %vm1071
        %v1073 = vsel %vm1072, %v1065, %v1069
        %v1074 = vand.u32 2147483647, %v1062
        %vm1075 = vcmp.eq.f32.partialorder %v1074, 8.507059e+37
        %v1076 = vand.u32 %v1062, 2147483648
        %v1077 = vor.u32 1.1754944e-38, %v1076
        %v1078 = vsel %vm1075, %v1077, %v1073
        %v1079 = vmul.f32 1.0, %v1078
        %v1080 = vrcp.pop %v1063
        %v1081 = vmul.f32 %v1063, %v1080
        %v1082 = vsub.f32 1.0, %v1081
        %v1083 = vmul.f32 %v1080, %v1082
        %v1084 = vadd.f32 %v1080, %v1083
        %vm1085 = vweird.f32 %v1063
        %vm1086 = vweird.f32 %v1080
        %vm1087 = vmor %vm1085, %vm1086
        %v1088 = vsel %vm1087, %v1080, %v1084
        %v1089 = vand.u32 2147483647, %v1063
        %vm1090 = vcmp.eq.f32.partialorder %v1089, 8.507059e+37
        %v1091 = vand.u32 %v1063, 2147483648
        %v1092 = vor.u32 1.1754944e-38, %v1091
        %v1093 = vsel %vm1090, %v1092, %v1088
        %v1094 = vmul.f32 1.0, %v1093
        %v1095 = vrcp.pop %v1064
        %v1096 = vmul.f32 %v1064, %v1095
        %v1097 = vsub.f32 1.0, %v1096
        %v1098 = vmul.f32 %v1095, %v1097
        %v1099 = vadd.f32 %v1095, %v1098
        %vm1100 = vweird.f32 %v1064
        %vm1101 = vweird.f32 %v1095
        %vm1102 = vmor %vm1100, %vm1101
        %v1103 = vsel %vm1102, %v1095, %v1099
        %v1104 = vand.u32 2147483647, %v1064
        %vm1105 = vcmp.eq.f32.partialorder %v1104, 8.507059e+37
        %v1106 = vand.u32 %v1064, 2147483648
        %v1107 = vor.u32 1.1754944e-38, %v1106
        %v1108 = vsel %vm1105, %v1107, %v1103
        %v1109 = vmul.f32 1.0, %v1108
        %v1110 = vtanh.pop %v1052
        %v1111 = vmul.f32 %v1094, %v958
        %v1112 = vmul.f32 %v1079, %v1110
        %v1113 = vadd.f32 %v1111, %v1112
        %v1114 = vtanh.pop %v1113
        %v1115 = vmul.f32 %v1109, %v1114
        %s1116 = sadd.s32 %s363, 2
        %v1117 = vstv %s1116
        %vm1118 = vcmp.gt.s32.totalorder %v362, %v1117
        %v1119 = vsel %vm1118, %v1115, %v957
        %v1120 = vsel %vm1118, %v1113, %v958
        %v1121 = vsel %vm1118, %v1115, 0.0
        %s1122 = scalar_lea.vmem [#allocation4], 16
        %1123 = vst [vmem:[%s1122] sm:$0xff] %v1121
        %s1124 = smul.u32 3, 4
        %s1125 = smul.addr %s1124, 8
        %s1126 = scalar_lea.vmem [#allocation5], %s1125
        %v1127 = vld [vmem:[%s1126] sm:$0xff]
        %v1128 = vld [vmem:[%s1126 + $0x8] sm:$0xff]
        %v1129 = vld [vmem:[%s1126 + $0x10] sm:$0xff]
        %v1130 = vld [vmem:[%s1126 + $0x18] sm:$0xff]
        %1131 = vmatpush.msra.mxu0 %v634
        %1132 = vmatpush.msra.mxu0 %v630
        %1133 = vmatpush.msra.mxu0 %v626
        %1134 = vmatpush.msra.mxu0 %v622
        %1135 = vmatpush.msra.mxu0 %v618
        %1136 = vmatpush.msra.mxu0 %v614
        %1137 = vmatpush.msra.mxu0 %v610
        %1138 = vmatpush.msra.mxu0 %v606
        %1139 = vmatpush.msra.mxu0 %v602
        %1140 = vmatpush.msra.mxu0 %v598
        %1141 = vmatpush.msra.mxu0 %v594
        %1142 = vmatpush.msra.mxu0 %v590
        %1143 = vmatpush.msra.mxu0 %v586
        %1144 = vmatpush.msra.mxu0 %v582
        %1145 = vmatpush.msra.mxu0 %v578
        %1146 = vmatpush.msra.mxu0 %v574
        %1147 = vmatmul.f32.gmra.mxu0 %v1119
        %v1148 = vpop.f32.mrf.mxu0
        %v1149 = vadd.f32 0.0, %v1148
        %1150 = vdwg.mxu0
        %1151 = vmatpush.msra.mxu0 %v635
        %1152 = vmatpush.msra.mxu0 %v631
        %1153 = vmatpush.msra.mxu0 %v627
        %1154 = vmatpush.msra.mxu0 %v623
        %1155 = vmatpush.msra.mxu0 %v619
        %1156 = vmatpush.msra.mxu0 %v615
        %1157 = vmatpush.msra.mxu0 %v611
        %1158 = vmatpush.msra.mxu0 %v607
        %1159 = vmatpush.msra.mxu0 %v603
        %1160 = vmatpush.msra.mxu0 %v599
        %1161 = vmatpush.msra.mxu0 %v595
        %1162 = vmatpush.msra.mxu0 %v591
        %1163 = vmatpush.msra.mxu0 %v587
        %1164 = vmatpush.msra.mxu0 %v583
        %1165 = vmatpush.msra.mxu0 %v579
        %1166 = vmatpush.msra.mxu0 %v575
        %1167 = vmatmul.f32.gmra.mxu0 %v1119
        %v1168 = vpop.f32.mrf.mxu0
        %v1169 = vadd.f32 0.0, %v1168
        %1170 = vdwg.mxu0
        %1171 = vmatpush.msra.mxu0 %v636
        %1172 = vmatpush.msra.mxu0 %v632
        %1173 = vmatpush.msra.mxu0 %v628
        %1174 = vmatpush.msra.mxu0 %v624
        %1175 = vmatpush.msra.mxu0 %v620
        %1176 = vmatpush.msra.mxu0 %v616
        %1177 = vmatpush.msra.mxu0 %v612
        %1178 = vmatpush.msra.mxu0 %v608
        %1179 = vmatpush.msra.mxu0 %v604
        %1180 = vmatpush.msra.mxu0 %v600
        %1181 = vmatpush.msra.mxu0 %v596
        %1182 = vmatpush.msra.mxu0 %v592
        %1183 = vmatpush.msra.mxu0 %v588
        %1184 = vmatpush.msra.mxu0 %v584
        %1185 = vmatpush.msra.mxu0 %v580
        %1186 = vmatpush.msra.mxu0 %v576
        %1187 = vmatmul.f32.gmra.mxu0 %v1119
        %v1188 = vpop.f32.mrf.mxu0
        %v1189 = vadd.f32 0.0, %v1188
        %1190 = vdwg.mxu0
        %1191 = vmatpush.msra.mxu0 %v637
        %1192 = vmatpush.msra.mxu0 %v633
        %1193 = vmatpush.msra.mxu0 %v629
        %1194 = vmatpush.msra.mxu0 %v625
        %1195 = vmatpush.msra.mxu0 %v621
        %1196 = vmatpush.msra.mxu0 %v617
        %1197 = vmatpush.msra.mxu0 %v613
        %1198 = vmatpush.msra.mxu0 %v609
        %1199 = vmatpush.msra.mxu0 %v605
        %1200 = vmatpush.msra.mxu0 %v601
        %1201 = vmatpush.msra.mxu0 %v597
        %1202 = vmatpush.msra.mxu0 %v593
        %1203 = vmatpush.msra.mxu0 %v589
        %1204 = vmatpush.msra.mxu0 %v585
        %1205 = vmatpush.msra.mxu0 %v581
        %1206 = vmatpush.msra.mxu0 %v577
        %1207 = vmatmul.f32.gmra.mxu0 %v1119
        %v1208 = vpop.f32.mrf.mxu0
        %v1209 = vadd.f32 0.0, %v1208
        %1210 = vdwg.mxu0
        %v1211 = vadd.f32 %v1127, %v1149
        %v1212 = vadd.f32 %v1128, %v1169
        %v1213 = vadd.f32 %v1129, %v1189
        %v1214 = vadd.f32 %v1130, %v1209
        %v1215 = vxor.u32 %v1211, 2147483648
        %v1216 = vxor.u32 %v1212, 2147483648
        %v1217 = vxor.u32 %v1213, 2147483648
        %v1218 = vmul.f32 %v1215, 1.442695
        %v1219 = vpow.pop %v1218
        %v1220 = vmul.f32 %v1216, 1.442695
        %v1221 = vpow.pop %v1220
        %v1222 = vmul.f32 %v1217, 1.442695
        %v1223 = vpow.pop %v1222
        %v1224 = vadd.f32 %v1219, 1.0
        %v1225 = vadd.f32 %v1221, 1.0
        %v1226 = vadd.f32 %v1223, 1.0
        %v1227 = vrcp.pop %v1224
        %v1228 = vmul.f32 %v1224, %v1227
        %v1229 = vsub.f32 1.0, %v1228
        %v1230 = vmul.f32 %v1227, %v1229
        %v1231 = vadd.f32 %v1227, %v1230
        %vm1232 = vweird.f32 %v1224
        %vm1233 = vweird.f32 %v1227
        %vm1234 = vmor %vm1232, %vm1233
        %v1235 = vsel %vm1234, %v1227, %v1231
        %v1236 = vand.u32 2147483647, %v1224
        %vm1237 = vcmp.eq.f32.partialorder %v1236, 8.507059e+37
        %v1238 = vand.u32 %v1224, 2147483648
        %v1239 = vor.u32 1.1754944e-38, %v1238
        %v1240 = vsel %vm1237, %v1239, %v1235
        %v1241 = vmul.f32 1.0, %v1240
        %v1242 = vrcp.pop %v1225
        %v1243 = vmul.f32 %v1225, %v1242
        %v1244 = vsub.f32 1.0, %v1243
        %v1245 = vmul.f32 %v1242, %v1244
        %v1246 = vadd.f32 %v1242, %v1245
        %vm1247 = vweird.f32 %v1225
        %vm1248 = vweird.f32 %v1242
        %vm1249 = vmor %vm1247, %vm1248
        %v1250 = vsel %vm1249, %v1242, %v1246
        %v1251 = vand.u32 2147483647, %v1225
        %vm1252 = vcmp.eq.f32.partialorder %v1251, 8.507059e+37
        %v1253 = vand.u32 %v1225, 2147483648
        %v1254 = vor.u32 1.1754944e-38, %v1253
        %v1255 = vsel %vm1252, %v1254, %v1250
        %v1256 = vmul.f32 1.0, %v1255
        %v1257 = vrcp.pop %v1226
        %v1258 = vmul.f32 %v1226, %v1257
        %v1259 = vsub.f32 1.0, %v1258
        %v1260 = vmul.f32 %v1257, %v1259
        %v1261 = vadd.f32 %v1257, %v1260
        %vm1262 = vweird.f32 %v1226
        %vm1263 = vweird.f32 %v1257
        %vm1264 = vmor %vm1262, %vm1263
        %v1265 = vsel %vm1264, %v1257, %v1261
        %v1266 = vand.u32 2147483647, %v1226
        %vm1267 = vcmp.eq.f32.partialorder %v1266, 8.507059e+37
        %v1268 = vand.u32 %v1226, 2147483648
        %v1269 = vor.u32 1.1754944e-38, %v1268
        %v1270 = vsel %vm1267, %v1269, %v1265
        %v1271 = vmul.f32 1.0, %v1270
        %v1272 = vtanh.pop %v1214
        %v1273 = vmul.f32 %v1256, %v1120
        %v1274 = vmul.f32 %v1241, %v1272
        %v1275 = vadd.f32 %v1273, %v1274
        %v1276 = vtanh.pop %v1275
        %v1277 = vmul.f32 %v1271, %v1276
        %s1278 = sadd.s32 %s363, 3
        %v1279 = vstv %s1278
        %vm1280 = vcmp.gt.s32.totalorder %v362, %v1279
        %v1281 = vsel %vm1280, %v1277, %v1119
        %v1282 = vsel %vm1280, %v1275, %v1120
        %v1283 = vsel %vm1280, %v1277, 0.0
        %s1284 = scalar_lea.vmem [#allocation4], 24
        %1285 = vst [vmem:[%s1284] sm:$0xff] %v1283
        %1286 = vst [vmem:[#allocation2] sm:$0xff] %v1281
        %1287 = vst [vmem:[#allocation3] sm:$0xff] %v1282
        %v1288 = vld [vmem:[#allocation4] sm:$0xff]
        %v1289 = vld [vmem:[#allocation4 + $0x8] sm:$0xff]
        %v1290 = vld [vmem:[#allocation4 + $0x10] sm:$0xff]
        %v1291 = vld [vmem:[#allocation4 + $0x18] sm:$0xff]
        %s1292 = scalar_lea.vmem [#allocation9], 512
        %v1293 = vld [vmem:[%s1292] sm:$0xff]
        %v1294 = vld [vmem:[%s1292 + $0x8] sm:$0xff]
        %v1295 = vld [vmem:[%s1292 + $0x10] sm:$0xff]
        %v1296 = vld [vmem:[%s1292 + $0x18] sm:$0xff]
        %v1297 = vld [vmem:[%s1292 + $0x20] sm:$0xff]
        %v1298 = vld [vmem:[%s1292 + $0x28] sm:$0xff]
        %v1299 = vld [vmem:[%s1292 + $0x30] sm:$0xff]
        %v1300 = vld [vmem:[%s1292 + $0x38] sm:$0xff]
        %v1301 = vld [vmem:[%s1292 + $0x40] sm:$0xff]
        %v1302 = vld [vmem:[%s1292 + $0x48] sm:$0xff]
        %v1303 = vld [vmem:[%s1292 + $0x50] sm:$0xff]
        %v1304 = vld [vmem:[%s1292 + $0x58] sm:$0xff]
        %v1305 = vld [vmem:[%s1292 + $0x60] sm:$0xff]
        %v1306 = vld [vmem:[%s1292 + $0x68] sm:$0xff]
        %v1307 = vld [vmem:[%s1292 + $0x70] sm:$0xff]
        %v1308 = vld [vmem:[%s1292 + $0x78] sm:$0xff]
        %v1309 = vld [vmem:[%s1292 + $0x80] sm:$0xff]
        %v1310 = vld [vmem:[%s1292 + $0x88] sm:$0xff]
        %v1311 = vld [vmem:[%s1292 + $0x90] sm:$0xff]
        %v1312 = vld [vmem:[%s1292 + $0x98] sm:$0xff]
        %v1313 = vld [vmem:[%s1292 + $0xa0] sm:$0xff]
        %v1314 = vld [vmem:[%s1292 + $0xa8] sm:$0xff]
        %v1315 = vld [vmem:[%s1292 + $0xb0] sm:$0xff]
        %v1316 = vld [vmem:[%s1292 + $0xb8] sm:$0xff]
        %v1317 = vld [vmem:[%s1292 + $0xc0] sm:$0xff]
        %v1318 = vld [vmem:[%s1292 + $0xc8] sm:$0xff]
        %v1319 = vld [vmem:[%s1292 + $0xd0] sm:$0xff]
        %v1320 = vld [vmem:[%s1292 + $0xd8] sm:$0xff]
        %v1321 = vld [vmem:[%s1292 + $0xe0] sm:$0xff]
        %v1322 = vld [vmem:[%s1292 + $0xe8] sm:$0xff]
        %v1323 = vld [vmem:[%s1292 + $0xf0] sm:$0xff]
        %v1324 = vld [vmem:[%s1292 + $0xf8] sm:$0xff]
        %v1325 = vld [vmem:[%s1292 + $0x100] sm:$0xff]
        %v1326 = vld [vmem:[%s1292 + $0x108] sm:$0xff]
        %v1327 = vld [vmem:[%s1292 + $0x110] sm:$0xff]
        %v1328 = vld [vmem:[%s1292 + $0x118] sm:$0xff]
        %v1329 = vld [vmem:[%s1292 + $0x120] sm:$0xff]
        %v1330 = vld [vmem:[%s1292 + $0x128] sm:$0xff]
        %v1331 = vld [vmem:[%s1292 + $0x130] sm:$0xff]
        %v1332 = vld [vmem:[%s1292 + $0x138] sm:$0xff]
        %v1333 = vld [vmem:[%s1292 + $0x140] sm:$0xff]
        %v1334 = vld [vmem:[%s1292 + $0x148] sm:$0xff]
        %v1335 = vld [vmem:[%s1292 + $0x150] sm:$0xff]
        %v1336 = vld [vmem:[%s1292 + $0x158] sm:$0xff]
        %v1337 = vld [vmem:[%s1292 + $0x160] sm:$0xff]
        %v1338 = vld [vmem:[%s1292 + $0x168] sm:$0xff]
        %v1339 = vld [vmem:[%s1292 + $0x170] sm:$0xff]
        %v1340 = vld [vmem:[%s1292 + $0x178] sm:$0xff]
        %v1341 = vld [vmem:[%s1292 + $0x180] sm:$0xff]
        %v1342 = vld [vmem:[%s1292 + $0x188] sm:$0xff]
        %v1343 = vld [vmem:[%s1292 + $0x190] sm:$0xff]
        %v1344 = vld [vmem:[%s1292 + $0x198] sm:$0xff]
        %v1345 = vld [vmem:[%s1292 + $0x1a0] sm:$0xff]
        %v1346 = vld [vmem:[%s1292 + $0x1a8] sm:$0xff]
        %v1347 = vld [vmem:[%s1292 + $0x1b0] sm:$0xff]
        %v1348 = vld [vmem:[%s1292 + $0x1b8] sm:$0xff]
        %v1349 = vld [vmem:[%s1292 + $0x1c0] sm:$0xff]
        %v1350 = vld [vmem:[%s1292 + $0x1c8] sm:$0xff]
        %v1351 = vld [vmem:[%s1292 + $0x1d0] sm:$0xff]
        %v1352 = vld [vmem:[%s1292 + $0x1d8] sm:$0xff]
        %v1353 = vld [vmem:[%s1292 + $0x1e0] sm:$0xff]
        %v1354 = vld [vmem:[%s1292 + $0x1e8] sm:$0xff]
        %v1355 = vld [vmem:[%s1292 + $0x1f0] sm:$0xff]
        %v1356 = vld [vmem:[%s1292 + $0x1f8] sm:$0xff]
        %s1357 = scalar_lea.vmem %s4, 4
        %v1358 = vld [vmem:[%s1357] sm:$0xf]
        %v1360 = vperm.slane %v1358, 0
        %v1361 = vperm.slane %v1358, 1
        %v1362 = vperm.slane %v1358, 2
        %v1363 = vperm.slane %v1358, 3
        %1368 = vmatpush.msra.mxu0 %v1353
        %1369 = vmatpush.msra.mxu0 %v1349
        %1370 = vmatpush.msra.mxu0 %v1345
        %1371 = vmatpush.msra.mxu0 %v1341
        %1372 = vmatpush.msra.mxu0 %v1337
        %1373 = vmatpush.msra.mxu0 %v1333
        %1374 = vmatpush.msra.mxu0 %v1329
        %1375 = vmatpush.msra.mxu0 %v1325
        %1376 = vmatpush.msra.mxu0 %v1321
        %1377 = vmatpush.msra.mxu0 %v1317
        %1378 = vmatpush.msra.mxu0 %v1313
        %1379 = vmatpush.msra.mxu0 %v1309
        %1380 = vmatpush.msra.mxu0 %v1305
        %1381 = vmatpush.msra.mxu0 %v1301
        %1382 = vmatpush.msra.mxu0 %v1297
        %1383 = vmatpush.msra.mxu0 %v1293
        %1384 = vmatmul.f32.gmra.mxu0 %v1288
        %v1385 = vpop.f32.mrf.mxu0
        %v1386 = vadd.f32 %v1360, %v1385
        %1387 = vmatmul.f32.gmra.mxu0 %v1289
        %v1388 = vpop.f32.mrf.mxu0
        %v1389 = vadd.f32 %v1360, %v1388
        %1390 = vmatmul.f32.gmra.mxu0 %v1290
        %v1391 = vpop.f32.mrf.mxu0
        %v1392 = vadd.f32 %v1360, %v1391
        %1393 = vmatmul.f32.gmra.mxu0 %v1291
        %v1394 = vpop.f32.mrf.mxu0
        %v1395 = vadd.f32 %v1360, %v1394
        %1396 = vdwg.mxu0
        %1397 = vmatpush.msra.mxu0 %v1354
        %1398 = vmatpush.msra.mxu0 %v1350
        %1399 = vmatpush.msra.mxu0 %v1346
        %1400 = vmatpush.msra.mxu0 %v1342
        %1401 = vmatpush.msra.mxu0 %v1338
        %1402 = vmatpush.msra.mxu0 %v1334
        %1403 = vmatpush.msra.mxu0 %v1330
        %1404 = vmatpush.msra.mxu0 %v1326
        %1405 = vmatpush.msra.mxu0 %v1322
        %1406 = vmatpush.msra.mxu0 %v1318
        %1407 = vmatpush.msra.mxu0 %v1314
        %1408 = vmatpush.msra.mxu0 %v1310
        %1409 = vmatpush.msra.mxu0 %v1306
        %1410 = vmatpush.msra.mxu0 %v1302
        %1411 = vmatpush.msra.mxu0 %v1298
        %1412 = vmatpush.msra.mxu0 %v1294
        %1413 = vmatmul.f32.gmra.mxu0 %v1288
        %v1414 = vpop.f32.mrf.mxu0
        %v1415 = vadd.f32 %v1361, %v1414
        %1416 = vmatmul.f32.gmra.mxu0 %v1289
        %v1417 = vpop.f32.mrf.mxu0
        %v1418 = vadd.f32 %v1361, %v1417
        %1419 = vmatmul.f32.gmra.mxu0 %v1290
        %v1420 = vpop.f32.mrf.mxu0
        %v1421 = vadd.f32 %v1361, %v1420
        %1422 = vmatmul.f32.gmra.mxu0 %v1291
        %v1423 = vpop.f32.mrf.mxu0
        %v1424 = vadd.f32 %v1361, %v1423
        %1425 = vdwg.mxu0
        %1426 = vmatpush.msra.mxu0 %v1355
        %1427 = vmatpush.msra.mxu0 %v1351
        %1428 = vmatpush.msra.mxu0 %v1347
        %1429 = vmatpush.msra.mxu0 %v1343
        %1430 = vmatpush.msra.mxu0 %v1339
        %1431 = vmatpush.msra.mxu0 %v1335
        %1432 = vmatpush.msra.mxu0 %v1331
        %1433 = vmatpush.msra.mxu0 %v1327
        %1434 = vmatpush.msra.mxu0 %v1323
        %1435 = vmatpush.msra.mxu0 %v1319
        %1436 = vmatpush.msra.mxu0 %v1315
        %1437 = vmatpush.msra.mxu0 %v1311
        %1438 = vmatpush.msra.mxu0 %v1307
        %1439 = vmatpush.msra.mxu0 %v1303
        %1440 = vmatpush.msra.mxu0 %v1299
        %1441 = vmatpush.msra.mxu0 %v1295
        %1442 = vmatmul.f32.gmra.mxu0 %v1288
        %v1443 = vpop.f32.mrf.mxu0
        %v1444 = vadd.f32 %v1362, %v1443
        %1445 = vmatmul.f32.gmra.mxu0 %v1289
        %v1446 = vpop.f32.mrf.mxu0
        %v1447 = vadd.f32 %v1362, %v1446
        %1448 = vmatmul.f32.gmra.mxu0 %v1290
        %v1449 = vpop.f32.mrf.mxu0
        %v1450 = vadd.f32 %v1362, %v1449
        %1451 = vmatmul.f32.gmra.mxu0 %v1291
        %v1452 = vpop.f32.mrf.mxu0
        %v1453 = vadd.f32 %v1362, %v1452
        %1454 = vdwg.mxu0
        %1455 = vmatpush.msra.mxu0 %v1356
        %1456 = vmatpush.msra.mxu0 %v1352
        %1457 = vmatpush.msra.mxu0 %v1348
        %1458 = vmatpush.msra.mxu0 %v1344
        %1459 = vmatpush.msra.mxu0 %v1340
        %1460 = vmatpush.msra.mxu0 %v1336
        %1461 = vmatpush.msra.mxu0 %v1332
        %1462 = vmatpush.msra.mxu0 %v1328
        %1463 = vmatpush.msra.mxu0 %v1324
        %1464 = vmatpush.msra.mxu0 %v1320
        %1465 = vmatpush.msra.mxu0 %v1316
        %1466 = vmatpush.msra.mxu0 %v1312
        %1467 = vmatpush.msra.mxu0 %v1308
        %1468 = vmatpush.msra.mxu0 %v1304
        %1469 = vmatpush.msra.mxu0 %v1300
        %1470 = vmatpush.msra.mxu0 %v1296
        %1471 = vmatmul.f32.gmra.mxu0 %v1288
        %v1472 = vpop.f32.mrf.mxu0
        %v1473 = vadd.f32 %v1363, %v1472
        %1474 = vmatmul.f32.gmra.mxu0 %v1289
        %v1475 = vpop.f32.mrf.mxu0
        %v1476 = vadd.f32 %v1363, %v1475
        %1477 = vmatmul.f32.gmra.mxu0 %v1290
        %v1478 = vpop.f32.mrf.mxu0
        %v1479 = vadd.f32 %v1363, %v1478
        %1480 = vmatmul.f32.gmra.mxu0 %v1291
        %v1481 = vpop.f32.mrf.mxu0
        %v1482 = vadd.f32 %v1363, %v1481
        %1483 = vdwg.mxu0
        %1484 = vst [vmem:[#allocation5] sm:$0xff] %v1386
        %1485 = vst [vmem:[#allocation5 + $0x8] sm:$0xff] %v1415
        %1486 = vst [vmem:[#allocation5 + $0x10] sm:$0xff] %v1444
        %1487 = vst [vmem:[#allocation5 + $0x18] sm:$0xff] %v1473
        %1488 = vst [vmem:[#allocation5 + $0x20] sm:$0xff] %v1389
        %1489 = vst [vmem:[#allocation5 + $0x28] sm:$0xff] %v1418
        %1490 = vst [vmem:[#allocation5 + $0x30] sm:$0xff] %v1447
        %1491 = vst [vmem:[#allocation5 + $0x38] sm:$0xff] %v1476
        %1492 = vst [vmem:[#allocation5 + $0x40] sm:$0xff] %v1392
        %1493 = vst [vmem:[#allocation5 + $0x48] sm:$0xff] %v1421
        %1494 = vst [vmem:[#allocation5 + $0x50] sm:$0xff] %v1450
        %1495 = vst [vmem:[#allocation5 + $0x58] sm:$0xff] %v1479
        %1496 = vst [vmem:[#allocation5 + $0x60] sm:$0xff] %v1395
        %1497 = vst [vmem:[#allocation5 + $0x68] sm:$0xff] %v1424
        %1498 = vst [vmem:[#allocation5 + $0x70] sm:$0xff] %v1453
        %1499 = vst [vmem:[#allocation5 + $0x78] sm:$0xff] %v1482
        %s1500 = scalar_lea.vmem [#allocation11], 512
        %v1501 = vld [vmem:[%s1500] sm:$0xff]
        %v1502 = vld [vmem:[%s1500 + $0x8] sm:$0xff]
        %v1503 = vld [vmem:[%s1500 + $0x10] sm:$0xff]
        %v1504 = vld [vmem:[%s1500 + $0x18] sm:$0xff]
        %v1505 = vld [vmem:[%s1500 + $0x20] sm:$0xff]
        %v1506 = vld [vmem:[%s1500 + $0x28] sm:$0xff]
        %v1507 = vld [vmem:[%s1500 + $0x30] sm:$0xff]
        %v1508 = vld [vmem:[%s1500 + $0x38] sm:$0xff]
        %v1509 = vld [vmem:[%s1500 + $0x40] sm:$0xff]
        %v1510 = vld [vmem:[%s1500 + $0x48] sm:$0xff]
        %v1511 = vld [vmem:[%s1500 + $0x50] sm:$0xff]
        %v1512 = vld [vmem:[%s1500 + $0x58] sm:$0xff]
        %v1513 = vld [vmem:[%s1500 + $0x60] sm:$0xff]
        %v1514 = vld [vmem:[%s1500 + $0x68] sm:$0xff]
        %v1515 = vld [vmem:[%s1500 + $0x70] sm:$0xff]
        %v1516 = vld [vmem:[%s1500 + $0x78] sm:$0xff]
        %v1517 = vld [vmem:[%s1500 + $0x80] sm:$0xff]
        %v1518 = vld [vmem:[%s1500 + $0x88] sm:$0xff]
        %v1519 = vld [vmem:[%s1500 + $0x90] sm:$0xff]
        %v1520 = vld [vmem:[%s1500 + $0x98] sm:$0xff]
        %v1521 = vld [vmem:[%s1500 + $0xa0] sm:$0xff]
        %v1522 = vld [vmem:[%s1500 + $0xa8] sm:$0xff]
        %v1523 = vld [vmem:[%s1500 + $0xb0] sm:$0xff]
        %v1524 = vld [vmem:[%s1500 + $0xb8] sm:$0xff]
        %v1525 = vld [vmem:[%s1500 + $0xc0] sm:$0xff]
        %v1526 = vld [vmem:[%s1500 + $0xc8] sm:$0xff]
        %v1527 = vld [vmem:[%s1500 + $0xd0] sm:$0xff]
        %v1528 = vld [vmem:[%s1500 + $0xd8] sm:$0xff]
        %v1529 = vld [vmem:[%s1500 + $0xe0] sm:$0xff]
        %v1530 = vld [vmem:[%s1500 + $0xe8] sm:$0xff]
        %v1531 = vld [vmem:[%s1500 + $0xf0] sm:$0xff]
        %v1532 = vld [vmem:[%s1500 + $0xf8] sm:$0xff]
        %v1533 = vld [vmem:[%s1500 + $0x100] sm:$0xff]
        %v1534 = vld [vmem:[%s1500 + $0x108] sm:$0xff]
        %v1535 = vld [vmem:[%s1500 + $0x110] sm:$0xff]
        %v1536 = vld [vmem:[%s1500 + $0x118] sm:$0xff]
        %v1537 = vld [vmem:[%s1500 + $0x120] sm:$0xff]
        %v1538 = vld [vmem:[%s1500 + $0x128] sm:$0xff]
        %v1539 = vld [vmem:[%s1500 + $0x130] sm:$0xff]
        %v1540 = vld [vmem:[%s1500 + $0x138] sm:$0xff]
        %v1541 = vld [vmem:[%s1500 + $0x140] sm:$0xff]
        %v1542 = vld [vmem:[%s1500 + $0x148] sm:$0xff]
        %v1543 = vld [vmem:[%s1500 + $0x150] sm:$0xff]
        %v1544 = vld [vmem:[%s1500 + $0x158] sm:$0xff]
        %v1545 = vld [vmem:[%s1500 + $0x160] sm:$0xff]
        %v1546 = vld [vmem:[%s1500 + $0x168] sm:$0xff]
        %v1547 = vld [vmem:[%s1500 + $0x170] sm:$0xff]
        %v1548 = vld [vmem:[%s1500 + $0x178] sm:$0xff]
        %v1549 = vld [vmem:[%s1500 + $0x180] sm:$0xff]
        %v1550 = vld [vmem:[%s1500 + $0x188] sm:$0xff]
        %v1551 = vld [vmem:[%s1500 + $0x190] sm:$0xff]
        %v1552 = vld [vmem:[%s1500 + $0x198] sm:$0xff]
        %v1553 = vld [vmem:[%s1500 + $0x1a0] sm:$0xff]
        %v1554 = vld [vmem:[%s1500 + $0x1a8] sm:$0xff]
        %v1555 = vld [vmem:[%s1500 + $0x1b0] sm:$0xff]
        %v1556 = vld [vmem:[%s1500 + $0x1b8] sm:$0xff]
        %v1557 = vld [vmem:[%s1500 + $0x1c0] sm:$0xff]
        %v1558 = vld [vmem:[%s1500 + $0x1c8] sm:$0xff]
        %v1559 = vld [vmem:[%s1500 + $0x1d0] sm:$0xff]
        %v1560 = vld [vmem:[%s1500 + $0x1d8] sm:$0xff]
        %v1561 = vld [vmem:[%s1500 + $0x1e0] sm:$0xff]
        %v1562 = vld [vmem:[%s1500 + $0x1e8] sm:$0xff]
        %v1563 = vld [vmem:[%s1500 + $0x1f0] sm:$0xff]
        %v1564 = vld [vmem:[%s1500 + $0x1f8] sm:$0xff]
        %s1565 = scalar_lea.vmem [#allocation2], 8
        %v1566 = vld [vmem:[%s1565] sm:$0xff]
        %s1567 = scalar_lea.vmem [#allocation3], 8
        %v1568 = vld [vmem:[%s1567] sm:$0xff]
        %v1569 = vld [vmem:[%s642] sm:$0xff]
        %v1570 = vld [vmem:[%s642 + $0x8] sm:$0xff]
        %v1571 = vld [vmem:[%s642 + $0x10] sm:$0xff]
        %v1572 = vld [vmem:[%s642 + $0x18] sm:$0xff]
        %1573 = vmatpush.msra.mxu0 %v1561
        %1574 = vmatpush.msra.mxu0 %v1557
        %1575 = vmatpush.msra.mxu0 %v1553
        %1576 = vmatpush.msra.mxu0 %v1549
        %1577 = vmatpush.msra.mxu0 %v1545
        %1578 = vmatpush.msra.mxu0 %v1541
        %1579 = vmatpush.msra.mxu0 %v1537
        %1580 = vmatpush.msra.mxu0 %v1533
        %1581 = vmatpush.msra.mxu0 %v1529
        %1582 = vmatpush.msra.mxu0 %v1525
        %1583 = vmatpush.msra.mxu0 %v1521
        %1584 = vmatpush.msra.mxu0 %v1517
        %1585 = vmatpush.msra.mxu0 %v1513
        %1586 = vmatpush.msra.mxu0 %v1509
        %1587 = vmatpush.msra.mxu0 %v1505
        %1588 = vmatpush.msra.mxu0 %v1501
        %1589 = vmatmul.f32.gmra.mxu0 %v1566
        %v1590 = vpop.f32.mrf.mxu0
        %v1591 = vadd.f32 0.0, %v1590
        %1592 = vdwg.mxu0
        %1593 = vmatpush.msra.mxu0 %v1562
        %1594 = vmatpush.msra.mxu0 %v1558
        %1595 = vmatpush.msra.mxu0 %v1554
        %1596 = vmatpush.msra.mxu0 %v1550
        %1597 = vmatpush.msra.mxu0 %v1546
        %1598 = vmatpush.msra.mxu0 %v1542
        %1599 = vmatpush.msra.mxu0 %v1538
        %1600 = vmatpush.msra.mxu0 %v1534
        %1601 = vmatpush.msra.mxu0 %v1530
        %1602 = vmatpush.msra.mxu0 %v1526
        %1603 = vmatpush.msra.mxu0 %v1522
        %1604 = vmatpush.msra.mxu0 %v1518
        %1605 = vmatpush.msra.mxu0 %v1514
        %1606 = vmatpush.msra.mxu0 %v1510
        %1607 = vmatpush.msra.mxu0 %v1506
        %1608 = vmatpush.msra.mxu0 %v1502
        %1609 = vmatmul.f32.gmra.mxu0 %v1566
        %v1610 = vpop.f32.mrf.mxu0
        %v1611 = vadd.f32 0.0, %v1610
        %1612 = vdwg.mxu0
        %1613 = vmatpush.msra.mxu0 %v1563
        %1614 = vmatpush.msra.mxu0 %v1559
        %1615 = vmatpush.msra.mxu0 %v1555
        %1616 = vmatpush.msra.mxu0 %v1551
        %1617 = vmatpush.msra.mxu0 %v1547
        %1618 = vmatpush.msra.mxu0 %v1543
        %1619 = vmatpush.msra.mxu0 %v1539
        %1620 = vmatpush.msra.mxu0 %v1535
        %1621 = vmatpush.msra.mxu0 %v1531
        %1622 = vmatpush.msra.mxu0 %v1527
        %1623 = vmatpush.msra.mxu0 %v1523
        %1624 = vmatpush.msra.mxu0 %v1519
        %1625 = vmatpush.msra.mxu0 %v1515
        %1626 = vmatpush.msra.mxu0 %v1511
        %1627 = vmatpush.msra.mxu0 %v1507
        %1628 = vmatpush.msra.mxu0 %v1503
        %1629 = vmatmul.f32.gmra.mxu0 %v1566
        %v1630 = vpop.f32.mrf.mxu0
        %v1631 = vadd.f32 0.0, %v1630
        %1632 = vdwg.mxu0
        %1633 = vmatpush.msra.mxu0 %v1564
        %1634 = vmatpush.msra.mxu0 %v1560
        %1635 = vmatpush.msra.mxu0 %v1556
        %1636 = vmatpush.msra.mxu0 %v1552
        %1637 = vmatpush.msra.mxu0 %v1548
        %1638 = vmatpush.msra.mxu0 %v1544
        %1639 = vmatpush.msra.mxu0 %v1540
        %1640 = vmatpush.msra.mxu0 %v1536
        %1641 = vmatpush.msra.mxu0 %v1532
        %1642 = vmatpush.msra.mxu0 %v1528
        %1643 = vmatpush.msra.mxu0 %v1524
        %1644 = vmatpush.msra.mxu0 %v1520
        %1645 = vmatpush.msra.mxu0 %v1516
        %1646 = vmatpush.msra.mxu0 %v1512
        %1647 = vmatpush.msra.mxu0 %v1508
        %1648 = vmatpush.msra.mxu0 %v1504
        %1649 = vmatmul.f32.gmra.mxu0 %v1566
        %v1650 = vpop.f32.mrf.mxu0
        %v1651 = vadd.f32 0.0, %v1650
        %1652 = vdwg.mxu0
        %v1653 = vadd.f32 %v1569, %v1591
        %v1654 = vadd.f32 %v1570, %v1611
        %v1655 = vadd.f32 %v1571, %v1631
        %v1656 = vadd.f32 %v1572, %v1651
        %v1657 = vxor.u32 %v1653, 2147483648
        %v1658 = vxor.u32 %v1654, 2147483648
        %v1659 = vxor.u32 %v1655, 2147483648
        %v1660 = vmul.f32 %v1657, 1.442695
        %v1661 = vpow.pop %v1660
        %v1662 = vmul.f32 %v1658, 1.442695
        %v1663 = vpow.pop %v1662
        %v1664 = vmul.f32 %v1659, 1.442695
        %v1665 = vpow.pop %v1664
        %v1666 = vadd.f32 %v1661, 1.0
        %v1667 = vadd.f32 %v1663, 1.0
        %v1668 = vadd.f32 %v1665, 1.0
        %v1669 = vrcp.pop %v1666
        %v1670 = vmul.f32 %v1666, %v1669
        %v1671 = vsub.f32 1.0, %v1670
        %v1672 = vmul.f32 %v1669, %v1671
        %v1673 = vadd.f32 %v1669, %v1672
        %vm1674 = vweird.f32 %v1666
        %vm1675 = vweird.f32 %v1669
        %vm1676 = vmor %vm1674, %vm1675
        %v1677 = vsel %vm1676, %v1669, %v1673
        %v1678 = vand.u32 2147483647, %v1666
        %vm1679 = vcmp.eq.f32.partialorder %v1678, 8.507059e+37
        %v1680 = vand.u32 %v1666, 2147483648
        %v1681 = vor.u32 1.1754944e-38, %v1680
        %v1682 = vsel %vm1679, %v1681, %v1677
        %v1683 = vmul.f32 1.0, %v1682
        %v1684 = vrcp.pop %v1667
        %v1685 = vmul.f32 %v1667, %v1684
        %v1686 = vsub.f32 1.0, %v1685
        %v1687 = vmul.f32 %v1684, %v1686
        %v1688 = vadd.f32 %v1684, %v1687
        %vm1689 = vweird.f32 %v1667
        %vm1690 = vweird.f32 %v1684
        %vm1691 = vmor %vm1689, %vm1690
        %v1692 = vsel %vm1691, %v1684, %v1688
        %v1693 = vand.u32 2147483647, %v1667
        %vm1694 = vcmp.eq.f32.partialorder %v1693, 8.507059e+37
        %v1695 = vand.u32 %v1667, 2147483648
        %v1696 = vor.u32 1.1754944e-38, %v1695
        %v1697 = vsel %vm1694, %v1696, %v1692
        %v1698 = vmul.f32 1.0, %v1697
        %v1699 = vrcp.pop %v1668
        %v1700 = vmul.f32 %v1668, %v1699
        %v1701 = vsub.f32 1.0, %v1700
        %v1702 = vmul.f32 %v1699, %v1701
        %v1703 = vadd.f32 %v1699, %v1702
        %vm1704 = vweird.f32 %v1668
        %vm1705 = vweird.f32 %v1699
        %vm1706 = vmor %vm1704, %vm1705
        %v1707 = vsel %vm1706, %v1699, %v1703
        %v1708 = vand.u32 2147483647, %v1668
        %vm1709 = vcmp.eq.f32.partialorder %v1708, 8.507059e+37
        %v1710 = vand.u32 %v1668, 2147483648
        %v1711 = vor.u32 1.1754944e-38, %v1710
        %v1712 = vsel %vm1709, %v1711, %v1707
        %v1713 = vmul.f32 1.0, %v1712
        %v1714 = vtanh.pop %v1656
        %v1715 = vmul.f32 %v1698, %v1568
        %v1716 = vmul.f32 %v1683, %v1714
        %v1717 = vadd.f32 %v1715, %v1716
        %v1718 = vtanh.pop %v1717
        %v1719 = vmul.f32 %v1713, %v1718
        %v1720 = vsel %vm795, %v1719, %v1566
        %v1721 = vsel %vm795, %v1717, %v1568
        %v1722 = vsel %vm795, %v1719, 0.0
        %1723 = vst [vmem:[#allocation4] sm:$0xff] %v1722
        %v1724 = vld [vmem:[%s802] sm:$0xff]
        %v1725 = vld [vmem:[%s802 + $0x8] sm:$0xff]
        %v1726 = vld [vmem:[%s802 + $0x10] sm:$0xff]
        %v1727 = vld [vmem:[%s802 + $0x18] sm:$0xff]
        %1728 = vmatpush.msra.mxu0 %v1561
        %1729 = vmatpush.msra.mxu0 %v1557
        %1730 = vmatpush.msra.mxu0 %v1553
        %1731 = vmatpush.msra.mxu0 %v1549
        %1732 = vmatpush.msra.mxu0 %v1545
        %1733 = vmatpush.msra.mxu0 %v1541
        %1734 = vmatpush.msra.mxu0 %v1537
        %1735 = vmatpush.msra.mxu0 %v1533
        %1736 = vmatpush.msra.mxu0 %v1529
        %1737 = vmatpush.msra.mxu0 %v1525
        %1738 = vmatpush.msra.mxu0 %v1521
        %1739 = vmatpush.msra.mxu0 %v1517
        %1740 = vmatpush.msra.mxu0 %v1513
        %1741 = vmatpush.msra.mxu0 %v1509
        %1742 = vmatpush.msra.mxu0 %v1505
        %1743 = vmatpush.msra.mxu0 %v1501
        %1744 = vmatmul.f32.gmra.mxu0 %v1720
        %v1745 = vpop.f32.mrf.mxu0
        %v1746 = vadd.f32 0.0, %v1745
        %1747 = vdwg.mxu0
        %1748 = vmatpush.msra.mxu0 %v1562
        %1749 = vmatpush.msra.mxu0 %v1558
        %1750 = vmatpush.msra.mxu0 %v1554
        %1751 = vmatpush.msra.mxu0 %v1550
        %1752 = vmatpush.msra.mxu0 %v1546
        %1753 = vmatpush.msra.mxu0 %v1542
        %1754 = vmatpush.msra.mxu0 %v1538
        %1755 = vmatpush.msra.mxu0 %v1534
        %1756 = vmatpush.msra.mxu0 %v1530
        %1757 = vmatpush.msra.mxu0 %v1526
        %1758 = vmatpush.msra.mxu0 %v1522
        %1759 = vmatpush.msra.mxu0 %v1518
        %1760 = vmatpush.msra.mxu0 %v1514
        %1761 = vmatpush.msra.mxu0 %v1510
        %1762 = vmatpush.msra.mxu0 %v1506
        %1763 = vmatpush.msra.mxu0 %v1502
        %1764 = vmatmul.f32.gmra.mxu0 %v1720
        %v1765 = vpop.f32.mrf.mxu0
        %v1766 = vadd.f32 0.0, %v1765
        %1767 = vdwg.mxu0
        %1768 = vmatpush.msra.mxu0 %v1563
        %1769 = vmatpush.msra.mxu0 %v1559
        %1770 = vmatpush.msra.mxu0 %v1555
        %1771 = vmatpush.msra.mxu0 %v1551
        %1772 = vmatpush.msra.mxu0 %v1547
        %1773 = vmatpush.msra.mxu0 %v1543
        %1774 = vmatpush.msra.mxu0 %v1539
        %1775 = vmatpush.msra.mxu0 %v1535
        %1776 = vmatpush.msra.mxu0 %v1531
        %1777 = vmatpush.msra.mxu0 %v1527
        %1778 = vmatpush.msra.mxu0 %v1523
        %1779 = vmatpush.msra.mxu0 %v1519
        %1780 = vmatpush.msra.mxu0 %v1515
        %1781 = vmatpush.msra.mxu0 %v1511
        %1782 = vmatpush.msra.mxu0 %v1507
        %1783 = vmatpush.msra.mxu0 %v1503
        %1784 = vmatmul.f32.gmra.mxu0 %v1720
        %v1785 = vpop.f32.mrf.mxu0
        %v1786 = vadd.f32 0.0, %v1785
        %1787 = vdwg.mxu0
        %1788 = vmatpush.msra.mxu0 %v1564
        %1789 = vmatpush.msra.mxu0 %v1560
        %1790 = vmatpush.msra.mxu0 %v1556
        %1791 = vmatpush.msra.mxu0 %v1552
        %1792 = vmatpush.msra.mxu0 %v1548
        %1793 = vmatpush.msra.mxu0 %v1544
        %1794 = vmatpush.msra.mxu0 %v1540
        %1795 = vmatpush.msra.mxu0 %v1536
        %1796 = vmatpush.msra.mxu0 %v1532
        %1797 = vmatpush.msra.mxu0 %v1528
        %1798 = vmatpush.msra.mxu0 %v1524
        %1799 = vmatpush.msra.mxu0 %v1520
        %1800 = vmatpush.msra.mxu0 %v1516
        %1801 = vmatpush.msra.mxu0 %v1512
        %1802 = vmatpush.msra.mxu0 %v1508
        %1803 = vmatpush.msra.mxu0 %v1504
        %1804 = vmatmul.f32.gmra.mxu0 %v1720
        %v1805 = vpop.f32.mrf.mxu0
        %v1806 = vadd.f32 0.0, %v1805
        %1807 = vdwg.mxu0
        %v1808 = vadd.f32 %v1724, %v1746
        %v1809 = vadd.f32 %v1725, %v1766
        %v1810 = vadd.f32 %v1726, %v1786
        %v1811 = vadd.f32 %v1727, %v1806
        %v1812 = vxor.u32 %v1808, 2147483648
        %v1813 = vxor.u32 %v1809, 2147483648
        %v1814 = vxor.u32 %v1810, 2147483648
        %v1815 = vmul.f32 %v1812, 1.442695
        %v1816 = vpow.pop %v1815
        %v1817 = vmul.f32 %v1813, 1.442695
        %v1818 = vpow.pop %v1817
        %v1819 = vmul.f32 %v1814, 1.442695
        %v1820 = vpow.pop %v1819
        %v1821 = vadd.f32 %v1816, 1.0
        %v1822 = vadd.f32 %v1818, 1.0
        %v1823 = vadd.f32 %v1820, 1.0
        %v1824 = vrcp.pop %v1821
        %v1825 = vmul.f32 %v1821, %v1824
        %v1826 = vsub.f32 1.0, %v1825
        %v1827 = vmul.f32 %v1824, %v1826
        %v1828 = vadd.f32 %v1824, %v1827
        %vm1829 = vweird.f32 %v1821
        %vm1830 = vweird.f32 %v1824
        %vm1831 = vmor %vm1829, %vm1830
        %v1832 = vsel %vm1831, %v1824, %v1828
        %v1833 = vand.u32 2147483647, %v1821
        %vm1834 = vcmp.eq.f32.partialorder %v1833, 8.507059e+37
        %v1835 = vand.u32 %v1821, 2147483648
        %v1836 = vor.u32 1.1754944e-38, %v1835
        %v1837 = vsel %vm1834, %v1836, %v1832
        %v1838 = vmul.f32 1.0, %v1837
        %v1839 = vrcp.pop %v1822
        %v1840 = vmul.f32 %v1822, %v1839
        %v1841 = vsub.f32 1.0, %v1840
        %v1842 = vmul.f32 %v1839, %v1841
        %v1843 = vadd.f32 %v1839, %v1842
        %vm1844 = vweird.f32 %v1822
        %vm1845 = vweird.f32 %v1839
        %vm1846 = vmor %vm1844, %vm1845
        %v1847 = vsel %vm1846, %v1839, %v1843
        %v1848 = vand.u32 2147483647, %v1822
        %vm1849 = vcmp.eq.f32.partialorder %v1848, 8.507059e+37
        %v1850 = vand.u32 %v1822, 2147483648
        %v1851 = vor.u32 1.1754944e-38, %v1850
        %v1852 = vsel %vm1849, %v1851, %v1847
        %v1853 = vmul.f32 1.0, %v1852
        %v1854 = vrcp.pop %v1823
        %v1855 = vmul.f32 %v1823, %v1854
        %v1856 = vsub.f32 1.0, %v1855
        %v1857 = vmul.f32 %v1854, %v1856
        %v1858 = vadd.f32 %v1854, %v1857
        %vm1859 = vweird.f32 %v1823
        %vm1860 = vweird.f32 %v1854
        %vm1861 = vmor %vm1859, %vm1860
        %v1862 = vsel %vm1861, %v1854, %v1858
        %v1863 = vand.u32 2147483647, %v1823
        %vm1864 = vcmp.eq.f32.partialorder %v1863, 8.507059e+37
        %v1865 = vand.u32 %v1823, 2147483648
        %v1866 = vor.u32 1.1754944e-38, %v1865
        %v1867 = vsel %vm1864, %v1866, %v1862
        %v1868 = vmul.f32 1.0, %v1867
        %v1869 = vtanh.pop %v1811
        %v1870 = vmul.f32 %v1853, %v1721
        %v1871 = vmul.f32 %v1838, %v1869
        %v1872 = vadd.f32 %v1870, %v1871
        %v1873 = vtanh.pop %v1872
        %v1874 = vmul.f32 %v1868, %v1873
        %v1875 = vsel %vm956, %v1874, %v1720
        %v1876 = vsel %vm956, %v1872, %v1721
        %v1877 = vsel %vm956, %v1874, 0.0
        %1878 = vst [vmem:[%s960] sm:$0xff] %v1877
        %v1879 = vld [vmem:[%s964] sm:$0xff]
        %v1880 = vld [vmem:[%s964 + $0x8] sm:$0xff]
        %v1881 = vld [vmem:[%s964 + $0x10] sm:$0xff]
        %v1882 = vld [vmem:[%s964 + $0x18] sm:$0xff]
        %1883 = vmatpush.msra.mxu0 %v1561
        %1884 = vmatpush.msra.mxu0 %v1557
        %1885 = vmatpush.msra.mxu0 %v1553
        %1886 = vmatpush.msra.mxu0 %v1549
        %1887 = vmatpush.msra.mxu0 %v1545
        %1888 = vmatpush.msra.mxu0 %v1541
        %1889 = vmatpush.msra.mxu0 %v1537
        %1890 = vmatpush.msra.mxu0 %v1533
        %1891 = vmatpush.msra.mxu0 %v1529
        %1892 = vmatpush.msra.mxu0 %v1525
        %1893 = vmatpush.msra.mxu0 %v1521
        %1894 = vmatpush.msra.mxu0 %v1517
        %1895 = vmatpush.msra.mxu0 %v1513
        %1896 = vmatpush.msra.mxu0 %v1509
        %1897 = vmatpush.msra.mxu0 %v1505
        %1898 = vmatpush.msra.mxu0 %v1501
        %1899 = vmatmul.f32.gmra.mxu0 %v1875
        %v1900 = vpop.f32.mrf.mxu0
        %v1901 = vadd.f32 0.0, %v1900
        %1902 = vdwg.mxu0
        %1903 = vmatpush.msra.mxu0 %v1562
        %1904 = vmatpush.msra.mxu0 %v1558
        %1905 = vmatpush.msra.mxu0 %v1554
        %1906 = vmatpush.msra.mxu0 %v1550
        %1907 = vmatpush.msra.mxu0 %v1546
        %1908 = vmatpush.msra.mxu0 %v1542
        %1909 = vmatpush.msra.mxu0 %v1538
        %1910 = vmatpush.msra.mxu0 %v1534
        %1911 = vmatpush.msra.mxu0 %v1530
        %1912 = vmatpush.msra.mxu0 %v1526
        %1913 = vmatpush.msra.mxu0 %v1522
        %1914 = vmatpush.msra.mxu0 %v1518
        %1915 = vmatpush.msra.mxu0 %v1514
        %1916 = vmatpush.msra.mxu0 %v1510
        %1917 = vmatpush.msra.mxu0 %v1506
        %1918 = vmatpush.msra.mxu0 %v1502
        %1919 = vmatmul.f32.gmra.mxu0 %v1875
        %v1920 = vpop.f32.mrf.mxu0
        %v1921 = vadd.f32 0.0, %v1920
        %1922 = vdwg.mxu0
        %1923 = vmatpush.msra.mxu0 %v1563
        %1924 = vmatpush.msra.mxu0 %v1559
        %1925 = vmatpush.msra.mxu0 %v1555
        %1926 = vmatpush.msra.mxu0 %v1551
        %1927 = vmatpush.msra.mxu0 %v1547
        %1928 = vmatpush.msra.mxu0 %v1543
        %1929 = vmatpush.msra.mxu0 %v1539
        %1930 = vmatpush.msra.mxu0 %v1535
        %1931 = vmatpush.msra.mxu0 %v1531
        %1932 = vmatpush.msra.mxu0 %v1527
        %1933 = vmatpush.msra.mxu0 %v1523
        %1934 = vmatpush.msra.mxu0 %v1519
        %1935 = vmatpush.msra.mxu0 %v1515
        %1936 = vmatpush.msra.mxu0 %v1511
        %1937 = vmatpush.msra.mxu0 %v1507
        %1938 = vmatpush.msra.mxu0 %v1503
        %1939 = vmatmul.f32.gmra.mxu0 %v1875
        %v1940 = vpop.f32.mrf.mxu0
        %v1941 = vadd.f32 0.0, %v1940
        %1942 = vdwg.mxu0
        %1943 = vmatpush.msra.mxu0 %v1564
        %1944 = vmatpush.msra.mxu0 %v1560
        %1945 = vmatpush.msra.mxu0 %v1556
        %1946 = vmatpush.msra.mxu0 %v1552
        %1947 = vmatpush.msra.mxu0 %v1548
        %1948 = vmatpush.msra.mxu0 %v1544
        %1949 = vmatpush.msra.mxu0 %v1540
        %1950 = vmatpush.msra.mxu0 %v1536
        %1951 = vmatpush.msra.mxu0 %v1532
        %1952 = vmatpush.msra.mxu0 %v1528
        %1953 = vmatpush.msra.mxu0 %v1524
        %1954 = vmatpush.msra.mxu0 %v1520
        %1955 = vmatpush.msra.mxu0 %v1516
        %1956 = vmatpush.msra.mxu0 %v1512
        %1957 = vmatpush.msra.mxu0 %v1508
        %1958 = vmatpush.msra.mxu0 %v1504
        %1959 = vmatmul.f32.gmra.mxu0 %v1875
        %v1960 = vpop.f32.mrf.mxu0
        %v1961 = vadd.f32 0.0, %v1960
        %1962 = vdwg.mxu0
        %v1963 = vadd.f32 %v1879, %v1901
        %v1964 = vadd.f32 %v1880, %v1921
        %v1965 = vadd.f32 %v1881, %v1941
        %v1966 = vadd.f32 %v1882, %v1961
        %v1967 = vxor.u32 %v1963, 2147483648
        %v1968 = vxor.u32 %v1964, 2147483648
        %v1969 = vxor.u32 %v1965, 2147483648
        %v1970 = vmul.f32 %v1967, 1.442695
        %v1971 = vpow.pop %v1970
        %v1972 = vmul.f32 %v1968, 1.442695
        %v1973 = vpow.pop %v1972
        %v1974 = vmul.f32 %v1969, 1.442695
        %v1975 = vpow.pop %v1974
        %v1976 = vadd.f32 %v1971, 1.0
        %v1977 = vadd.f32 %v1973, 1.0
        %v1978 = vadd.f32 %v1975, 1.0
        %v1979 = vrcp.pop %v1976
        %v1980 = vmul.f32 %v1976, %v1979
        %v1981 = vsub.f32 1.0, %v1980
        %v1982 = vmul.f32 %v1979, %v1981
        %v1983 = vadd.f32 %v1979, %v1982
        %vm1984 = vweird.f32 %v1976
        %vm1985 = vweird.f32 %v1979
        %vm1986 = vmor %vm1984, %vm1985
        %v1987 = vsel %vm1986, %v1979, %v1983
        %v1988 = vand.u32 2147483647, %v1976
        %vm1989 = vcmp.eq.f32.partialorder %v1988, 8.507059e+37
        %v1990 = vand.u32 %v1976, 2147483648
        %v1991 = vor.u32 1.1754944e-38, %v1990
        %v1992 = vsel %vm1989, %v1991, %v1987
        %v1993 = vmul.f32 1.0, %v1992
        %v1994 = vrcp.pop %v1977
        %v1995 = vmul.f32 %v1977, %v1994
        %v1996 = vsub.f32 1.0, %v1995
        %v1997 = vmul.f32 %v1994, %v1996
        %v1998 = vadd.f32 %v1994, %v1997
        %vm1999 = vweird.f32 %v1977
        %vm2000 = vweird.f32 %v1994
        %vm2001 = vmor %vm1999, %vm2000
        %v2002 = vsel %vm2001, %v1994, %v1998
        %v2003 = vand.u32 2147483647, %v1977
        %vm2004 = vcmp.eq.f32.partialorder %v2003, 8.507059e+37
        %v2005 = vand.u32 %v1977, 2147483648
        %v2006 = vor.u32 1.1754944e-38, %v2005
        %v2007 = vsel %vm2004, %v2006, %v2002
        %v2008 = vmul.f32 1.0, %v2007
        %v2009 = vrcp.pop %v1978
        %v2010 = vmul.f32 %v1978, %v2009
        %v2011 = vsub.f32 1.0, %v2010
        %v2012 = vmul.f32 %v2009, %v2011
        %v2013 = vadd.f32 %v2009, %v2012
        %vm2014 = vweird.f32 %v1978
        %vm2015 = vweird.f32 %v2009
        %vm2016 = vmor %vm2014, %vm2015
        %v2017 = vsel %vm2016, %v2009, %v2013
        %v2018 = vand.u32 2147483647, %v1978
        %vm2019 = vcmp.eq.f32.partialorder %v2018, 8.507059e+37
        %v2020 = vand.u32 %v1978, 2147483648
        %v2021 = vor.u32 1.1754944e-38, %v2020
        %v2022 = vsel %vm2019, %v2021, %v2017
        %v2023 = vmul.f32 1.0, %v2022
        %v2024 = vtanh.pop %v1966
        %v2025 = vmul.f32 %v2008, %v1876
        %v2026 = vmul.f32 %v1993, %v2024
        %v2027 = vadd.f32 %v2025, %v2026
        %v2028 = vtanh.pop %v2027
        %v2029 = vmul.f32 %v2023, %v2028
        %v2030 = vsel %vm1118, %v2029, %v1875
        %v2031 = vsel %vm1118, %v2027, %v1876
        %v2032 = vsel %vm1118, %v2029, 0.0
        %2033 = vst [vmem:[%s1122] sm:$0xff] %v2032
        %v2034 = vld [vmem:[%s1126] sm:$0xff]
        %v2035 = vld [vmem:[%s1126 + $0x8] sm:$0xff]
        %v2036 = vld [vmem:[%s1126 + $0x10] sm:$0xff]
        %v2037 = vld [vmem:[%s1126 + $0x18] sm:$0xff]
        %2038 = vmatpush.msra.mxu0 %v1561
        %2039 = vmatpush.msra.mxu0 %v1557
        %2040 = vmatpush.msra.mxu0 %v1553
        %2041 = vmatpush.msra.mxu0 %v1549
        %2042 = vmatpush.msra.mxu0 %v1545
        %2043 = vmatpush.msra.mxu0 %v1541
        %2044 = vmatpush.msra.mxu0 %v1537
        %2045 = vmatpush.msra.mxu0 %v1533
        %2046 = vmatpush.msra.mxu0 %v1529
        %2047 = vmatpush.msra.mxu0 %v1525
        %2048 = vmatpush.msra.mxu0 %v1521
        %2049 = vmatpush.msra.mxu0 %v1517
        %2050 = vmatpush.msra.mxu0 %v1513
        %2051 = vmatpush.msra.mxu0 %v1509
        %2052 = vmatpush.msra.mxu0 %v1505
        %2053 = vmatpush.msra.mxu0 %v1501
        %2054 = vmatmul.f32.gmra.mxu0 %v2030
        %v2055 = vpop.f32.mrf.mxu0
        %v2056 = vadd.f32 0.0, %v2055
        %2057 = vdwg.mxu0
        %2058 = vmatpush.msra.mxu0 %v1562
        %2059 = vmatpush.msra.mxu0 %v1558
        %2060 = vmatpush.msra.mxu0 %v1554
        %2061 = vmatpush.msra.mxu0 %v1550
        %2062 = vmatpush.msra.mxu0 %v1546
        %2063 = vmatpush.msra.mxu0 %v1542
        %2064 = vmatpush.msra.mxu0 %v1538
        %2065 = vmatpush.msra.mxu0 %v1534
        %2066 = vmatpush.msra.mxu0 %v1530
        %2067 = vmatpush.msra.mxu0 %v1526
        %2068 = vmatpush.msra.mxu0 %v1522
        %2069 = vmatpush.msra.mxu0 %v1518
        %2070 = vmatpush.msra.mxu0 %v1514
        %2071 = vmatpush.msra.mxu0 %v1510
        %2072 = vmatpush.msra.mxu0 %v1506
        %2073 = vmatpush.msra.mxu0 %v1502
        %2074 = vmatmul.f32.gmra.mxu0 %v2030
        %v2075 = vpop.f32.mrf.mxu0
        %v2076 = vadd.f32 0.0, %v2075
        %2077 = vdwg.mxu0
        %2078 = vmatpush.msra.mxu0 %v1563
        %2079 = vmatpush.msra.mxu0 %v1559
        %2080 = vmatpush.msra.mxu0 %v1555
        %2081 = vmatpush.msra.mxu0 %v1551
        %2082 = vmatpush.msra.mxu0 %v1547
        %2083 = vmatpush.msra.mxu0 %v1543
        %2084 = vmatpush.msra.mxu0 %v1539
        %2085 = vmatpush.msra.mxu0 %v1535
        %2086 = vmatpush.msra.mxu0 %v1531
        %2087 = vmatpush.msra.mxu0 %v1527
        %2088 = vmatpush.msra.mxu0 %v1523
        %2089 = vmatpush.msra.mxu0 %v1519
        %2090 = vmatpush.msra.mxu0 %v1515
        %2091 = vmatpush.msra.mxu0 %v1511
        %2092 = vmatpush.msra.mxu0 %v1507
        %2093 = vmatpush.msra.mxu0 %v1503
        %2094 = vmatmul.f32.gmra.mxu0 %v2030
        %v2095 = vpop.f32.mrf.mxu0
        %v2096 = vadd.f32 0.0, %v2095
        %2097 = vdwg.mxu0
        %2098 = vmatpush.msra.mxu0 %v1564
        %2099 = vmatpush.msra.mxu0 %v1560
        %2100 = vmatpush.msra.mxu0 %v1556
        %2101 = vmatpush.msra.mxu0 %v1552
        %2102 = vmatpush.msra.mxu0 %v1548
        %2103 = vmatpush.msra.mxu0 %v1544
        %2104 = vmatpush.msra.mxu0 %v1540
        %2105 = vmatpush.msra.mxu0 %v1536
        %2106 = vmatpush.msra.mxu0 %v1532
        %2107 = vmatpush.msra.mxu0 %v1528
        %2108 = vmatpush.msra.mxu0 %v1524
        %2109 = vmatpush.msra.mxu0 %v1520
        %2110 = vmatpush.msra.mxu0 %v1516
        %2111 = vmatpush.msra.mxu0 %v1512
        %2112 = vmatpush.msra.mxu0 %v1508
        %2113 = vmatpush.msra.mxu0 %v1504
        %2114 = vmatmul.f32.gmra.mxu0 %v2030
        %v2115 = vpop.f32.mrf.mxu0
        %v2116 = vadd.f32 0.0, %v2115
        %2117 = vdwg.mxu0
        %v2118 = vadd.f32 %v2034, %v2056
        %v2119 = vadd.f32 %v2035, %v2076
        %v2120 = vadd.f32 %v2036, %v2096
        %v2121 = vadd.f32 %v2037, %v2116
        %v2122 = vxor.u32 %v2118, 2147483648
        %v2123 = vxor.u32 %v2119, 2147483648
        %v2124 = vxor.u32 %v2120, 2147483648
        %v2125 = vmul.f32 %v2122, 1.442695
        %v2126 = vpow.pop %v2125
        %v2127 = vmul.f32 %v2123, 1.442695
        %v2128 = vpow.pop %v2127
        %v2129 = vmul.f32 %v2124, 1.442695
        %v2130 = vpow.pop %v2129
        %v2131 = vadd.f32 %v2126, 1.0
        %v2132 = vadd.f32 %v2128, 1.0
        %v2133 = vadd.f32 %v2130, 1.0
        %v2134 = vrcp.pop %v2131
        %v2135 = vmul.f32 %v2131, %v2134
        %v2136 = vsub.f32 1.0, %v2135
        %v2137 = vmul.f32 %v2134, %v2136
        %v2138 = vadd.f32 %v2134, %v2137
        %vm2139 = vweird.f32 %v2131
        %vm2140 = vweird.f32 %v2134
        %vm2141 = vmor %vm2139, %vm2140
        %v2142 = vsel %vm2141, %v2134, %v2138
        %v2143 = vand.u32 2147483647, %v2131
        %vm2144 = vcmp.eq.f32.partialorder %v2143, 8.507059e+37
        %v2145 = vand.u32 %v2131, 2147483648
        %v2146 = vor.u32 1.1754944e-38, %v2145
        %v2147 = vsel %vm2144, %v2146, %v2142
        %v2148 = vmul.f32 1.0, %v2147
        %v2149 = vrcp.pop %v2132
        %v2150 = vmul.f32 %v2132, %v2149
        %v2151 = vsub.f32 1.0, %v2150
        %v2152 = vmul.f32 %v2149, %v2151
        %v2153 = vadd.f32 %v2149, %v2152
        %vm2154 = vweird.f32 %v2132
        %vm2155 = vweird.f32 %v2149
        %vm2156 = vmor %vm2154, %vm2155
        %v2157 = vsel %vm2156, %v2149, %v2153
        %v2158 = vand.u32 2147483647, %v2132
        %vm2159 = vcmp.eq.f32.partialorder %v2158, 8.507059e+37
        %v2160 = vand.u32 %v2132, 2147483648
        %v2161 = vor.u32 1.1754944e-38, %v2160
        %v2162 = vsel %vm2159, %v2161, %v2157
        %v2163 = vmul.f32 1.0, %v2162
        %v2164 = vrcp.pop %v2133
        %v2165 = vmul.f32 %v2133, %v2164
        %v2166 = vsub.f32 1.0, %v2165
        %v2167 = vmul.f32 %v2164, %v2166
        %v2168 = vadd.f32 %v2164, %v2167
        %vm2169 = vweird.f32 %v2133
        %vm2170 = vweird.f32 %v2164
        %vm2171 = vmor %vm2169, %vm2170
        %v2172 = vsel %vm2171, %v2164, %v2168
        %v2173 = vand.u32 2147483647, %v2133
        %vm2174 = vcmp.eq.f32.partialorder %v2173, 8.507059e+37
        %v2175 = vand.u32 %v2133, 2147483648
        %v2176 = vor.u32 1.1754944e-38, %v2175
        %v2177 = vsel %vm2174, %v2176, %v2172
        %v2178 = vmul.f32 1.0, %v2177
        %v2179 = vtanh.pop %v2121
        %v2180 = vmul.f32 %v2163, %v2031
        %v2181 = vmul.f32 %v2148, %v2179
        %v2182 = vadd.f32 %v2180, %v2181
        %v2183 = vtanh.pop %v2182
        %v2184 = vmul.f32 %v2178, %v2183
        %v2185 = vsel %vm1280, %v2184, %v2030
        %v2186 = vsel %vm1280, %v2182, %v2031
        %v2187 = vsel %vm1280, %v2184, 0.0
        %2188 = vst [vmem:[%s1284] sm:$0xff] %v2187
        %2189 = vst [vmem:[%s1565] sm:$0xff] %v2185
        %2190 = vst [vmem:[%s1567] sm:$0xff] %v2186
        %v2191 = vld [vmem:[#allocation4] sm:$0xff]
        %v2192 = vld [vmem:[#allocation4 + $0x8] sm:$0xff]
        %v2193 = vld [vmem:[#allocation4 + $0x10] sm:$0xff]
        %v2194 = vld [vmem:[#allocation4 + $0x18] sm:$0xff]
        %v2195 = vld [vmem:[#allocation12] sm:$0xff]
        %v2196 = vld [vmem:[#allocation12 + $0x8] sm:$0xff]
        %v2197 = vld [vmem:[#allocation12 + $0x10] sm:$0xff]
        %v2198 = vld [vmem:[#allocation12 + $0x18] sm:$0xff]
        %v2199 = vld [vmem:[#allocation12 + $0x20] sm:$0xff]
        %v2200 = vld [vmem:[#allocation12 + $0x28] sm:$0xff]
        %v2201 = vld [vmem:[#allocation12 + $0x30] sm:$0xff]
        %v2202 = vld [vmem:[#allocation12 + $0x38] sm:$0xff]
        %v2203 = vld [vmem:[#allocation12 + $0x40] sm:$0xff]
        %v2204 = vld [vmem:[#allocation12 + $0x48] sm:$0xff]
        %v2205 = vld [vmem:[#allocation12 + $0x50] sm:$0xff]
        %v2206 = vld [vmem:[#allocation12 + $0x58] sm:$0xff]
        %v2207 = vld [vmem:[#allocation12 + $0x60] sm:$0xff]
        %v2208 = vld [vmem:[#allocation12 + $0x68] sm:$0xff]
        %v2209 = vld [vmem:[#allocation12 + $0x70] sm:$0xff]
        %v2210 = vld [vmem:[#allocation12 + $0x78] sm:$0xff]
        %v2211 = vld [vmem:[%s6] sm:$0x1]
        %v2213 = vperm.slane %v2211, 0
        %2215 = vmatpush.msra.mxu0 %v2210
        %2216 = vmatpush.msra.mxu0 %v2209
        %2217 = vmatpush.msra.mxu0 %v2208
        %2218 = vmatpush.msra.mxu0 %v2207
        %2219 = vmatpush.msra.mxu0 %v2206
        %2220 = vmatpush.msra.mxu0 %v2205
        %2221 = vmatpush.msra.mxu0 %v2204
        %2222 = vmatpush.msra.mxu0 %v2203
        %2223 = vmatpush.msra.mxu0 %v2202
        %2224 = vmatpush.msra.mxu0 %v2201
        %2225 = vmatpush.msra.mxu0 %v2200
        %2226 = vmatpush.msra.mxu0 %v2199
        %2227 = vmatpush.msra.mxu0 %v2198
        %2228 = vmatpush.msra.mxu0 %v2197
        %2229 = vmatpush.msra.mxu0 %v2196
        %2230 = vmatpush.msra.mxu0 %v2195
        %2231 = vmatmul.f32.gmra.mxu0 %v2191
        %v2232 = vpop.f32.mrf.mxu0
        %v2233 = vadd.f32 %v2213, %v2232
        %2234 = vmatmul.f32.gmra.mxu0 %v2192
        %v2235 = vpop.f32.mrf.mxu0
        %v2236 = vadd.f32 %v2213, %v2235
        %2237 = vmatmul.f32.gmra.mxu0 %v2193
        %v2238 = vpop.f32.mrf.mxu0
        %v2239 = vadd.f32 %v2213, %v2238
        %2240 = vmatmul.f32.gmra.mxu0 %v2194
        %v2241 = vpop.f32.mrf.mxu0
        %v2242 = vadd.f32 %v2213, %v2241
        %2243 = vdwg.mxu0
        %2244 = vst [vmem:[%s348] sm:$0xff] %v2233
        %2245 = vst [vmem:[%s348 + $0x8] sm:$0xff] %v2236
        %2246 = vst [vmem:[%s348 + $0x10] sm:$0xff] %v2239
        %2247 = vst [vmem:[%s348 + $0x18] sm:$0xff] %v2242
        %s2248 = sand.u32 %s186, 1
        %s2249 = scalar_lea.sflag [#allocation8], %s2248
        %s2250 = sand.u32 %s186, 1
        %s2251 = smul.addr %s2250, 32
        %s2252 = scalar_lea.vmem [#allocation14], %s2251
        // Predicated region
        $region69: #{tpu_custom_call.1} parent=47 // pred_check
          %p2253 = pneg %p196
        $region70: #{tpu_custom_call.1} parent=47 // pred_check_branch
          %2255 = sbr.rel (%p2253) target = $region72
        $region71: #{tpu_custom_call.1} parent=47 // pred_region
          %s2256 = smul.u32 4, %s26
          %2258 = vsyncadd %s2249, 0
          %s2259 = smul.addr %s2256, 8
          %s2260 = scalar_lea.hbm %s7, %s2259
          %s2261 = sshll.u32 %s2252, 4
          %s2262 = int_to_ptr.vmem [resolvable:$true] %s2261
          %s2263 = sshll.u32 %s2260, 4
          %s2264 = int_to_ptr.hbm [resolvable:$true] %s2263
          %2269 = dma.vmem_to_hbm [thread:$0]  %s2262, 512, %s2264, %s2249, 128, 128, 8
        $region72: #{tpu_custom_call.1} parent=47 // pred_fallthru
          _
      $region48: #{tpu_custom_call.1} parent=5 // pred_fallthru
        _
      %p2270 = scmp.le.s32.totalorder 2, %s21
      // Predicated region
      $region73: #{tpu_custom_call.1} parent=5 // pred_check
        %p2271 = pneg %p2270
      $region74: #{tpu_custom_call.1} parent=5 // pred_check_branch
        %2273 = sbr.rel (%p2271) target = $region76
      $region75: #{tpu_custom_call.1} parent=5 // pred_region
        %s2274 = ssub.s32 %s21, 2
        // Predicated region
        $region77: #{tpu_custom_call.1} parent=75 // pred_check
          %p2275 = pneg %p202
        $region78: #{tpu_custom_call.1} parent=75 // pred_check_branch
          %2277 = sbr.rel (%p2275) target = $region80
        $region79: #{tpu_custom_call.1} parent=75 // pred_region
          %s2278 = sand.u32 %s187, 1
          %s2279 = scalar_lea.sflag [#allocation8], %s2278
          %s2280 = sand.u32 %s187, 1
          %s2281 = smul.addr %s2280, 32
          %s2282 = scalar_lea.vmem [#allocation14], %s2281
          %2284 = dma.done %s2279, 512
        $region80: #{tpu_custom_call.1} parent=75 // pred_fallthru
          _
      $region76: #{tpu_custom_call.1} parent=5 // pred_fallthru
        _
    $region6: #{tpu_custom_call.1} parent=1 // loop_footer
      %s25 = sadd.s32 1, %s21
    $region7: #{tpu_custom_call.1} parent=1 // loop_footer_branch
      %20 = sbr.rel target = $region3
    $region8: #{tpu_custom_call.1} parent=1 // loop_exit
      _
    %2285 = vsyncpa [#allocation7], 1
    %s2286 = scalar_lea.sflag [#allocation7], 1
    %2287 = vsyncpa %s2286, 1
    %2288 = vsyncpa [#allocation10], 1
    %2289 = vsyncpa [#allocation13], 1
    %2290 = vsyncpa [#allocation8], 1
    %s2291 = scalar_lea.sflag [#allocation8], 1
    %2292 = vsyncpa %s2291, 1

</llo_original>
